<compile_context>
chip_gen: v7x
topology: tpu7x:2x2x1
jax: 0.10.0
libtpu: 0.0.40
codegen_flags: <defaults>
</compile_context>

<pallas_src>
import functools

import jax
import jax.numpy as jnp
import numpy as np
from jax.experimental import pallas as pl
from jax.experimental.pallas import tpu as pltpu


# ----------------------------- in-kernel helpers -----------------------------

def _ln(x, g, b, eps):
    """LayerNorm over the last dim (f32 math)."""
    mu = jnp.mean(x, axis=-1, keepdims=True)
    xc = x - mu
    var = jnp.mean(xc * xc, axis=-1, keepdims=True)
    return xc * jax.lax.rsqrt(var + eps) * g + b


def _mm(a, b):
    """bf16 MXU matmul with f32 accumulation (elementwise math stays f32)."""
    return jnp.dot(a.astype(jnp.bfloat16), b.astype(jnp.bfloat16),
                   preferred_element_type=jnp.float32)


def _gelu_tanh(x):
    # tanh-approx GELU: one EUP tanh instead of ~10 VALU ops for the erf poly.
    c = 0.7978845608028654  # sqrt(2/pi)
    return 0.5 * x * (1.0 + jnp.tanh(c * (x + 0.044715 * x * x * x)))


def _mha(xn, cn, mask, wq_ref, wk_ref, wv_ref, wo_ref, scale, heads):
    """Multi-head attention fully inside the kernel.

    Per-head weights are stacked on the leading axis (H, D_in, dh) so all
    slicing is leading-dim ref indexing.  The output projection is folded in
    as an accumulation:  out @ Wo == sum_h out_h @ Wo_h.
    Returns (N, D_out) in f32.
    """
    neg = -jnp.finfo(jnp.float32).max
    acc = None
    for h in range(heads):                         # static unroll, heads small
        qh = _mm(xn, wq_ref[h])                    # (N, dh)
        kh = _mm(cn, wk_ref[h])                    # (M, dh)
        vh = _mm(cn, wv_ref[h])                    # (M, dh)
        sim = jax.lax.dot_general(                 # (N, M) = q @ k.T
            qh.astype(jnp.bfloat16), kh.astype(jnp.bfloat16),
            (((1,), (1,)), ((), ())), preferred_element_type=jnp.float32) * scale
        if mask is not None:                       # torch masked_fill(-fmax)
            sim = jnp.where(mask > 0.5, sim, neg)
        mx = jnp.max(sim, axis=-1, keepdims=True)
        p = jnp.exp(sim - mx)
        attn = p * pl.reciprocal(jnp.sum(p, axis=-1, keepdims=True), approx=True)
        oh = _mm(attn, vh)                         # (N, dh)
        contrib = _mm(oh, wo_ref[h])               # (N, D_out)
        acc = contrib if acc is None else acc + contrib
    return acc


def _geglu_ff(xn, w1a, b1a, w1g, b1g, w2, b2):
    """PreNormed input -> w1 (pre-split value/gate halves) -> GEGLU -> w2."""
    a = _mm(xn, w1a) + b1a
    g = _mm(xn, w1g) + b1g
    return _mm(a * _gelu_tanh(g), w2) + b2


# ----------------------------- Pallas kernels -----------------------------

def _input_proj_kernel(emb_ref, vis_ref, lng_ref, lnb_ref, tw_ref, tb_ref,
                       vw_ref, vb_ref, o_ref, *, lt, lv, eps):
    # Fused: BERT-embedding LayerNorm -> text proj ; video proj ; concat + pad.
    t = _ln(emb_ref[...], lng_ref[...], lnb_ref[...], eps)
    tproj = _mm(t, tw_ref[...]) + tb_ref[...]              # (lt, dim)
    vproj = _mm(vis_ref[...], vw_ref[...]) + vb_ref[...]   # (lv, dim)
    mp = o_ref.shape[0]
    if mp > lt + lv:                                       # static condition
        o_ref[...] = jnp.zeros(o_ref.shape, jnp.float32)   # zero the pad rows
    o_ref[pl.ds(0, lt), :] = tproj
    o_ref[pl.ds(lt, lv), :] = vproj


def _cross_block_kernel(x_ref, ctx_ref, mask_ref,
                        a_lng_ref, a_lnb_ref, c_lng_ref, c_lnb_ref,
                        wq_ref, wk_ref, wv_ref, wo_ref, bo_ref,
                        f_lng_ref, f_lnb_ref,
                        w1a_ref, b1a_ref, w1g_ref, b1g_ref, w2_ref, b2_ref,
                        o_ref, *, heads, scale, eps):
    # Fused: PreNorm(latents) + PreNorm(context) -> cross-MHA -> +res
    #        -> PreNorm -> GEGLU FF -> +res.
    x = x_ref[...]                                              # (N, Dl)
    xn = _ln(x, a_lng_ref[...], a_lnb_ref[...], eps)
    cn = _ln(ctx_ref[...], c_lng_ref[...], c_lnb_ref[...], eps)
    x1 = _mha(xn, cn, mask_ref[...], wq_ref, wk_ref, wv_ref, wo_ref,
              scale, heads) + bo_ref[...] + x
    xn2 = _ln(x1, f_lng_ref[...], f_lnb_ref[...], eps)
    o_ref[...] = _geglu_ff(xn2, w1a_ref[...], b1a_ref[...], w1g_ref[...],
                           b1g_ref[...], w2_ref[...], b2_ref[...]) + x1


def _latent_block_kernel(x_ref,
                         a_lng_ref, a_lnb_ref,
                         wq_ref, wk_ref, wv_ref, wo_ref, bo_ref,
                         f_lng_ref, f_lnb_ref,
                         w1a_ref, b1a_ref, w1g_ref, b1g_ref, w2_ref, b2_ref,
                         o_ref, *, heads, scale, eps):
    # Fused: PreNorm -> self-MHA -> +res -> PreNorm -> GEGLU FF -> +res.
    x = x_ref[...]
    xn = _ln(x, a_lng_ref[...], a_lnb_ref[...], eps)
    x1 = _mha(xn, xn, None, wq_ref, wk_ref, wv_ref, wo_ref, scale, heads) \
        + bo_ref[...] + x
    xn2 = _ln(x1, f_lng_ref[...], f_lnb_ref[...], eps)
    o_ref[...] = _geglu_ff(xn2, w1a_ref[...], b1a_ref[...], w1g_ref[...],
                           b1g_ref[...], w2_ref[...], b2_ref[...]) + x1


def _pool_classify_kernel(x_ref, w_ref, b_ref, o_ref):
    pooled = jnp.mean(x_ref[...], axis=1)                  # latents.mean(dim=1)
    o_ref[...] = _mm(pooled, w_ref[...]) + b_ref[...]


# ----------------------------- Pallas wrappers -----------------------------

def _wspec(shape):
    """Whole-array (grid-invariant) BlockSpec for weights / biases."""
    zero = (0,) * len(shape)
    return pl.BlockSpec(shape, lambda i: zero)


def _split_heads(p, d_ctx, dl, heads, dim_head):
    """Stack per-head weights on the leading axis (cheap, done in XLA)."""
    inner = heads * dim_head
    wq = p['wq'].reshape(dl, heads, dim_head).transpose(1, 0, 2)
    wk = p['wkv'][:, :inner].reshape(d_ctx, heads, dim_head).transpose(1, 0, 2)
    wv = p['wkv'][:, inner:].reshape(d_ctx, heads, dim_head).transpose(1, 0, 2)
    wo = p['wo'].reshape(heads, dim_head, dl)
    return wq, wk, wv, wo


def _split_ff(pf):
    hidden = pf['w1'].shape[1] // 2
    w1a, w1g = pf['w1'][:, :hidden], pf['w1'][:, hidden:]
    b1a = pf['b1'][:hidden].reshape(1, hidden)
    b1g = pf['b1'][hidden:].reshape(1, hidden)
    return hidden, w1a, b1a, w1g, b1g


def pallas_input_proj(emb, vis, text_mask, visual_mask, params):
    b, lt, dt = emb.shape
    _, lv, dv = vis.shape
    d = params['text_linear']['w'].shape[1]
    m = lt + lv
    mp = ((m + 7) // 8) * 8                      # pad context to sublane multiple
    be = params['bert']
    kernel = functools.partial(_input_proj_kernel, lt=lt, lv=lv, eps=1e-12)
    inputs = pl.pallas_call(
        kernel,
        out_shape=jax.ShapeDtypeStruct((b, mp, d), jnp.float32),
        grid=(b,),
        in_specs=[
            pl.BlockSpec((None, lt, dt), lambda i: (i, 0, 0)),
            pl.BlockSpec((None, lv, dv), lambda i: (i, 0, 0)),
            _wspec((1, dt)), _wspec((1, dt)),
            _wspec((dt, d)), _wspec((1, d)),
            _wspec((dv, d)), _wspec((1, d)),
        ],
        out_specs=pl.BlockSpec((None, mp, d), lambda i: (i, 0, 0)),
        compiler_params=pltpu.CompilerParams(dimension_semantics=("parallel",)),
    )(emb, vis,
      be['ln_g'].reshape(1, dt), be['ln_b'].reshape(1, dt),
      params['text_linear']['w'], params['text_linear']['b'].reshape(1, d),
      params['video_linear']['w'], params['video_linear']['b'].reshape(1, d))
    mask = jnp.concatenate([text_mask, visual_mask], axis=1).astype(jnp.float32)
    mask = jnp.pad(mask, ((0, 0), (0, mp - m)))  # padded positions masked out
    return inputs, mask


def pallas_cross_block(x, context, mask, pa, pf, heads, dim_head):
    b, n, dl = x.shape
    _, m, d = context.shape
    mp = ((m + 7) // 8) * 8
    if mp != m:                                  # pad K/V length; mask=0 on pad
        context = jnp.pad(context, ((0, 0), (0, mp - m), (0, 0)))
        mask = jnp.pad(mask, ((0, 0), (0, mp - m)))
    mask3 = mask.astype(jnp.float32).reshape(b, 1, mp)
    wq, wk, wv, wo = _split_heads(pa, d, dl, heads, dim_head)
    hidden, w1a, b1a, w1g, b1g = _split_ff(pf)
    kernel = functools.partial(_cross_block_kernel, heads=heads,
                               scale=dim_head ** -0.5, eps=1e-5)
    return pl.pallas_call(
        kernel,
        out_shape=jax.ShapeDtypeStruct((b, n, dl), jnp.float32),
        grid=(b,),
        in_specs=[
            pl.BlockSpec((None, n, dl), lambda i: (i, 0, 0)),
            pl.BlockSpec((None, mp, d), lambda i: (i, 0, 0)),
            pl.BlockSpec((None, 1, mp), lambda i: (i, 0, 0)),
            _wspec((1, dl)), _wspec((1, dl)),
            _wspec((1, d)), _wspec((1, d)),
            _wspec((heads, dl, dim_head)),
            _wspec((heads, d, dim_head)),
            _wspec((heads, d, dim_head)),
            _wspec((heads, dim_head, dl)),
            _wspec((1, dl)),
            _wspec((1, dl)), _wspec((1, dl)),
            _wspec((dl, hidden)), _wspec((1, hidden)),
            _wspec((dl, hidden)), _wspec((1, hidden)),
            _wspec((hidden, dl)), _wspec((1, dl)),
        ],
        out_specs=pl.BlockSpec((None, n, dl), lambda i: (i, 0, 0)),
        compiler_params=pltpu.CompilerParams(dimension_semantics=("parallel",)),
    )(x, context, mask3,
      pa['ln_g'].reshape(1, dl), pa['ln_b'].reshape(1, dl),
      pa['ln_ctx_g'].reshape(1, d), pa['ln_ctx_b'].reshape(1, d),
      wq, wk, wv, wo, pa['bo'].reshape(1, dl),
      pf['ln_g'].reshape(1, dl), pf['ln_b'].reshape(1, dl),
      w1a, b1a, w1g, b1g, pf['w2'], pf['b2'].reshape(1, dl))


def pallas_latent_block(x, pa, pf, heads, dim_head):
    b, n, dl = x.shape
    wq, wk, wv, wo = _split_heads(pa, dl, dl, heads, dim_head)
    hidden, w1a, b1a, w1g, b1g = _split_ff(pf)
    kernel = functools.partial(_latent_block_kernel, heads=heads,
                               scale=dim_head ** -0.5, eps=1e-5)
    return pl.pallas_call(
        kernel,
        out_shape=jax.ShapeDtypeStruct((b, n, dl), jnp.float32),
        grid=(b,),
        in_specs=[
            pl.BlockSpec((None, n, dl), lambda i: (i, 0, 0)),
            _wspec((1, dl)), _wspec((1, dl)),
            _wspec((heads, dl, dim_head)),
            _wspec((heads, dl, dim_head)),
            _wspec((heads, dl, dim_head)),
            _wspec((heads, dim_head, dl)),
            _wspec((1, dl)),
            _wspec((1, dl)), _wspec((1, dl)),
            _wspec((dl, hidden)), _wspec((1, hidden)),
            _wspec((dl, hidden)), _wspec((1, hidden)),
            _wspec((hidden, dl)), _wspec((1, dl)),
        ],
        out_specs=pl.BlockSpec((None, n, dl), lambda i: (i, 0, 0)),
        compiler_params=pltpu.CompilerParams(dimension_semantics=("parallel",)),
    )(x,
      pa['ln_g'].reshape(1, dl), pa['ln_b'].reshape(1, dl),
      wq, wk, wv, wo, pa['bo'].reshape(1, dl),
      pf['ln_g'].reshape(1, dl), pf['ln_b'].reshape(1, dl),
      w1a, b1a, w1g, b1g, pf['w2'], pf['b2'].reshape(1, dl))


def pallas_pool_classify(x, w, b):
    bsz, n, d = x.shape
    c = w.shape[1]
    return pl.pallas_call(
        _pool_classify_kernel,
        out_shape=jax.ShapeDtypeStruct((bsz, c), jnp.float32),
        grid=(1,),
        in_specs=[
            pl.BlockSpec((bsz, n, d), lambda i: (0, 0, 0)),
            _wspec((d, c)), _wspec((1, c)),
        ],
        out_specs=pl.BlockSpec((bsz, c), lambda i: (0, 0)),
    )(x, w, b.reshape(1, c))


# ------------------------- pure-JAX reference prims -------------------------

_HI = jax.lax.Precision.HIGHEST


def ref_layernorm(x, g, b, eps=1e-5):
    mu = x.mean(-1, keepdims=True)
    var = ((x - mu) ** 2).mean(-1, keepdims=True)
    return (x - mu) / jnp.sqrt(var + eps) * g + b


def ref_linear(x, w, b=None):
    y = jnp.einsum('...i,io->...o', x, w, precision=_HI)
    return y if b is None else y + b


def ref_input_proj(emb, vis, text_mask, visual_mask, params):
    be = params['bert']
    t = ref_layernorm(emb, be['ln_g'], be['ln_b'], eps=1e-12)
    txt = ref_linear(t, params['text_linear']['w'], params['text_linear']['b'])
    v = ref_linear(vis, params['video_linear']['w'], params['video_linear']['b'])
    inputs = jnp.concatenate([txt, v], axis=1)
    mask = jnp.concatenate([text_mask, visual_mask], axis=1).astype(jnp.float32)
    return inputs, mask


def _ref_attn_core(x, xn, cn, mask, p, heads, dim_head):
    q = ref_linear(xn, p['wq'])
    kv = ref_linear(cn, p['wkv'])
    inner = heads * dim_head
    k, v = kv[..., :inner], kv[..., inner:]
    b, n, _ = q.shape
    m = k.shape[1]
    qh = q.reshape(b, n, heads, dim_head).transpose(0, 2, 1, 3)
    kh = k.reshape(b, m, heads, dim_head).transpose(0, 2, 1, 3)
    vh = v.reshape(b, m, heads, dim_head).transpose(0, 2, 1, 3)
    sim = jnp.einsum('bhnd,bhmd->bhnm', qh, kh, precision=_HI) * dim_head ** -0.5
    if mask is not None:
        sim = jnp.where(mask[:, None, None, :] > 0.5, sim,
                        -jnp.finfo(jnp.float32).max)
    attn = jax.nn.softmax(sim, axis=-1)
    o = jnp.einsum('bhnm,bhmd->bhnd', attn, vh, precision=_HI)
    o = o.transpose(0, 2, 1, 3).reshape(b, n, inner)
    return ref_linear(o, p['wo'], p['bo']) + x


def ref_ff_block(x, p):
    xn = ref_layernorm(x, p['ln_g'], p['ln_b'])
    h = ref_linear(xn, p['w1'], p['b1'])
    half = h.shape[-1] // 2
    a, g = h[..., :half], h[..., half:]
    hg = a * 0.5 * g * (1.0 + jax.scipy.special.erf(g / jnp.sqrt(2.0)))
    return ref_linear(hg, p['w2'], p['b2']) + x


def ref_cross_block(x, ctx, mask, pa, pf, heads, dim_head):
    xn = ref_layernorm(x, pa['ln_g'], pa['ln_b'])
    cn = ref_layernorm(ctx, pa['ln_ctx_g'], pa['ln_ctx_b'])
    x = _ref_attn_core(x, xn, cn, mask, pa, heads, dim_head)
    return ref_ff_block(x, pf)


def ref_latent_block(x, pa, pf, heads, dim_head):
    xn = ref_layernorm(x, pa['ln_g'], pa['ln_b'])
    x = _ref_attn_core(x, xn, xn, None, pa, heads, dim_head)
    return ref_ff_block(x, pf)


def ref_pool_classify(x, w, b):
    return jnp.einsum('bd,dc->bc', x.mean(axis=1), w, precision=_HI) + b


# ------------------------------ model forward ------------------------------

def forward(params, input_ids, visual_inputs, text_mask, visual_mask, *, cfg, prims):
    be = params['bert']
    lt = input_ids.shape[1]
    # TODO(synk): frozen pretrained BertModel replaced by a deterministic
    # frozen token+position embedding + LayerNorm text encoder (bert_output[0]).
    emb = be['tok_emb'][input_ids] + be['pos_emb'][None, :lt, :]

    inputs, mask = prims['input_proj'](emb, visual_inputs, text_mask,
                                       visual_mask, params)

    bsz = inputs.shape[0]
    x = jnp.broadcast_to(params['latents'][None],
                         (bsz, cfg['num_latents'], cfg['latent_dim']))

    # cross attention + cross FF (one fused kernel)
    x = prims['cross_block'](x, inputs, mask, params['cross_attn'],
                             params['cross_ff'],
                             cfg['cross_heads'], cfg['cross_dim_head'])

    # latent self-attention stack (one fused kernel per layer)
    for lp in params['layers']:
        x = prims['latent_block'](x, lp['attn'], lp['ff'],
                                  cfg['latent_heads'], cfg['latent_dim_head'])

    # use_queries=False path: mean over latents + classifier
    return prims['pool_classify'](x, params['classifier']['w'],
                                  params['classifier']['b'])


# ----------------------------- parameter init -----------------------------

def init_params(key, cfg):
    ks = iter(jax.random.split(key, 128))

    def nrm(*shape):
        return 0.02 * jax.random.normal(next(ks), shape, jnp.float32)

    dl, d, dt, dv = cfg['latent_dim'], cfg['dim'], cfg['text_dim'], cfg['video_dim']

    def ff_params(dim):
        hidden = dim * 4
        return {'ln_g': jnp.ones((dim,), jnp.float32),
                'ln_b': jnp.zeros((dim,), jnp.float32),
                'w1': nrm(dim, hidden * 2), 'b1': jnp.zeros((hidden * 2,), jnp.float32),
                'w2': nrm(hidden, dim), 'b2': jnp.zeros((dim,), jnp.float32)}

    params = {
        'bert': {'tok_emb': nrm(cfg['vocab_size'], dt),
                 'pos_emb': nrm(cfg['max_text_len'], dt),
                 'ln_g': jnp.ones((dt,), jnp.float32),
                 'ln_b': jnp.zeros((dt,), jnp.float32)},
        'text_linear': {'w': nrm(dt, d), 'b': jnp.zeros((d,), jnp.float32)},
        'video_linear': {'w': nrm(dv, d), 'b': jnp.zeros((d,), jnp.float32)},
        'latents': jax.random.normal(next(ks), (cfg['num_latents'], dl), jnp.float32),
    }
    ci = cfg['cross_heads'] * cfg['cross_dim_head']
    params['cross_attn'] = {
        'ln_g': jnp.ones((dl,), jnp.float32), 'ln_b': jnp.zeros((dl,), jnp.float32),
        'ln_ctx_g': jnp.ones((d,), jnp.float32), 'ln_ctx_b': jnp.zeros((d,), jnp.float32),
        'wq': nrm(dl, ci), 'wkv': nrm(d, 2 * ci),
        'wo': nrm(ci, dl), 'bo': jnp.zeros((dl,), jnp.float32),
    }
    params['cross_ff'] = ff_params(dl)
    li = cfg['latent_heads'] * cfg['latent_dim_head']
    params['layers'] = [
        {'attn': {'ln_g': jnp.ones((dl,), jnp.float32), 'ln_b': jnp.zeros((dl,), jnp.float32),
                  'wq': nrm(dl, li), 'wkv': nrm(dl, 2 * li),
                  'wo': nrm(li, dl), 'bo': jnp.zeros((dl,), jnp.float32)},
         'ff': ff_params(dl)}
        for _ in range(cfg['depth'])              # weight_tie_layers=False
    ]
    params['classifier'] = {'w': nrm(dl, cfg['num_classes']),
                            'b': jnp.zeros((cfg['num_classes'],), jnp.float32)}
    return params


# ---------------------------------- main ----------------------------------

if __name__ == "__main__":
    cfg = dict(text_dim=32, video_dim=48, dim=64, queries_dim=64, num_classes=5,
               depth=2, num_latents=16, cross_heads=1, latent_heads=4,
               cross_dim_head=16, latent_dim_head=16, latent_dim=64,
               weight_tie_layers=False, seq_dropout_prob=0.0, use_queries=False,
               vocab_size=50, max_text_len=8)

    key = jax.random.PRNGKey(0)
    kp, kid, kvis = jax.random.split(key, 3)
    params = init_params(kp, cfg)

    B, Lt, Lv = 2, 8, 6
    input_ids = jax.random.randint(kid, (B, Lt), 0, cfg['vocab_size'])
    visual_inputs = jax.random.normal(kvis, (B, Lv, cfg['video_dim']), jnp.float32)
    text_mask = jnp.array([[1, 1, 1, 1, 1, 1, 1, 0],
                           [1, 1, 1, 1, 1, 0, 0, 0]], jnp.int32)
    visual_mask = jnp.array([[1, 1, 1, 1, 1, 1],
                             [1, 1, 1, 1, 0, 0]], jnp.int32)

    pallas_prims = dict(input_proj=pallas_input_proj,
                        cross_block=pallas_cross_block,
                        latent_block=pallas_latent_block,
                        pool_classify=pallas_pool_classify)
    ref_prims = dict(input_proj=ref_input_proj,
                     cross_block=ref_cross_block,
                     latent_block=ref_latent_block,
                     pool_classify=ref_pool_classify)

    fwd = jax.jit(functools.partial(forward, cfg=cfg, prims=pallas_prims))
    logits = fwd(params, input_ids, visual_inputs, text_mask, visual_mask)
    jax.block_until_ready(logits)

    ref_logits = forward(params, input_ids, visual_inputs, text_mask, visual_mask,
                         cfg=cfg, prims=ref_prims)
    assert logits.shape == (B, cfg['num_classes'])
    np.testing.assert_allclose(np.asarray(logits), np.asarray(ref_logits),
                               rtol=1e-2, atol=1e-2)
    print("KERNEL_OK")
</pallas_src>

<mosaic_0001>
module attributes {stable_mosaic.version = 11 : i64} {
  func.func @_input_proj_kernel(%arg0: i32, %arg1: memref<1x8x32xf32, #tpu.memory_space<vmem>>, %arg2: memref<1x6x48xf32, #tpu.memory_space<vmem>>, %arg3: memref<1x32xf32, #tpu.memory_space<vmem>>, %arg4: memref<1x32xf32, #tpu.memory_space<vmem>>, %arg5: memref<32x64xf32, #tpu.memory_space<vmem>>, %arg6: memref<1x64xf32, #tpu.memory_space<vmem>>, %arg7: memref<48x64xf32, #tpu.memory_space<vmem>>, %arg8: memref<1x64xf32, #tpu.memory_space<vmem>>, %arg9: memref<1x16x64xf32, #tpu.memory_space<vmem>>) attributes {dimension_semantics = [#tpu.dimension_semantics<parallel>], iteration_bounds = array<i64: 2>, scalar_prefetch = 0 : i64, scratch_operands = 0 : i64, tpu.core_type = #tpu.core_type<tc>, window_params = [{transform_indices = @transform_0, window_bounds = array<i64: 1, 8, 32>}, {transform_indices = @transform_1, window_bounds = array<i64: 1, 6, 48>}, {pipeline_mode = #tpu.pipeline_mode<synchronous>, transform_indices = @transform_2, window_bounds = array<i64: 1, 32>}, {pipeline_mode = #tpu.pipeline_mode<synchronous>, transform_indices = @transform_3, window_bounds = array<i64: 1, 32>}, {pipeline_mode = #tpu.pipeline_mode<synchronous>, transform_indices = @transform_4, window_bounds = array<i64: 32, 64>}, {pipeline_mode = #tpu.pipeline_mode<synchronous>, transform_indices = @transform_5, window_bounds = array<i64: 1, 64>}, {pipeline_mode = #tpu.pipeline_mode<synchronous>, transform_indices = @transform_6, window_bounds = array<i64: 48, 64>}, {pipeline_mode = #tpu.pipeline_mode<synchronous>, transform_indices = @transform_7, window_bounds = array<i64: 1, 64>}, {transform_indices = @transform_8, window_bounds = array<i64: 1, 16, 64>}]} {
    %c0 = arith.constant 0 : index
    %c0_0 = arith.constant 0 : index
    %c0_1 = arith.constant 0 : index
    %0 = vector.load %arg1[%c0, %c0_0, %c0_1] : memref<1x8x32xf32, #tpu.memory_space<vmem>>, vector<1x8x32xf32>
    %1 = vector.shape_cast %0 : vector<1x8x32xf32> to vector<8x32xf32>
    %c0_2 = arith.constant 0 : index
    %c0_3 = arith.constant 0 : index
    %2 = vector.load %arg3[%c0_2, %c0_3] : memref<1x32xf32, #tpu.memory_space<vmem>>, vector<1x32xf32>
    %c0_4 = arith.constant 0 : index
    %c0_5 = arith.constant 0 : index
    %3 = vector.load %arg4[%c0_4, %c0_5] : memref<1x32xf32, #tpu.memory_space<vmem>>, vector<1x32xf32>
    %cst = arith.constant dense<0.000000e+00> : vector<8xf32>
    %4 = vector.multi_reduction <add>, %1, %cst [1] : vector<8x32xf32> to vector<8xf32>
    %5 = vector.shape_cast %4 : vector<8xf32> to vector<8x1xf32>
    %cst_6 = arith.constant 3.200000e+01 : f32
    %6 = vector.broadcast %cst_6 : f32 to vector<8x1xf32>
    %7 = arith.divf %5, %6 : vector<8x1xf32>
    %8 = vector.broadcast %7 : vector<8x1xf32> to vector<8x32xf32>
    %9 = arith.subf %1, %8 : vector<8x32xf32>
    %10 = arith.mulf %9, %9 : vector<8x32xf32>
    %cst_7 = arith.constant dense<0.000000e+00> : vector<8xf32>
    %11 = vector.multi_reduction <add>, %10, %cst_7 [1] : vector<8x32xf32> to vector<8xf32>
    %12 = vector.shape_cast %11 : vector<8xf32> to vector<8x1xf32>
    %cst_8 = arith.constant 3.200000e+01 : f32
    %13 = vector.broadcast %cst_8 : f32 to vector<8x1xf32>
    %14 = arith.divf %12, %13 : vector<8x1xf32>
    %cst_9 = arith.constant 9.99999996E-13 : f32
    %15 = vector.broadcast %cst_9 : f32 to vector<8x1xf32>
    %16 = arith.addf %14, %15 : vector<8x1xf32>
    %17 = math.rsqrt %16 : vector<8x1xf32>
    %18 = vector.broadcast %17 : vector<8x1xf32> to vector<8x32xf32>
    %19 = arith.mulf %9, %18 : vector<8x32xf32>
    %20 = vector.broadcast %2 : vector<1x32xf32> to vector<8x32xf32>
    %21 = arith.mulf %19, %20 : vector<8x32xf32>
    %22 = vector.broadcast %3 : vector<1x32xf32> to vector<8x32xf32>
    %23 = arith.addf %21, %22 : vector<8x32xf32>
    %c0_10 = arith.constant 0 : index
    %c0_11 = arith.constant 0 : index
    %24 = vector.load %arg5[%c0_10, %c0_11] : memref<32x64xf32, #tpu.memory_space<vmem>>, vector<32x64xf32>
    %25 = arith.truncf %23 : vector<8x32xf32> to vector<8x32xbf16>
    %26 = arith.truncf %24 : vector<32x64xf32> to vector<32x64xbf16>
    %cst_12 = arith.constant dense<0.000000e+00> : vector<8x64xf32>
    %27 = tpu.matmul %25, %26, %cst_12 {dimension_numbers = #tpu.dot_dimension_numbers<[1], [0], [0], [1], [0, 0, 1, 1], [], []>} : vector<8x32xbf16>, vector<32x64xbf16>, vector<8x64xf32> -> vector<8x64xf32>
    %c0_13 = arith.constant 0 : index
    %c0_14 = arith.constant 0 : index
    %28 = vector.load %arg6[%c0_13, %c0_14] : memref<1x64xf32, #tpu.memory_space<vmem>>, vector<1x64xf32>
    %29 = vector.broadcast %28 : vector<1x64xf32> to vector<8x64xf32>
    %30 = arith.addf %27, %29 : vector<8x64xf32>
    %c0_15 = arith.constant 0 : index
    %c0_16 = arith.constant 0 : index
    %c0_17 = arith.constant 0 : index
    %31 = vector.load %arg2[%c0_15, %c0_16, %c0_17] : memref<1x6x48xf32, #tpu.memory_space<vmem>>, vector<1x6x48xf32>
    %32 = vector.shape_cast %31 : vector<1x6x48xf32> to vector<6x48xf32>
    %c0_18 = arith.constant 0 : index
    %c0_19 = arith.constant 0 : index
    %33 = vector.load %arg7[%c0_18, %c0_19] : memref<48x64xf32, #tpu.memory_space<vmem>>, vector<48x64xf32>
    %34 = arith.truncf %32 : vector<6x48xf32> to vector<6x48xbf16>
    %35 = arith.truncf %33 : vector<48x64xf32> to vector<48x64xbf16>
    %cst_20 = arith.constant dense<0.000000e+00> : vector<6x64xf32>
    %36 = tpu.matmul %34, %35, %cst_20 {dimension_numbers = #tpu.dot_dimension_numbers<[1], [0], [0], [1], [0, 0, 1, 1], [], []>} : vector<6x48xbf16>, vector<48x64xbf16>, vector<6x64xf32> -> vector<6x64xf32>
    %c0_21 = arith.constant 0 : index
    %c0_22 = arith.constant 0 : index
    %37 = vector.load %arg8[%c0_21, %c0_22] : memref<1x64xf32, #tpu.memory_space<vmem>>, vector<1x64xf32>
    %38 = vector.broadcast %37 : vector<1x64xf32> to vector<6x64xf32>
    %39 = arith.addf %36, %38 : vector<6x64xf32>
    %cst_23 = arith.constant 0.000000e+00 : f32
    %40 = vector.broadcast %cst_23 : f32 to vector<16x64xf32>
    %c0_24 = arith.constant 0 : index
    %c0_25 = arith.constant 0 : index
    %c0_26 = arith.constant 0 : index
    %41 = vector.load %arg9[%c0_24, %c0_25, %c0_26] : memref<1x16x64xf32, #tpu.memory_space<vmem>>, vector<1x16x64xf32>
    %42 = vector.shape_cast %41 : vector<1x16x64xf32> to vector<16x64xf32>
    %43 = vector.shape_cast %40 : vector<16x64xf32> to vector<1x16x64xf32>
    tpu.vector_store %arg9[%c0_24, %c0_25, %c0_26], %43 {strides = array<i32>} : memref<1x16x64xf32, #tpu.memory_space<vmem>>, vector<1x16x64xf32>,
    %c0_27 = arith.constant 0 : index
    %c0_28 = arith.constant 0 : index
    %c0_29 = arith.constant 0 : index
    %44 = vector.load %arg9[%c0_27, %c0_28, %c0_29] : memref<1x16x64xf32, #tpu.memory_space<vmem>>, vector<1x8x64xf32>
    %45 = vector.shape_cast %44 : vector<1x8x64xf32> to vector<8x64xf32>
    %46 = vector.shape_cast %30 : vector<8x64xf32> to vector<1x8x64xf32>
    tpu.vector_store %arg9[%c0_27, %c0_28, %c0_29], %46 {strides = array<i32>} : memref<1x16x64xf32, #tpu.memory_space<vmem>>, vector<1x8x64xf32>,
    %c0_30 = arith.constant 0 : index
    %c8 = arith.constant 8 : index
    %c0_31 = arith.constant 0 : index
    %47 = vector.load %arg9[%c0_30, %c8, %c0_31] : memref<1x16x64xf32, #tpu.memory_space<vmem>>, vector<1x6x64xf32>
    %48 = vector.shape_cast %47 : vector<1x6x64xf32> to vector<6x64xf32>
    %49 = vector.shape_cast %39 : vector<6x64xf32> to vector<1x6x64xf32>
    tpu.vector_store %arg9[%c0_30, %c8, %c0_31], %49 {strides = array<i32>} : memref<1x16x64xf32, #tpu.memory_space<vmem>>, vector<1x6x64xf32>,
    return
  }
  func.func @transform_0(%arg0: i32) -> (i32, i32, i32) {
    %c0_i32 = arith.constant 0 : i32
    %c0_i32_0 = arith.constant 0 : i32
    %c0_i32_1 = arith.constant 0 : i32
    return %arg0, %c0_i32, %c0_i32_0 : i32, i32, i32
  }
  func.func @transform_1(%arg0: i32) -> (i32, i32, i32) {
    %c0_i32 = arith.constant 0 : i32
    %c0_i32_0 = arith.constant 0 : i32
    %c0_i32_1 = arith.constant 0 : i32
    return %arg0, %c0_i32, %c0_i32_0 : i32, i32, i32
  }
  func.func @transform_2(%arg0: i32) -> (i32, i32) {
    %c0_i32 = arith.constant 0 : i32
    %c0_i32_0 = arith.constant 0 : i32
    %c0_i32_1 = arith.constant 0 : i32
    return %c0_i32, %c0_i32_0 : i32, i32
  }
  func.func @transform_3(%arg0: i32) -> (i32, i32) {
    %c0_i32 = arith.constant 0 : i32
    %c0_i32_0 = arith.constant 0 : i32
    %c0_i32_1 = arith.constant 0 : i32
    return %c0_i32, %c0_i32_0 : i32, i32
  }
  func.func @transform_4(%arg0: i32) -> (i32, i32) {
    %c0_i32 = arith.constant 0 : i32
    %c0_i32_0 = arith.constant 0 : i32
    %c0_i32_1 = arith.constant 0 : i32
    return %c0_i32, %c0_i32_0 : i32, i32
  }
  func.func @transform_5(%arg0: i32) -> (i32, i32) {
    %c0_i32 = arith.constant 0 : i32
    %c0_i32_0 = arith.constant 0 : i32
    %c0_i32_1 = arith.constant 0 : i32
    return %c0_i32, %c0_i32_0 : i32, i32
  }
  func.func @transform_6(%arg0: i32) -> (i32, i32) {
    %c0_i32 = arith.constant 0 : i32
    %c0_i32_0 = arith.constant 0 : i32
    %c0_i32_1 = arith.constant 0 : i32
    return %c0_i32, %c0_i32_0 : i32, i32
  }
  func.func @transform_7(%arg0: i32) -> (i32, i32) {
    %c0_i32 = arith.constant 0 : i32
    %c0_i32_0 = arith.constant 0 : i32
    %c0_i32_1 = arith.constant 0 : i32
    return %c0_i32, %c0_i32_0 : i32, i32
  }
  func.func @transform_8(%arg0: i32) -> (i32, i32, i32) {
    %c0_i32 = arith.constant 0 : i32
    %c0_i32_0 = arith.constant 0 : i32
    %c0_i32_1 = arith.constant 0 : i32
    return %arg0, %c0_i32, %c0_i32_0 : i32, i32, i32
  }
}

module attributes {stable_mosaic.version = 11 : i64} {
  func.func @_cross_block_kernel(%arg0: i32, %arg1: memref<1x16x64xf32, #tpu.memory_space<vmem>>, %arg2: memref<1x16x64xf32, #tpu.memory_space<vmem>>, %arg3: memref<1x1x16xf32, #tpu.memory_space<vmem>>, %arg4: memref<1x64xf32, #tpu.memory_space<vmem>>, %arg5: memref<1x64xf32, #tpu.memory_space<vmem>>, %arg6: memref<1x64xf32, #tpu.memory_space<vmem>>, %arg7: memref<1x64xf32, #tpu.memory_space<vmem>>, %arg8: memref<1x64x16xf32, #tpu.memory_space<vmem>>, %arg9: memref<1x64x16xf32, #tpu.memory_space<vmem>>, %arg10: memref<1x64x16xf32, #tpu.memory_space<vmem>>, %arg11: memref<1x16x64xf32, #tpu.memory_space<vmem>>, %arg12: memref<1x64xf32, #tpu.memory_space<vmem>>, %arg13: memref<1x64xf32, #tpu.memory_space<vmem>>, %arg14: memref<1x64xf32, #tpu.memory_space<vmem>>, %arg15: memref<64x256xf32, #tpu.memory_space<vmem>>, %arg16: memref<1x256xf32, #tpu.memory_space<vmem>>, %arg17: memref<64x256xf32, #tpu.memory_space<vmem>>, %arg18: memref<1x256xf32, #tpu.memory_space<vmem>>, %arg19: memref<256x64xf32, #tpu.memory_space<vmem>>, %arg20: memref<1x64xf32, #tpu.memory_space<vmem>>, %arg21: memref<1x16x64xf32, #tpu.memory_space<vmem>>) attributes {dimension_semantics = [#tpu.dimension_semantics<parallel>], iteration_bounds = array<i64: 2>, scalar_prefetch = 0 : i64, scratch_operands = 0 : i64, tpu.core_type = #tpu.core_type<tc>, window_params = [{transform_indices = @transform_0, window_bounds = array<i64: 1, 16, 64>}, {transform_indices = @transform_1, window_bounds = array<i64: 1, 16, 64>}, {transform_indices = @transform_2, window_bounds = array<i64: 1, 1, 16>}, {pipeline_mode = #tpu.pipeline_mode<synchronous>, transform_indices = @transform_3, window_bounds = array<i64: 1, 64>}, {pipeline_mode = #tpu.pipeline_mode<synchronous>, transform_indices = @transform_4, window_bounds = array<i64: 1, 64>}, {pipeline_mode = #tpu.pipeline_mode<synchronous>, transform_indices = @transform_5, window_bounds = array<i64: 1, 64>}, {pipeline_mode = #tpu.pipeline_mode<synchronous>, transform_indices = @transform_6, window_bounds = array<i64: 1, 64>}, {pipeline_mode = #tpu.pipeline_mode<synchronous>, transform_indices = @transform_7, window_bounds = array<i64: 1, 64, 16>}, {pipeline_mode = #tpu.pipeline_mode<synchronous>, transform_indices = @transform_8, window_bounds = array<i64: 1, 64, 16>}, {pipeline_mode = #tpu.pipeline_mode<synchronous>, transform_indices = @transform_9, window_bounds = array<i64: 1, 64, 16>}, {pipeline_mode = #tpu.pipeline_mode<synchronous>, transform_indices = @transform_10, window_bounds = array<i64: 1, 16, 64>}, {pipeline_mode = #tpu.pipeline_mode<synchronous>, transform_indices = @transform_11, window_bounds = array<i64: 1, 64>}, {pipeline_mode = #tpu.pipeline_mode<synchronous>, transform_indices = @transform_12, window_bounds = array<i64: 1, 64>}, {pipeline_mode = #tpu.pipeline_mode<synchronous>, transform_indices = @transform_13, window_bounds = array<i64: 1, 64>}, {pipeline_mode = #tpu.pipeline_mode<synchronous>, transform_indices = @transform_14, window_bounds = array<i64: 64, 256>}, {pipeline_mode = #tpu.pipeline_mode<synchronous>, transform_indices = @transform_15, window_bounds = array<i64: 1, 256>}, {pipeline_mode = #tpu.pipeline_mode<synchronous>, transform_indices = @transform_16, window_bounds = array<i64: 64, 256>}, {pipeline_mode = #tpu.pipeline_mode<synchronous>, transform_indices = @transform_17, window_bounds = array<i64: 1, 256>}, {pipeline_mode = #tpu.pipeline_mode<synchronous>, transform_indices = @transform_18, window_bounds = array<i64: 256, 64>}, {pipeline_mode = #tpu.pipeline_mode<synchronous>, transform_indices = @transform_19, window_bounds = array<i64: 1, 64>}, {transform_indices = @transform_20, window_bounds = array<i64: 1, 16, 64>}]} {
    %c0 = arith.constant 0 : index
    %c0_0 = arith.constant 0 : index
    %c0_1 = arith.constant 0 : index
    %0 = vector.load %arg1[%c0, %c0_0, %c0_1] : memref<1x16x64xf32, #tpu.memory_space<vmem>>, vector<1x16x64xf32>
    %1 = vector.shape_cast %0 : vector<1x16x64xf32> to vector<16x64xf32>
    %c0_2 = arith.constant 0 : index
    %c0_3 = arith.constant 0 : index
    %2 = vector.load %arg4[%c0_2, %c0_3] : memref<1x64xf32, #tpu.memory_space<vmem>>, vector<1x64xf32>
    %c0_4 = arith.constant 0 : index
    %c0_5 = arith.constant 0 : index
    %3 = vector.load %arg5[%c0_4, %c0_5] : memref<1x64xf32, #tpu.memory_space<vmem>>, vector<1x64xf32>
    %cst = arith.constant dense<0.000000e+00> : vector<16xf32>
    %4 = vector.multi_reduction <add>, %1, %cst [1] : vector<16x64xf32> to vector<16xf32>
    %5 = vector.shape_cast %4 : vector<16xf32> to vector<16x1xf32>
    %cst_6 = arith.constant 6.400000e+01 : f32
    %6 = vector.broadcast %cst_6 : f32 to vector<16x1xf32>
    %7 = arith.divf %5, %6 : vector<16x1xf32>
    %8 = vector.broadcast %7 : vector<16x1xf32> to vector<16x64xf32>
    %9 = arith.subf %1, %8 : vector<16x64xf32>
    %10 = arith.mulf %9, %9 : vector<16x64xf32>
    %cst_7 = arith.constant dense<0.000000e+00> : vector<16xf32>
    %11 = vector.multi_reduction <add>, %10, %cst_7 [1] : vector<16x64xf32> to vector<16xf32>
    %12 = vector.shape_cast %11 : vector<16xf32> to vector<16x1xf32>
    %cst_8 = arith.constant 6.400000e+01 : f32
    %13 = vector.broadcast %cst_8 : f32 to vector<16x1xf32>
    %14 = arith.divf %12, %13 : vector<16x1xf32>
    %cst_9 = arith.constant 9.99999974E-6 : f32
    %15 = vector.broadcast %cst_9 : f32 to vector<16x1xf32>
    %16 = arith.addf %14, %15 : vector<16x1xf32>
    %17 = math.rsqrt %16 : vector<16x1xf32>
    %18 = vector.broadcast %17 : vector<16x1xf32> to vector<16x64xf32>
    %19 = arith.mulf %9, %18 : vector<16x64xf32>
    %20 = vector.broadcast %2 : vector<1x64xf32> to vector<16x64xf32>
    %21 = arith.mulf %19, %20 : vector<16x64xf32>
    %22 = vector.broadcast %3 : vector<1x64xf32> to vector<16x64xf32>
    %23 = arith.addf %21, %22 : vector<16x64xf32>
    %c0_10 = arith.constant 0 : index
    %c0_11 = arith.constant 0 : index
    %c0_12 = arith.constant 0 : index
    %24 = vector.load %arg2[%c0_10, %c0_11, %c0_12] : memref<1x16x64xf32, #tpu.memory_space<vmem>>, vector<1x16x64xf32>
    %25 = vector.shape_cast %24 : vector<1x16x64xf32> to vector<16x64xf32>
    %c0_13 = arith.constant 0 : index
    %c0_14 = arith.constant 0 : index
    %26 = vector.load %arg6[%c0_13, %c0_14] : memref<1x64xf32, #tpu.memory_space<vmem>>, vector<1x64xf32>
    %c0_15 = arith.constant 0 : index
    %c0_16 = arith.constant 0 : index
    %27 = vector.load %arg7[%c0_15, %c0_16] : memref<1x64xf32, #tpu.memory_space<vmem>>, vector<1x64xf32>
    %cst_17 = arith.constant dense<0.000000e+00> : vector<16xf32>
    %28 = vector.multi_reduction <add>, %25, %cst_17 [1] : vector<16x64xf32> to vector<16xf32>
    %29 = vector.shape_cast %28 : vector<16xf32> to vector<16x1xf32>
    %cst_18 = arith.constant 6.400000e+01 : f32
    %30 = vector.broadcast %cst_18 : f32 to vector<16x1xf32>
    %31 = arith.divf %29, %30 : vector<16x1xf32>
    %32 = vector.broadcast %31 : vector<16x1xf32> to vector<16x64xf32>
    %33 = arith.subf %25, %32 : vector<16x64xf32>
    %34 = arith.mulf %33, %33 : vector<16x64xf32>
    %cst_19 = arith.constant dense<0.000000e+00> : vector<16xf32>
    %35 = vector.multi_reduction <add>, %34, %cst_19 [1] : vector<16x64xf32> to vector<16xf32>
    %36 = vector.shape_cast %35 : vector<16xf32> to vector<16x1xf32>
    %cst_20 = arith.constant 6.400000e+01 : f32
    %37 = vector.broadcast %cst_20 : f32 to vector<16x1xf32>
    %38 = arith.divf %36, %37 : vector<16x1xf32>
    %cst_21 = arith.constant 9.99999974E-6 : f32
    %39 = vector.broadcast %cst_21 : f32 to vector<16x1xf32>
    %40 = arith.addf %38, %39 : vector<16x1xf32>
    %41 = math.rsqrt %40 : vector<16x1xf32>
    %42 = vector.broadcast %41 : vector<16x1xf32> to vector<16x64xf32>
    %43 = arith.mulf %33, %42 : vector<16x64xf32>
    %44 = vector.broadcast %26 : vector<1x64xf32> to vector<16x64xf32>
    %45 = arith.mulf %43, %44 : vector<16x64xf32>
    %46 = vector.broadcast %27 : vector<1x64xf32> to vector<16x64xf32>
    %47 = arith.addf %45, %46 : vector<16x64xf32>
    %c0_22 = arith.constant 0 : index
    %c0_23 = arith.constant 0 : index
    %c0_24 = arith.constant 0 : index
    %48 = vector.load %arg3[%c0_22, %c0_23, %c0_24] : memref<1x1x16xf32, #tpu.memory_space<vmem>>, vector<1x1x16xf32>
    %49 = vector.shape_cast %48 : vector<1x1x16xf32> to vector<1x16xf32>
    %c0_25 = arith.constant 0 : index
    %c0_26 = arith.constant 0 : index
    %c0_27 = arith.constant 0 : index
    %50 = vector.load %arg8[%c0_25, %c0_26, %c0_27] : memref<1x64x16xf32, #tpu.memory_space<vmem>>, vector<1x64x16xf32>
    %51 = vector.shape_cast %50 : vector<1x64x16xf32> to vector<64x16xf32>
    %52 = arith.truncf %23 : vector<16x64xf32> to vector<16x64xbf16>
    %53 = arith.truncf %51 : vector<64x16xf32> to vector<64x16xbf16>
    %cst_28 = arith.constant dense<0.000000e+00> : vector<16x16xf32>
    %54 = tpu.matmul %52, %53, %cst_28 {dimension_numbers = #tpu.dot_dimension_numbers<[1], [0], [0], [1], [0, 0, 1, 1], [], []>} : vector<16x64xbf16>, vector<64x16xbf16>, vector<16x16xf32> -> vector<16x16xf32>
    %c0_29 = arith.constant 0 : index
    %c0_30 = arith.constant 0 : index
    %c0_31 = arith.constant 0 : index
    %55 = vector.load %arg9[%c0_29, %c0_30, %c0_31] : memref<1x64x16xf32, #tpu.memory_space<vmem>>, vector<1x64x16xf32>
    %56 = vector.shape_cast %55 : vector<1x64x16xf32> to vector<64x16xf32>
    %57 = arith.truncf %47 : vector<16x64xf32> to vector<16x64xbf16>
    %58 = arith.truncf %56 : vector<64x16xf32> to vector<64x16xbf16>
    %cst_32 = arith.constant dense<0.000000e+00> : vector<16x16xf32>
    %59 = tpu.matmul %57, %58, %cst_32 {dimension_numbers = #tpu.dot_dimension_numbers<[1], [0], [0], [1], [0, 0, 1, 1], [], []>} : vector<16x64xbf16>, vector<64x16xbf16>, vector<16x16xf32> -> vector<16x16xf32>
    %c0_33 = arith.constant 0 : index
    %c0_34 = arith.constant 0 : index
    %c0_35 = arith.constant 0 : index
    %60 = vector.load %arg10[%c0_33, %c0_34, %c0_35] : memref<1x64x16xf32, #tpu.memory_space<vmem>>, vector<1x64x16xf32>
    %61 = vector.shape_cast %60 : vector<1x64x16xf32> to vector<64x16xf32>
    %62 = arith.truncf %47 : vector<16x64xf32> to vector<16x64xbf16>
    %63 = arith.truncf %61 : vector<64x16xf32> to vector<64x16xbf16>
    %cst_36 = arith.constant dense<0.000000e+00> : vector<16x16xf32>
    %64 = tpu.matmul %62, %63, %cst_36 {dimension_numbers = #tpu.dot_dimension_numbers<[1], [0], [0], [1], [0, 0, 1, 1], [], []>} : vector<16x64xbf16>, vector<64x16xbf16>, vector<16x16xf32> -> vector<16x16xf32>
    %65 = arith.truncf %54 : vector<16x16xf32> to vector<16x16xbf16>
    %66 = arith.truncf %59 : vector<16x16xf32> to vector<16x16xbf16>
    %cst_37 = arith.constant dense<0.000000e+00> : vector<16x16xf32>
    %67 = tpu.matmul %65, %66, %cst_37 {dimension_numbers = #tpu.dot_dimension_numbers<[1], [1], [0], [0], [0, 0, 1, 0], [], []>} : vector<16x16xbf16>, vector<16x16xbf16>, vector<16x16xf32> -> vector<16x16xf32>
    %cst_38 = arith.constant 2.500000e-01 : f32
    %68 = vector.broadcast %cst_38 : f32 to vector<16x16xf32>
    %69 = arith.mulf %67, %68 : vector<16x16xf32>
    %cst_39 = arith.constant 5.000000e-01 : f32
    %70 = vector.broadcast %cst_39 : f32 to vector<1x16xf32>
    %71 = arith.cmpf ogt, %49, %70 : vector<1x16xf32>
    %cst_40 = arith.constant -3.40282347E+38 : f32
    %72 = vector.shape_cast %71 : vector<1x16xi1> to vector<1x16xi1>
    %73 = vector.broadcast %72 : vector<1x16xi1> to vector<16x16xi1>
    %74 = vector.broadcast %cst_40 : f32 to vector<16x16xf32>
    %75 = arith.select %73, %69, %74 : vector<16x16xi1>, vector<16x16xf32>
    %cst_41 = arith.constant dense<0xFF800000> : vector<16xf32>
    %76 = vector.multi_reduction <maximumf>, %75, %cst_41 [1] : vector<16x16xf32> to vector<16xf32>
    %77 = vector.shape_cast %76 : vector<16xf32> to vector<16x1xf32>
    %78 = vector.broadcast %77 : vector<16x1xf32> to vector<16x16xf32>
    %79 = arith.subf %75, %78 : vector<16x16xf32>
    %80 = math.exp %79 : vector<16x16xf32>
    %cst_42 = arith.constant dense<0.000000e+00> : vector<16xf32>
    %81 = vector.multi_reduction <add>, %80, %cst_42 [1] : vector<16x16xf32> to vector<16xf32>
    %82 = vector.shape_cast %81 : vector<16xf32> to vector<16x1xf32>
    %83 = tpu.reciprocal %82 {approx = true} : vector<16x1xf32> -> vector<16x1xf32>
    %84 = vector.broadcast %83 : vector<16x1xf32> to vector<16x16xf32>
    %85 = arith.mulf %80, %84 : vector<16x16xf32>
    %86 = arith.truncf %85 : vector<16x16xf32> to vector<16x16xbf16>
    %87 = arith.truncf %64 : vector<16x16xf32> to vector<16x16xbf16>
    %cst_43 = arith.constant dense<0.000000e+00> : vector<16x16xf32>
    %88 = tpu.matmul %86, %87, %cst_43 {dimension_numbers = #tpu.dot_dimension_numbers<[1], [0], [0], [1], [0, 0, 1, 1], [], []>} : vector<16x16xbf16>, vector<16x16xbf16>, vector<16x16xf32> -> vector<16x16xf32>
    %c0_44 = arith.constant 0 : index
    %c0_45 = arith.constant 0 : index
    %c0_46 = arith.constant 0 : index
    %89 = vector.load %arg11[%c0_44, %c0_45, %c0_46] : memref<1x16x64xf32, #tpu.memory_space<vmem>>, vector<1x16x64xf32>
    %90 = vector.shape_cast %89 : vector<1x16x64xf32> to vector<16x64xf32>
    %91 = arith.truncf %88 : vector<16x16xf32> to vector<16x16xbf16>
    %92 = arith.truncf %90 : vector<16x64xf32> to vector<16x64xbf16>
    %cst_47 = arith.constant dense<0.000000e+00> : vector<16x64xf32>
    %93 = tpu.matmul %91, %92, %cst_47 {dimension_numbers = #tpu.dot_dimension_numbers<[1], [0], [0], [1], [0, 0, 1, 1], [], []>} : vector<16x16xbf16>, vector<16x64xbf16>, vector<16x64xf32> -> vector<16x64xf32>
    %c0_48 = arith.constant 0 : index
    %c0_49 = arith.constant 0 : index
    %94 = vector.load %arg12[%c0_48, %c0_49] : memref<1x64xf32, #tpu.memory_space<vmem>>, vector<1x64xf32>
    %95 = vector.broadcast %94 : vector<1x64xf32> to vector<16x64xf32>
    %96 = arith.addf %93, %95 : vector<16x64xf32>
    %97 = arith.addf %96, %1 : vector<16x64xf32>
    %c0_50 = arith.constant 0 : index
    %c0_51 = arith.constant 0 : index
    %98 = vector.load %arg13[%c0_50, %c0_51] : memref<1x64xf32, #tpu.memory_space<vmem>>, vector<1x64xf32>
    %c0_52 = arith.constant 0 : index
    %c0_53 = arith.constant 0 : index
    %99 = vector.load %arg14[%c0_52, %c0_53] : memref<1x64xf32, #tpu.memory_space<vmem>>, vector<1x64xf32>
    %cst_54 = arith.constant dense<0.000000e+00> : vector<16xf32>
    %100 = vector.multi_reduction <add>, %97, %cst_54 [1] : vector<16x64xf32> to vector<16xf32>
    %101 = vector.shape_cast %100 : vector<16xf32> to vector<16x1xf32>
    %cst_55 = arith.constant 6.400000e+01 : f32
    %102 = vector.broadcast %cst_55 : f32 to vector<16x1xf32>
    %103 = arith.divf %101, %102 : vector<16x1xf32>
    %104 = vector.broadcast %103 : vector<16x1xf32> to vector<16x64xf32>
    %105 = arith.subf %97, %104 : vector<16x64xf32>
    %106 = arith.mulf %105, %105 : vector<16x64xf32>
    %cst_56 = arith.constant dense<0.000000e+00> : vector<16xf32>
    %107 = vector.multi_reduction <add>, %106, %cst_56 [1] : vector<16x64xf32> to vector<16xf32>
    %108 = vector.shape_cast %107 : vector<16xf32> to vector<16x1xf32>
    %cst_57 = arith.constant 6.400000e+01 : f32
    %109 = vector.broadcast %cst_57 : f32 to vector<16x1xf32>
    %110 = arith.divf %108, %109 : vector<16x1xf32>
    %cst_58 = arith.constant 9.99999974E-6 : f32
    %111 = vector.broadcast %cst_58 : f32 to vector<16x1xf32>
    %112 = arith.addf %110, %111 : vector<16x1xf32>
    %113 = math.rsqrt %112 : vector<16x1xf32>
    %114 = vector.broadcast %113 : vector<16x1xf32> to vector<16x64xf32>
    %115 = arith.mulf %105, %114 : vector<16x64xf32>
    %116 = vector.broadcast %98 : vector<1x64xf32> to vector<16x64xf32>
    %117 = arith.mulf %115, %116 : vector<16x64xf32>
    %118 = vector.broadcast %99 : vector<1x64xf32> to vector<16x64xf32>
    %119 = arith.addf %117, %118 : vector<16x64xf32>
    %c0_59 = arith.constant 0 : index
    %c0_60 = arith.constant 0 : index
    %120 = vector.load %arg15[%c0_59, %c0_60] : memref<64x256xf32, #tpu.memory_space<vmem>>, vector<64x256xf32>
    %c0_61 = arith.constant 0 : index
    %c0_62 = arith.constant 0 : index
    %121 = vector.load %arg16[%c0_61, %c0_62] : memref<1x256xf32, #tpu.memory_space<vmem>>, vector<1x256xf32>
    %c0_63 = arith.constant 0 : index
    %c0_64 = arith.constant 0 : index
    %122 = vector.load %arg17[%c0_63, %c0_64] : memref<64x256xf32, #tpu.memory_space<vmem>>, vector<64x256xf32>
    %c0_65 = arith.constant 0 : index
    %c0_66 = arith.constant 0 : index
    %123 = vector.load %arg18[%c0_65, %c0_66] : memref<1x256xf32, #tpu.memory_space<vmem>>, vector<1x256xf32>
    %c0_67 = arith.constant 0 : index
    %c0_68 = arith.constant 0 : index
    %124 = vector.load %arg19[%c0_67, %c0_68] : memref<256x64xf32, #tpu.memory_space<vmem>>, vector<256x64xf32>
    %c0_69 = arith.constant 0 : index
    %c0_70 = arith.constant 0 : index
    %125 = vector.load %arg20[%c0_69, %c0_70] : memref<1x64xf32, #tpu.memory_space<vmem>>, vector<1x64xf32>
    %126 = arith.truncf %119 : vector<16x64xf32> to vector<16x64xbf16>
    %127 = arith.truncf %120 : vector<64x256xf32> to vector<64x256xbf16>
    %cst_71 = arith.constant dense<0.000000e+00> : vector<16x256xf32>
    %128 = tpu.matmul %126, %127, %cst_71 {dimension_numbers = #tpu.dot_dimension_numbers<[1], [0], [0], [1], [0, 0, 1, 1], [], []>} : vector<16x64xbf16>, vector<64x256xbf16>, vector<16x256xf32> -> vector<16x256xf32>
    %129 = vector.broadcast %121 : vector<1x256xf32> to vector<16x256xf32>
    %130 = arith.addf %128, %129 : vector<16x256xf32>
    %131 = arith.truncf %119 : vector<16x64xf32> to vector<16x64xbf16>
    %132 = arith.truncf %122 : vector<64x256xf32> to vector<64x256xbf16>
    %cst_72 = arith.constant dense<0.000000e+00> : vector<16x256xf32>
    %133 = tpu.matmul %131, %132, %cst_72 {dimension_numbers = #tpu.dot_dimension_numbers<[1], [0], [0], [1], [0, 0, 1, 1], [], []>} : vector<16x64xbf16>, vector<64x256xbf16>, vector<16x256xf32> -> vector<16x256xf32>
    %134 = vector.broadcast %123 : vector<1x256xf32> to vector<16x256xf32>
    %135 = arith.addf %133, %134 : vector<16x256xf32>
    %cst_73 = arith.constant 5.000000e-01 : f32
    %136 = vector.broadcast %cst_73 : f32 to vector<16x256xf32>
    %137 = arith.mulf %136, %135 : vector<16x256xf32>
    %cst_74 = arith.constant 4.471500e-02 : f32
    %138 = vector.broadcast %cst_74 : f32 to vector<16x256xf32>
    %139 = arith.mulf %138, %135 : vector<16x256xf32>
    %140 = arith.mulf %139, %135 : vector<16x256xf32>
    %141 = arith.mulf %140, %135 : vector<16x256xf32>
    %142 = arith.addf %135, %141 : vector<16x256xf32>
    %cst_75 = arith.constant 0.797884583 : f32
    %143 = vector.broadcast %cst_75 : f32 to vector<16x256xf32>
    %144 = arith.mulf %143, %142 : vector<16x256xf32>
    %145 = math.tanh %144 : vector<16x256xf32>
    %cst_76 = arith.constant 1.000000e+00 : f32
    %146 = vector.broadcast %cst_76 : f32 to vector<16x256xf32>
    %147 = arith.addf %146, %145 : vector<16x256xf32>
    %148 = arith.mulf %137, %147 : vector<16x256xf32>
    %149 = arith.mulf %130, %148 : vector<16x256xf32>
    %150 = arith.truncf %149 : vector<16x256xf32> to vector<16x256xbf16>
    %151 = arith.truncf %124 : vector<256x64xf32> to vector<256x64xbf16>
    %cst_77 = arith.constant dense<0.000000e+00> : vector<16x64xf32>
    %152 = tpu.matmul %150, %151, %cst_77 {dimension_numbers = #tpu.dot_dimension_numbers<[1], [0], [0], [1], [0, 0, 1, 1], [], []>} : vector<16x256xbf16>, vector<256x64xbf16>, vector<16x64xf32> -> vector<16x64xf32>
    %153 = vector.broadcast %125 : vector<1x64xf32> to vector<16x64xf32>
    %154 = arith.addf %152, %153 : vector<16x64xf32>
    %155 = arith.addf %154, %97 : vector<16x64xf32>
    %c0_78 = arith.constant 0 : index
    %c0_79 = arith.constant 0 : index
    %c0_80 = arith.constant 0 : index
    %156 = vector.load %arg21[%c0_78, %c0_79, %c0_80] : memref<1x16x64xf32, #tpu.memory_space<vmem>>, vector<1x16x64xf32>
    %157 = vector.shape_cast %156 : vector<1x16x64xf32> to vector<16x64xf32>
    %158 = vector.shape_cast %155 : vector<16x64xf32> to vector<1x16x64xf32>
    tpu.vector_store %arg21[%c0_78, %c0_79, %c0_80], %158 {strides = array<i32>} : memref<1x16x64xf32, #tpu.memory_space<vmem>>, vector<1x16x64xf32>,
    return
  }
  func.func @transform_0(%arg0: i32) -> (i32, i32, i32) {
    %c0_i32 = arith.constant 0 : i32
    %c0_i32_0 = arith.constant 0 : i32
    %c0_i32_1 = arith.constant 0 : i32
    return %arg0, %c0_i32, %c0_i32_0 : i32, i32, i32
  }
  func.func @transform_1(%arg0: i32) -> (i32, i32, i32) {
    %c0_i32 = arith.constant 0 : i32
    %c0_i32_0 = arith.constant 0 : i32
    %c0_i32_1 = arith.constant 0 : i32
    return %arg0, %c0_i32, %c0_i32_0 : i32, i32, i32
  }
  func.func @transform_2(%arg0: i32) -> (i32, i32, i32) {
    %c0_i32 = arith.constant 0 : i32
    %c0_i32_0 = arith.constant 0 : i32
    %c0_i32_1 = arith.constant 0 : i32
    return %arg0, %c0_i32, %c0_i32_0 : i32, i32, i32
  }
  func.func @transform_3(%arg0: i32) -> (i32, i32) {
    %c0_i32 = arith.constant 0 : i32
    %c0_i32_0 = arith.constant 0 : i32
    %c0_i32_1 = arith.constant 0 : i32
    return %c0_i32, %c0_i32_0 : i32, i32
  }
  func.func @transform_4(%arg0: i32) -> (i32, i32) {
    %c0_i32 = arith.constant 0 : i32
    %c0_i32_0 = arith.constant 0 : i32
    %c0_i32_1 = arith.constant 0 : i32
    return %c0_i32, %c0_i32_0 : i32, i32
  }
  func.func @transform_5(%arg0: i32) -> (i32, i32) {
    %c0_i32 = arith.constant 0 : i32
    %c0_i32_0 = arith.constant 0 : i32
    %c0_i32_1 = arith.constant 0 : i32
    return %c0_i32, %c0_i32_0 : i32, i32
  }
  func.func @transform_6(%arg0: i32) -> (i32, i32) {
    %c0_i32 = arith.constant 0 : i32
    %c0_i32_0 = arith.constant 0 : i32
    %c0_i32_1 = arith.constant 0 : i32
    return %c0_i32, %c0_i32_0 : i32, i32
  }
  func.func @transform_7(%arg0: i32) -> (i32, i32, i32) {
    %c0_i32 = arith.constant 0 : i32
    %c0_i32_0 = arith.constant 0 : i32
    %c0_i32_1 = arith.constant 0 : i32
    %c0_i32_2 = arith.constant 0 : i32
    return %c0_i32, %c0_i32_0, %c0_i32_1 : i32, i32, i32
  }
  func.func @transform_8(%arg0: i32) -> (i32, i32, i32) {
    %c0_i32 = arith.constant 0 : i32
    %c0_i32_0 = arith.constant 0 : i32
    %c0_i32_1 = arith.constant 0 : i32
    %c0_i32_2 = arith.constant 0 : i32
    return %c0_i32, %c0_i32_0, %c0_i32_1 : i32, i32, i32
  }
  func.func @transform_9(%arg0: i32) -> (i32, i32, i32) {
    %c0_i32 = arith.constant 0 : i32
    %c0_i32_0 = arith.constant 0 : i32
    %c0_i32_1 = arith.constant 0 : i32
    %c0_i32_2 = arith.constant 0 : i32
    return %c0_i32, %c0_i32_0, %c0_i32_1 : i32, i32, i32
  }
  func.func @transform_10(%arg0: i32) -> (i32, i32, i32) {
    %c0_i32 = arith.constant 0 : i32
    %c0_i32_0 = arith.constant 0 : i32
    %c0_i32_1 = arith.constant 0 : i32
    %c0_i32_2 = arith.constant 0 : i32
    return %c0_i32, %c0_i32_0, %c0_i32_1 : i32, i32, i32
  }
  func.func @transform_11(%arg0: i32) -> (i32, i32) {
    %c0_i32 = arith.constant 0 : i32
    %c0_i32_0 = arith.constant 0 : i32
    %c0_i32_1 = arith.constant 0 : i32
    return %c0_i32, %c0_i32_0 : i32, i32
  }
  func.func @transform_12(%arg0: i32) -> (i32, i32) {
    %c0_i32 = arith.constant 0 : i32
    %c0_i32_0 = arith.constant 0 : i32
    %c0_i32_1 = arith.constant 0 : i32
    return %c0_i32, %c0_i32_0 : i32, i32
  }
  func.func @transform_13(%arg0: i32) -> (i32, i32) {
    %c0_i32 = arith.constant 0 : i32
    %c0_i32_0 = arith.constant 0 : i32
    %c0_i32_1 = arith.constant 0 : i32
    return %c0_i32, %c0_i32_0 : i32, i32
  }
  func.func @transform_14(%arg0: i32) -> (i32, i32) {
    %c0_i32 = arith.constant 0 : i32
    %c0_i32_0 = arith.constant 0 : i32
    %c0_i32_1 = arith.constant 0 : i32
    return %c0_i32, %c0_i32_0 : i32, i32
  }
  func.func @transform_15(%arg0: i32) -> (i32, i32) {
    %c0_i32 = arith.constant 0 : i32
    %c0_i32_0 = arith.constant 0 : i32
    %c0_i32_1 = arith.constant 0 : i32
    return %c0_i32, %c0_i32_0 : i32, i32
  }
  func.func @transform_16(%arg0: i32) -> (i32, i32) {
    %c0_i32 = arith.constant 0 : i32
    %c0_i32_0 = arith.constant 0 : i32
    %c0_i32_1 = arith.constant 0 : i32
    return %c0_i32, %c0_i32_0 : i32, i32
  }
  func.func @transform_17(%arg0: i32) -> (i32, i32) {
    %c0_i32 = arith.constant 0 : i32
    %c0_i32_0 = arith.constant 0 : i32
    %c0_i32_1 = arith.constant 0 : i32
    return %c0_i32, %c0_i32_0 : i32, i32
  }
  func.func @transform_18(%arg0: i32) -> (i32, i32) {
    %c0_i32 = arith.constant 0 : i32
    %c0_i32_0 = arith.constant 0 : i32
    %c0_i32_1 = arith.constant 0 : i32
    return %c0_i32, %c0_i32_0 : i32, i32
  }
  func.func @transform_19(%arg0: i32) -> (i32, i32) {
    %c0_i32 = arith.constant 0 : i32
    %c0_i32_0 = arith.constant 0 : i32
    %c0_i32_1 = arith.constant 0 : i32
    return %c0_i32, %c0_i32_0 : i32, i32
  }
  func.func @transform_20(%arg0: i32) -> (i32, i32, i32) {
    %c0_i32 = arith.constant 0 : i32
    %c0_i32_0 = arith.constant 0 : i32
    %c0_i32_1 = arith.constant 0 : i32
    return %arg0, %c0_i32, %c0_i32_0 : i32, i32, i32
  }
}

module attributes {stable_mosaic.version = 11 : i64} {
  func.func @_latent_block_kernel(%arg0: i32, %arg1: memref<1x16x64xf32, #tpu.memory_space<vmem>>, %arg2: memref<1x64xf32, #tpu.memory_space<vmem>>, %arg3: memref<1x64xf32, #tpu.memory_space<vmem>>, %arg4: memref<4x64x16xf32, #tpu.memory_space<vmem>>, %arg5: memref<4x64x16xf32, #tpu.memory_space<vmem>>, %arg6: memref<4x64x16xf32, #tpu.memory_space<vmem>>, %arg7: memref<4x16x64xf32, #tpu.memory_space<vmem>>, %arg8: memref<1x64xf32, #tpu.memory_space<vmem>>, %arg9: memref<1x64xf32, #tpu.memory_space<vmem>>, %arg10: memref<1x64xf32, #tpu.memory_space<vmem>>, %arg11: memref<64x256xf32, #tpu.memory_space<vmem>>, %arg12: memref<1x256xf32, #tpu.memory_space<vmem>>, %arg13: memref<64x256xf32, #tpu.memory_space<vmem>>, %arg14: memref<1x256xf32, #tpu.memory_space<vmem>>, %arg15: memref<256x64xf32, #tpu.memory_space<vmem>>, %arg16: memref<1x64xf32, #tpu.memory_space<vmem>>, %arg17: memref<1x16x64xf32, #tpu.memory_space<vmem>>) attributes {dimension_semantics = [#tpu.dimension_semantics<parallel>], iteration_bounds = array<i64: 2>, scalar_prefetch = 0 : i64, scratch_operands = 0 : i64, tpu.core_type = #tpu.core_type<tc>, window_params = [{transform_indices = @transform_0, window_bounds = array<i64: 1, 16, 64>}, {pipeline_mode = #tpu.pipeline_mode<synchronous>, transform_indices = @transform_1, window_bounds = array<i64: 1, 64>}, {pipeline_mode = #tpu.pipeline_mode<synchronous>, transform_indices = @transform_2, window_bounds = array<i64: 1, 64>}, {pipeline_mode = #tpu.pipeline_mode<synchronous>, transform_indices = @transform_3, window_bounds = array<i64: 4, 64, 16>}, {pipeline_mode = #tpu.pipeline_mode<synchronous>, transform_indices = @transform_4, window_bounds = array<i64: 4, 64, 16>}, {pipeline_mode = #tpu.pipeline_mode<synchronous>, transform_indices = @transform_5, window_bounds = array<i64: 4, 64, 16>}, {pipeline_mode = #tpu.pipeline_mode<synchronous>, transform_indices = @transform_6, window_bounds = array<i64: 4, 16, 64>}, {pipeline_mode = #tpu.pipeline_mode<synchronous>, transform_indices = @transform_7, window_bounds = array<i64: 1, 64>}, {pipeline_mode = #tpu.pipeline_mode<synchronous>, transform_indices = @transform_8, window_bounds = array<i64: 1, 64>}, {pipeline_mode = #tpu.pipeline_mode<synchronous>, transform_indices = @transform_9, window_bounds = array<i64: 1, 64>}, {pipeline_mode = #tpu.pipeline_mode<synchronous>, transform_indices = @transform_10, window_bounds = array<i64: 64, 256>}, {pipeline_mode = #tpu.pipeline_mode<synchronous>, transform_indices = @transform_11, window_bounds = array<i64: 1, 256>}, {pipeline_mode = #tpu.pipeline_mode<synchronous>, transform_indices = @transform_12, window_bounds = array<i64: 64, 256>}, {pipeline_mode = #tpu.pipeline_mode<synchronous>, transform_indices = @transform_13, window_bounds = array<i64: 1, 256>}, {pipeline_mode = #tpu.pipeline_mode<synchronous>, transform_indices = @transform_14, window_bounds = array<i64: 256, 64>}, {pipeline_mode = #tpu.pipeline_mode<synchronous>, transform_indices = @transform_15, window_bounds = array<i64: 1, 64>}, {transform_indices = @transform_16, window_bounds = array<i64: 1, 16, 64>}]} {
    %c0 = arith.constant 0 : index
    %c0_0 = arith.constant 0 : index
    %c0_1 = arith.constant 0 : index
    %0 = vector.load %arg1[%c0, %c0_0, %c0_1] : memref<1x16x64xf32, #tpu.memory_space<vmem>>, vector<1x16x64xf32>
    %1 = vector.shape_cast %0 : vector<1x16x64xf32> to vector<16x64xf32>
    %c0_2 = arith.constant 0 : index
    %c0_3 = arith.constant 0 : index
    %2 = vector.load %arg2[%c0_2, %c0_3] : memref<1x64xf32, #tpu.memory_space<vmem>>, vector<1x64xf32>
    %c0_4 = arith.constant 0 : index
    %c0_5 = arith.constant 0 : index
    %3 = vector.load %arg3[%c0_4, %c0_5] : memref<1x64xf32, #tpu.memory_space<vmem>>, vector<1x64xf32>
    %cst = arith.constant dense<0.000000e+00> : vector<16xf32>
    %4 = vector.multi_reduction <add>, %1, %cst [1] : vector<16x64xf32> to vector<16xf32>
    %5 = vector.shape_cast %4 : vector<16xf32> to vector<16x1xf32>
    %cst_6 = arith.constant 6.400000e+01 : f32
    %6 = vector.broadcast %cst_6 : f32 to vector<16x1xf32>
    %7 = arith.divf %5, %6 : vector<16x1xf32>
    %8 = vector.broadcast %7 : vector<16x1xf32> to vector<16x64xf32>
    %9 = arith.subf %1, %8 : vector<16x64xf32>
    %10 = arith.mulf %9, %9 : vector<16x64xf32>
    %cst_7 = arith.constant dense<0.000000e+00> : vector<16xf32>
    %11 = vector.multi_reduction <add>, %10, %cst_7 [1] : vector<16x64xf32> to vector<16xf32>
    %12 = vector.shape_cast %11 : vector<16xf32> to vector<16x1xf32>
    %cst_8 = arith.constant 6.400000e+01 : f32
    %13 = vector.broadcast %cst_8 : f32 to vector<16x1xf32>
    %14 = arith.divf %12, %13 : vector<16x1xf32>
    %cst_9 = arith.constant 9.99999974E-6 : f32
    %15 = vector.broadcast %cst_9 : f32 to vector<16x1xf32>
    %16 = arith.addf %14, %15 : vector<16x1xf32>
    %17 = math.rsqrt %16 : vector<16x1xf32>
    %18 = vector.broadcast %17 : vector<16x1xf32> to vector<16x64xf32>
    %19 = arith.mulf %9, %18 : vector<16x64xf32>
    %20 = vector.broadcast %2 : vector<1x64xf32> to vector<16x64xf32>
    %21 = arith.mulf %19, %20 : vector<16x64xf32>
    %22 = vector.broadcast %3 : vector<1x64xf32> to vector<16x64xf32>
    %23 = arith.addf %21, %22 : vector<16x64xf32>
    %c0_10 = arith.constant 0 : index
    %c0_11 = arith.constant 0 : index
    %c0_12 = arith.constant 0 : index
    %24 = vector.load %arg4[%c0_10, %c0_11, %c0_12] : memref<4x64x16xf32, #tpu.memory_space<vmem>>, vector<1x64x16xf32>
    %25 = vector.shape_cast %24 : vector<1x64x16xf32> to vector<64x16xf32>
    %26 = arith.truncf %23 : vector<16x64xf32> to vector<16x64xbf16>
    %27 = arith.truncf %25 : vector<64x16xf32> to vector<64x16xbf16>
    %cst_13 = arith.constant dense<0.000000e+00> : vector<16x16xf32>
    %28 = tpu.matmul %26, %27, %cst_13 {dimension_numbers = #tpu.dot_dimension_numbers<[1], [0], [0], [1], [0, 0, 1, 1], [], []>} : vector<16x64xbf16>, vector<64x16xbf16>, vector<16x16xf32> -> vector<16x16xf32>
    %c0_14 = arith.constant 0 : index
    %c0_15 = arith.constant 0 : index
    %c0_16 = arith.constant 0 : index
    %29 = vector.load %arg5[%c0_14, %c0_15, %c0_16] : memref<4x64x16xf32, #tpu.memory_space<vmem>>, vector<1x64x16xf32>
    %30 = vector.shape_cast %29 : vector<1x64x16xf32> to vector<64x16xf32>
    %31 = arith.truncf %23 : vector<16x64xf32> to vector<16x64xbf16>
    %32 = arith.truncf %30 : vector<64x16xf32> to vector<64x16xbf16>
    %cst_17 = arith.constant dense<0.000000e+00> : vector<16x16xf32>
    %33 = tpu.matmul %31, %32, %cst_17 {dimension_numbers = #tpu.dot_dimension_numbers<[1], [0], [0], [1], [0, 0, 1, 1], [], []>} : vector<16x64xbf16>, vector<64x16xbf16>, vector<16x16xf32> -> vector<16x16xf32>
    %c0_18 = arith.constant 0 : index
    %c0_19 = arith.constant 0 : index
    %c0_20 = arith.constant 0 : index
    %34 = vector.load %arg6[%c0_18, %c0_19, %c0_20] : memref<4x64x16xf32, #tpu.memory_space<vmem>>, vector<1x64x16xf32>
    %35 = vector.shape_cast %34 : vector<1x64x16xf32> to vector<64x16xf32>
    %36 = arith.truncf %23 : vector<16x64xf32> to vector<16x64xbf16>
    %37 = arith.truncf %35 : vector<64x16xf32> to vector<64x16xbf16>
    %cst_21 = arith.constant dense<0.000000e+00> : vector<16x16xf32>
    %38 = tpu.matmul %36, %37, %cst_21 {dimension_numbers = #tpu.dot_dimension_numbers<[1], [0], [0], [1], [0, 0, 1, 1], [], []>} : vector<16x64xbf16>, vector<64x16xbf16>, vector<16x16xf32> -> vector<16x16xf32>
    %39 = arith.truncf %28 : vector<16x16xf32> to vector<16x16xbf16>
    %40 = arith.truncf %33 : vector<16x16xf32> to vector<16x16xbf16>
    %cst_22 = arith.constant dense<0.000000e+00> : vector<16x16xf32>
    %41 = tpu.matmul %39, %40, %cst_22 {dimension_numbers = #tpu.dot_dimension_numbers<[1], [1], [0], [0], [0, 0, 1, 0], [], []>} : vector<16x16xbf16>, vector<16x16xbf16>, vector<16x16xf32> -> vector<16x16xf32>
    %cst_23 = arith.constant 2.500000e-01 : f32
    %42 = vector.broadcast %cst_23 : f32 to vector<16x16xf32>
    %43 = arith.mulf %41, %42 : vector<16x16xf32>
    %cst_24 = arith.constant dense<0xFF800000> : vector<16xf32>
    %44 = vector.multi_reduction <maximumf>, %43, %cst_24 [1] : vector<16x16xf32> to vector<16xf32>
    %45 = vector.shape_cast %44 : vector<16xf32> to vector<16x1xf32>
    %46 = vector.broadcast %45 : vector<16x1xf32> to vector<16x16xf32>
    %47 = arith.subf %43, %46 : vector<16x16xf32>
    %48 = math.exp %47 : vector<16x16xf32>
    %cst_25 = arith.constant dense<0.000000e+00> : vector<16xf32>
    %49 = vector.multi_reduction <add>, %48, %cst_25 [1] : vector<16x16xf32> to vector<16xf32>
    %50 = vector.shape_cast %49 : vector<16xf32> to vector<16x1xf32>
    %51 = tpu.reciprocal %50 {approx = true} : vector<16x1xf32> -> vector<16x1xf32>
    %52 = vector.broadcast %51 : vector<16x1xf32> to vector<16x16xf32>
    %53 = arith.mulf %48, %52 : vector<16x16xf32>
    %54 = arith.truncf %53 : vector<16x16xf32> to vector<16x16xbf16>
    %55 = arith.truncf %38 : vector<16x16xf32> to vector<16x16xbf16>
    %cst_26 = arith.constant dense<0.000000e+00> : vector<16x16xf32>
    %56 = tpu.matmul %54, %55, %cst_26 {dimension_numbers = #tpu.dot_dimension_numbers<[1], [0], [0], [1], [0, 0, 1, 1], [], []>} : vector<16x16xbf16>, vector<16x16xbf16>, vector<16x16xf32> -> vector<16x16xf32>
    %c0_27 = arith.constant 0 : index
    %c0_28 = arith.constant 0 : index
    %c0_29 = arith.constant 0 : index
    %57 = vector.load %arg7[%c0_27, %c0_28, %c0_29] : memref<4x16x64xf32, #tpu.memory_space<vmem>>, vector<1x16x64xf32>
    %58 = vector.shape_cast %57 : vector<1x16x64xf32> to vector<16x64xf32>
    %59 = arith.truncf %56 : vector<16x16xf32> to vector<16x16xbf16>
    %60 = arith.truncf %58 : vector<16x64xf32> to vector<16x64xbf16>
    %cst_30 = arith.constant dense<0.000000e+00> : vector<16x64xf32>
    %61 = tpu.matmul %59, %60, %cst_30 {dimension_numbers = #tpu.dot_dimension_numbers<[1], [0], [0], [1], [0, 0, 1, 1], [], []>} : vector<16x16xbf16>, vector<16x64xbf16>, vector<16x64xf32> -> vector<16x64xf32>
    %c1 = arith.constant 1 : index
    %c0_31 = arith.constant 0 : index
    %c0_32 = arith.constant 0 : index
    %62 = vector.load %arg4[%c1, %c0_31, %c0_32] : memref<4x64x16xf32, #tpu.memory_space<vmem>>, vector<1x64x16xf32>
    %63 = vector.shape_cast %62 : vector<1x64x16xf32> to vector<64x16xf32>
    %64 = arith.truncf %23 : vector<16x64xf32> to vector<16x64xbf16>
    %65 = arith.truncf %63 : vector<64x16xf32> to vector<64x16xbf16>
    %cst_33 = arith.constant dense<0.000000e+00> : vector<16x16xf32>
    %66 = tpu.matmul %64, %65, %cst_33 {dimension_numbers = #tpu.dot_dimension_numbers<[1], [0], [0], [1], [0, 0, 1, 1], [], []>} : vector<16x64xbf16>, vector<64x16xbf16>, vector<16x16xf32> -> vector<16x16xf32>
    %c1_34 = arith.constant 1 : index
    %c0_35 = arith.constant 0 : index
    %c0_36 = arith.constant 0 : index
    %67 = vector.load %arg5[%c1_34, %c0_35, %c0_36] : memref<4x64x16xf32, #tpu.memory_space<vmem>>, vector<1x64x16xf32>
    %68 = vector.shape_cast %67 : vector<1x64x16xf32> to vector<64x16xf32>
    %69 = arith.truncf %23 : vector<16x64xf32> to vector<16x64xbf16>
    %70 = arith.truncf %68 : vector<64x16xf32> to vector<64x16xbf16>
    %cst_37 = arith.constant dense<0.000000e+00> : vector<16x16xf32>
    %71 = tpu.matmul %69, %70, %cst_37 {dimension_numbers = #tpu.dot_dimension_numbers<[1], [0], [0], [1], [0, 0, 1, 1], [], []>} : vector<16x64xbf16>, vector<64x16xbf16>, vector<16x16xf32> -> vector<16x16xf32>
    %c1_38 = arith.constant 1 : index
    %c0_39 = arith.constant 0 : index
    %c0_40 = arith.constant 0 : index
    %72 = vector.load %arg6[%c1_38, %c0_39, %c0_40] : memref<4x64x16xf32, #tpu.memory_space<vmem>>, vector<1x64x16xf32>
    %73 = vector.shape_cast %72 : vector<1x64x16xf32> to vector<64x16xf32>
    %74 = arith.truncf %23 : vector<16x64xf32> to vector<16x64xbf16>
    %75 = arith.truncf %73 : vector<64x16xf32> to vector<64x16xbf16>
    %cst_41 = arith.constant dense<0.000000e+00> : vector<16x16xf32>
    %76 = tpu.matmul %74, %75, %cst_41 {dimension_numbers = #tpu.dot_dimension_numbers<[1], [0], [0], [1], [0, 0, 1, 1], [], []>} : vector<16x64xbf16>, vector<64x16xbf16>, vector<16x16xf32> -> vector<16x16xf32>
    %77 = arith.truncf %66 : vector<16x16xf32> to vector<16x16xbf16>
    %78 = arith.truncf %71 : vector<16x16xf32> to vector<16x16xbf16>
    %cst_42 = arith.constant dense<0.000000e+00> : vector<16x16xf32>
    %79 = tpu.matmul %77, %78, %cst_42 {dimension_numbers = #tpu.dot_dimension_numbers<[1], [1], [0], [0], [0, 0, 1, 0], [], []>} : vector<16x16xbf16>, vector<16x16xbf16>, vector<16x16xf32> -> vector<16x16xf32>
    %cst_43 = arith.constant 2.500000e-01 : f32
    %80 = vector.broadcast %cst_43 : f32 to vector<16x16xf32>
    %81 = arith.mulf %79, %80 : vector<16x16xf32>
    %cst_44 = arith.constant dense<0xFF800000> : vector<16xf32>
    %82 = vector.multi_reduction <maximumf>, %81, %cst_44 [1] : vector<16x16xf32> to vector<16xf32>
    %83 = vector.shape_cast %82 : vector<16xf32> to vector<16x1xf32>
    %84 = vector.broadcast %83 : vector<16x1xf32> to vector<16x16xf32>
    %85 = arith.subf %81, %84 : vector<16x16xf32>
    %86 = math.exp %85 : vector<16x16xf32>
    %cst_45 = arith.constant dense<0.000000e+00> : vector<16xf32>
    %87 = vector.multi_reduction <add>, %86, %cst_45 [1] : vector<16x16xf32> to vector<16xf32>
    %88 = vector.shape_cast %87 : vector<16xf32> to vector<16x1xf32>
    %89 = tpu.reciprocal %88 {approx = true} : vector<16x1xf32> -> vector<16x1xf32>
    %90 = vector.broadcast %89 : vector<16x1xf32> to vector<16x16xf32>
    %91 = arith.mulf %86, %90 : vector<16x16xf32>
    %92 = arith.truncf %91 : vector<16x16xf32> to vector<16x16xbf16>
    %93 = arith.truncf %76 : vector<16x16xf32> to vector<16x16xbf16>
    %cst_46 = arith.constant dense<0.000000e+00> : vector<16x16xf32>
    %94 = tpu.matmul %92, %93, %cst_46 {dimension_numbers = #tpu.dot_dimension_numbers<[1], [0], [0], [1], [0, 0, 1, 1], [], []>} : vector<16x16xbf16>, vector<16x16xbf16>, vector<16x16xf32> -> vector<16x16xf32>
    %c1_47 = arith.constant 1 : index
    %c0_48 = arith.constant 0 : index
    %c0_49 = arith.constant 0 : index
    %95 = vector.load %arg7[%c1_47, %c0_48, %c0_49] : memref<4x16x64xf32, #tpu.memory_space<vmem>>, vector<1x16x64xf32>
    %96 = vector.shape_cast %95 : vector<1x16x64xf32> to vector<16x64xf32>
    %97 = arith.truncf %94 : vector<16x16xf32> to vector<16x16xbf16>
    %98 = arith.truncf %96 : vector<16x64xf32> to vector<16x64xbf16>
    %cst_50 = arith.constant dense<0.000000e+00> : vector<16x64xf32>
    %99 = tpu.matmul %97, %98, %cst_50 {dimension_numbers = #tpu.dot_dimension_numbers<[1], [0], [0], [1], [0, 0, 1, 1], [], []>} : vector<16x16xbf16>, vector<16x64xbf16>, vector<16x64xf32> -> vector<16x64xf32>
    %100 = arith.addf %61, %99 : vector<16x64xf32>
    %c2 = arith.constant 2 : index
    %c0_51 = arith.constant 0 : index
    %c0_52 = arith.constant 0 : index
    %101 = vector.load %arg4[%c2, %c0_51, %c0_52] : memref<4x64x16xf32, #tpu.memory_space<vmem>>, vector<1x64x16xf32>
    %102 = vector.shape_cast %101 : vector<1x64x16xf32> to vector<64x16xf32>
    %103 = arith.truncf %23 : vector<16x64xf32> to vector<16x64xbf16>
    %104 = arith.truncf %102 : vector<64x16xf32> to vector<64x16xbf16>
    %cst_53 = arith.constant dense<0.000000e+00> : vector<16x16xf32>
    %105 = tpu.matmul %103, %104, %cst_53 {dimension_numbers = #tpu.dot_dimension_numbers<[1], [0], [0], [1], [0, 0, 1, 1], [], []>} : vector<16x64xbf16>, vector<64x16xbf16>, vector<16x16xf32> -> vector<16x16xf32>
    %c2_54 = arith.constant 2 : index
    %c0_55 = arith.constant 0 : index
    %c0_56 = arith.constant 0 : index
    %106 = vector.load %arg5[%c2_54, %c0_55, %c0_56] : memref<4x64x16xf32, #tpu.memory_space<vmem>>, vector<1x64x16xf32>
    %107 = vector.shape_cast %106 : vector<1x64x16xf32> to vector<64x16xf32>
    %108 = arith.truncf %23 : vector<16x64xf32> to vector<16x64xbf16>
    %109 = arith.truncf %107 : vector<64x16xf32> to vector<64x16xbf16>
    %cst_57 = arith.constant dense<0.000000e+00> : vector<16x16xf32>
    %110 = tpu.matmul %108, %109, %cst_57 {dimension_numbers = #tpu.dot_dimension_numbers<[1], [0], [0], [1], [0, 0, 1, 1], [], []>} : vector<16x64xbf16>, vector<64x16xbf16>, vector<16x16xf32> -> vector<16x16xf32>
    %c2_58 = arith.constant 2 : index
    %c0_59 = arith.constant 0 : index
    %c0_60 = arith.constant 0 : index
    %111 = vector.load %arg6[%c2_58, %c0_59, %c0_60] : memref<4x64x16xf32, #tpu.memory_space<vmem>>, vector<1x64x16xf32>
    %112 = vector.shape_cast %111 : vector<1x64x16xf32> to vector<64x16xf32>
    %113 = arith.truncf %23 : vector<16x64xf32> to vector<16x64xbf16>
    %114 = arith.truncf %112 : vector<64x16xf32> to vector<64x16xbf16>
    %cst_61 = arith.constant dense<0.000000e+00> : vector<16x16xf32>
    %115 = tpu.matmul %113, %114, %cst_61 {dimension_numbers = #tpu.dot_dimension_numbers<[1], [0], [0], [1], [0, 0, 1, 1], [], []>} : vector<16x64xbf16>, vector<64x16xbf16>, vector<16x16xf32> -> vector<16x16xf32>
    %116 = arith.truncf %105 : vector<16x16xf32> to vector<16x16xbf16>
    %117 = arith.truncf %110 : vector<16x16xf32> to vector<16x16xbf16>
    %cst_62 = arith.constant dense<0.000000e+00> : vector<16x16xf32>
    %118 = tpu.matmul %116, %117, %cst_62 {dimension_numbers = #tpu.dot_dimension_numbers<[1], [1], [0], [0], [0, 0, 1, 0], [], []>} : vector<16x16xbf16>, vector<16x16xbf16>, vector<16x16xf32> -> vector<16x16xf32>
    %cst_63 = arith.constant 2.500000e-01 : f32
    %119 = vector.broadcast %cst_63 : f32 to vector<16x16xf32>
    %120 = arith.mulf %118, %119 : vector<16x16xf32>
    %cst_64 = arith.constant dense<0xFF800000> : vector<16xf32>
    %121 = vector.multi_reduction <maximumf>, %120, %cst_64 [1] : vector<16x16xf32> to vector<16xf32>
    %122 = vector.shape_cast %121 : vector<16xf32> to vector<16x1xf32>
    %123 = vector.broadcast %122 : vector<16x1xf32> to vector<16x16xf32>
    %124 = arith.subf %120, %123 : vector<16x16xf32>
    %125 = math.exp %124 : vector<16x16xf32>
    %cst_65 = arith.constant dense<0.000000e+00> : vector<16xf32>
    %126 = vector.multi_reduction <add>, %125, %cst_65 [1] : vector<16x16xf32> to vector<16xf32>
    %127 = vector.shape_cast %126 : vector<16xf32> to vector<16x1xf32>
    %128 = tpu.reciprocal %127 {approx = true} : vector<16x1xf32> -> vector<16x1xf32>
    %129 = vector.broadcast %128 : vector<16x1xf32> to vector<16x16xf32>
    %130 = arith.mulf %125, %129 : vector<16x16xf32>
    %131 = arith.truncf %130 : vector<16x16xf32> to vector<16x16xbf16>
    %132 = arith.truncf %115 : vector<16x16xf32> to vector<16x16xbf16>
    %cst_66 = arith.constant dense<0.000000e+00> : vector<16x16xf32>
    %133 = tpu.matmul %131, %132, %cst_66 {dimension_numbers = #tpu.dot_dimension_numbers<[1], [0], [0], [1], [0, 0, 1, 1], [], []>} : vector<16x16xbf16>, vector<16x16xbf16>, vector<16x16xf32> -> vector<16x16xf32>
    %c2_67 = arith.constant 2 : index
    %c0_68 = arith.constant 0 : index
    %c0_69 = arith.constant 0 : index
    %134 = vector.load %arg7[%c2_67, %c0_68, %c0_69] : memref<4x16x64xf32, #tpu.memory_space<vmem>>, vector<1x16x64xf32>
    %135 = vector.shape_cast %134 : vector<1x16x64xf32> to vector<16x64xf32>
    %136 = arith.truncf %133 : vector<16x16xf32> to vector<16x16xbf16>
    %137 = arith.truncf %135 : vector<16x64xf32> to vector<16x64xbf16>
    %cst_70 = arith.constant dense<0.000000e+00> : vector<16x64xf32>
    %138 = tpu.matmul %136, %137, %cst_70 {dimension_numbers = #tpu.dot_dimension_numbers<[1], [0], [0], [1], [0, 0, 1, 1], [], []>} : vector<16x16xbf16>, vector<16x64xbf16>, vector<16x64xf32> -> vector<16x64xf32>
    %139 = arith.addf %100, %138 : vector<16x64xf32>
    %c3 = arith.constant 3 : index
    %c0_71 = arith.constant 0 : index
    %c0_72 = arith.constant 0 : index
    %140 = vector.load %arg4[%c3, %c0_71, %c0_72] : memref<4x64x16xf32, #tpu.memory_space<vmem>>, vector<1x64x16xf32>
    %141 = vector.shape_cast %140 : vector<1x64x16xf32> to vector<64x16xf32>
    %142 = arith.truncf %23 : vector<16x64xf32> to vector<16x64xbf16>
    %143 = arith.truncf %141 : vector<64x16xf32> to vector<64x16xbf16>
    %cst_73 = arith.constant dense<0.000000e+00> : vector<16x16xf32>
    %144 = tpu.matmul %142, %143, %cst_73 {dimension_numbers = #tpu.dot_dimension_numbers<[1], [0], [0], [1], [0, 0, 1, 1], [], []>} : vector<16x64xbf16>, vector<64x16xbf16>, vector<16x16xf32> -> vector<16x16xf32>
    %c3_74 = arith.constant 3 : index
    %c0_75 = arith.constant 0 : index
    %c0_76 = arith.constant 0 : index
    %145 = vector.load %arg5[%c3_74, %c0_75, %c0_76] : memref<4x64x16xf32, #tpu.memory_space<vmem>>, vector<1x64x16xf32>
    %146 = vector.shape_cast %145 : vector<1x64x16xf32> to vector<64x16xf32>
    %147 = arith.truncf %23 : vector<16x64xf32> to vector<16x64xbf16>
    %148 = arith.truncf %146 : vector<64x16xf32> to vector<64x16xbf16>
    %cst_77 = arith.constant dense<0.000000e+00> : vector<16x16xf32>
    %149 = tpu.matmul %147, %148, %cst_77 {dimension_numbers = #tpu.dot_dimension_numbers<[1], [0], [0], [1], [0, 0, 1, 1], [], []>} : vector<16x64xbf16>, vector<64x16xbf16>, vector<16x16xf32> -> vector<16x16xf32>
    %c3_78 = arith.constant 3 : index
    %c0_79 = arith.constant 0 : index
    %c0_80 = arith.constant 0 : index
    %150 = vector.load %arg6[%c3_78, %c0_79, %c0_80] : memref<4x64x16xf32, #tpu.memory_space<vmem>>, vector<1x64x16xf32>
    %151 = vector.shape_cast %150 : vector<1x64x16xf32> to vector<64x16xf32>
    %152 = arith.truncf %23 : vector<16x64xf32> to vector<16x64xbf16>
    %153 = arith.truncf %151 : vector<64x16xf32> to vector<64x16xbf16>
    %cst_81 = arith.constant dense<0.000000e+00> : vector<16x16xf32>
    %154 = tpu.matmul %152, %153, %cst_81 {dimension_numbers = #tpu.dot_dimension_numbers<[1], [0], [0], [1], [0, 0, 1, 1], [], []>} : vector<16x64xbf16>, vector<64x16xbf16>, vector<16x16xf32> -> vector<16x16xf32>
    %155 = arith.truncf %144 : vector<16x16xf32> to vector<16x16xbf16>
    %156 = arith.truncf %149 : vector<16x16xf32> to vector<16x16xbf16>
    %cst_82 = arith.constant dense<0.000000e+00> : vector<16x16xf32>
    %157 = tpu.matmul %155, %156, %cst_82 {dimension_numbers = #tpu.dot_dimension_numbers<[1], [1], [0], [0], [0, 0, 1, 0], [], []>} : vector<16x16xbf16>, vector<16x16xbf16>, vector<16x16xf32> -> vector<16x16xf32>
    %cst_83 = arith.constant 2.500000e-01 : f32
    %158 = vector.broadcast %cst_83 : f32 to vector<16x16xf32>
    %159 = arith.mulf %157, %158 : vector<16x16xf32>
    %cst_84 = arith.constant dense<0xFF800000> : vector<16xf32>
    %160 = vector.multi_reduction <maximumf>, %159, %cst_84 [1] : vector<16x16xf32> to vector<16xf32>
    %161 = vector.shape_cast %160 : vector<16xf32> to vector<16x1xf32>
    %162 = vector.broadcast %161 : vector<16x1xf32> to vector<16x16xf32>
    %163 = arith.subf %159, %162 : vector<16x16xf32>
    %164 = math.exp %163 : vector<16x16xf32>
    %cst_85 = arith.constant dense<0.000000e+00> : vector<16xf32>
    %165 = vector.multi_reduction <add>, %164, %cst_85 [1] : vector<16x16xf32> to vector<16xf32>
    %166 = vector.shape_cast %165 : vector<16xf32> to vector<16x1xf32>
    %167 = tpu.reciprocal %166 {approx = true} : vector<16x1xf32> -> vector<16x1xf32>
    %168 = vector.broadcast %167 : vector<16x1xf32> to vector<16x16xf32>
    %169 = arith.mulf %164, %168 : vector<16x16xf32>
    %170 = arith.truncf %169 : vector<16x16xf32> to vector<16x16xbf16>
    %171 = arith.truncf %154 : vector<16x16xf32> to vector<16x16xbf16>
    %cst_86 = arith.constant dense<0.000000e+00> : vector<16x16xf32>
    %172 = tpu.matmul %170, %171, %cst_86 {dimension_numbers = #tpu.dot_dimension_numbers<[1], [0], [0], [1], [0, 0, 1, 1], [], []>} : vector<16x16xbf16>, vector<16x16xbf16>, vector<16x16xf32> -> vector<16x16xf32>
    %c3_87 = arith.constant 3 : index
    %c0_88 = arith.constant 0 : index
    %c0_89 = arith.constant 0 : index
    %173 = vector.load %arg7[%c3_87, %c0_88, %c0_89] : memref<4x16x64xf32, #tpu.memory_space<vmem>>, vector<1x16x64xf32>
    %174 = vector.shape_cast %173 : vector<1x16x64xf32> to vector<16x64xf32>
    %175 = arith.truncf %172 : vector<16x16xf32> to vector<16x16xbf16>
    %176 = arith.truncf %174 : vector<16x64xf32> to vector<16x64xbf16>
    %cst_90 = arith.constant dense<0.000000e+00> : vector<16x64xf32>
    %177 = tpu.matmul %175, %176, %cst_90 {dimension_numbers = #tpu.dot_dimension_numbers<[1], [0], [0], [1], [0, 0, 1, 1], [], []>} : vector<16x16xbf16>, vector<16x64xbf16>, vector<16x64xf32> -> vector<16x64xf32>
    %178 = arith.addf %139, %177 : vector<16x64xf32>
    %c0_91 = arith.constant 0 : index
    %c0_92 = arith.constant 0 : index
    %179 = vector.load %arg8[%c0_91, %c0_92] : memref<1x64xf32, #tpu.memory_space<vmem>>, vector<1x64xf32>
    %180 = vector.broadcast %179 : vector<1x64xf32> to vector<16x64xf32>
    %181 = arith.addf %178, %180 : vector<16x64xf32>
    %182 = arith.addf %181, %1 : vector<16x64xf32>
    %c0_93 = arith.constant 0 : index
    %c0_94 = arith.constant 0 : index
    %183 = vector.load %arg9[%c0_93, %c0_94] : memref<1x64xf32, #tpu.memory_space<vmem>>, vector<1x64xf32>
    %c0_95 = arith.constant 0 : index
    %c0_96 = arith.constant 0 : index
    %184 = vector.load %arg10[%c0_95, %c0_96] : memref<1x64xf32, #tpu.memory_space<vmem>>, vector<1x64xf32>
    %cst_97 = arith.constant dense<0.000000e+00> : vector<16xf32>
    %185 = vector.multi_reduction <add>, %182, %cst_97 [1] : vector<16x64xf32> to vector<16xf32>
    %186 = vector.shape_cast %185 : vector<16xf32> to vector<16x1xf32>
    %cst_98 = arith.constant 6.400000e+01 : f32
    %187 = vector.broadcast %cst_98 : f32 to vector<16x1xf32>
    %188 = arith.divf %186, %187 : vector<16x1xf32>
    %189 = vector.broadcast %188 : vector<16x1xf32> to vector<16x64xf32>
    %190 = arith.subf %182, %189 : vector<16x64xf32>
    %191 = arith.mulf %190, %190 : vector<16x64xf32>
    %cst_99 = arith.constant dense<0.000000e+00> : vector<16xf32>
    %192 = vector.multi_reduction <add>, %191, %cst_99 [1] : vector<16x64xf32> to vector<16xf32>
    %193 = vector.shape_cast %192 : vector<16xf32> to vector<16x1xf32>
    %cst_100 = arith.constant 6.400000e+01 : f32
    %194 = vector.broadcast %cst_100 : f32 to vector<16x1xf32>
    %195 = arith.divf %193, %194 : vector<16x1xf32>
    %cst_101 = arith.constant 9.99999974E-6 : f32
    %196 = vector.broadcast %cst_101 : f32 to vector<16x1xf32>
    %197 = arith.addf %195, %196 : vector<16x1xf32>
    %198 = math.rsqrt %197 : vector<16x1xf32>
    %199 = vector.broadcast %198 : vector<16x1xf32> to vector<16x64xf32>
    %200 = arith.mulf %190, %199 : vector<16x64xf32>
    %201 = vector.broadcast %183 : vector<1x64xf32> to vector<16x64xf32>
    %202 = arith.mulf %200, %201 : vector<16x64xf32>
    %203 = vector.broadcast %184 : vector<1x64xf32> to vector<16x64xf32>
    %204 = arith.addf %202, %203 : vector<16x64xf32>
    %c0_102 = arith.constant 0 : index
    %c0_103 = arith.constant 0 : index
    %205 = vector.load %arg11[%c0_102, %c0_103] : memref<64x256xf32, #tpu.memory_space<vmem>>, vector<64x256xf32>
    %c0_104 = arith.constant 0 : index
    %c0_105 = arith.constant 0 : index
    %206 = vector.load %arg12[%c0_104, %c0_105] : memref<1x256xf32, #tpu.memory_space<vmem>>, vector<1x256xf32>
    %c0_106 = arith.constant 0 : index
    %c0_107 = arith.constant 0 : index
    %207 = vector.load %arg13[%c0_106, %c0_107] : memref<64x256xf32, #tpu.memory_space<vmem>>, vector<64x256xf32>
    %c0_108 = arith.constant 0 : index
    %c0_109 = arith.constant 0 : index
    %208 = vector.load %arg14[%c0_108, %c0_109] : memref<1x256xf32, #tpu.memory_space<vmem>>, vector<1x256xf32>
    %c0_110 = arith.constant 0 : index
    %c0_111 = arith.constant 0 : index
    %209 = vector.load %arg15[%c0_110, %c0_111] : memref<256x64xf32, #tpu.memory_space<vmem>>, vector<256x64xf32>
    %c0_112 = arith.constant 0 : index
    %c0_113 = arith.constant 0 : index
    %210 = vector.load %arg16[%c0_112, %c0_113] : memref<1x64xf32, #tpu.memory_space<vmem>>, vector<1x64xf32>
    %211 = arith.truncf %204 : vector<16x64xf32> to vector<16x64xbf16>
    %212 = arith.truncf %205 : vector<64x256xf32> to vector<64x256xbf16>
    %cst_114 = arith.constant dense<0.000000e+00> : vector<16x256xf32>
    %213 = tpu.matmul %211, %212, %cst_114 {dimension_numbers = #tpu.dot_dimension_numbers<[1], [0], [0], [1], [0, 0, 1, 1], [], []>} : vector<16x64xbf16>, vector<64x256xbf16>, vector<16x256xf32> -> vector<16x256xf32>
    %214 = vector.broadcast %206 : vector<1x256xf32> to vector<16x256xf32>
    %215 = arith.addf %213, %214 : vector<16x256xf32>
    %216 = arith.truncf %204 : vector<16x64xf32> to vector<16x64xbf16>
    %217 = arith.truncf %207 : vector<64x256xf32> to vector<64x256xbf16>
    %cst_115 = arith.constant dense<0.000000e+00> : vector<16x256xf32>
    %218 = tpu.matmul %216, %217, %cst_115 {dimension_numbers = #tpu.dot_dimension_numbers<[1], [0], [0], [1], [0, 0, 1, 1], [], []>} : vector<16x64xbf16>, vector<64x256xbf16>, vector<16x256xf32> -> vector<16x256xf32>
    %219 = vector.broadcast %208 : vector<1x256xf32> to vector<16x256xf32>
    %220 = arith.addf %218, %219 : vector<16x256xf32>
    %cst_116 = arith.constant 5.000000e-01 : f32
    %221 = vector.broadcast %cst_116 : f32 to vector<16x256xf32>
    %222 = arith.mulf %221, %220 : vector<16x256xf32>
    %cst_117 = arith.constant 4.471500e-02 : f32
    %223 = vector.broadcast %cst_117 : f32 to vector<16x256xf32>
    %224 = arith.mulf %223, %220 : vector<16x256xf32>
    %225 = arith.mulf %224, %220 : vector<16x256xf32>
    %226 = arith.mulf %225, %220 : vector<16x256xf32>
    %227 = arith.addf %220, %226 : vector<16x256xf32>
    %cst_118 = arith.constant 0.797884583 : f32
    %228 = vector.broadcast %cst_118 : f32 to vector<16x256xf32>
    %229 = arith.mulf %228, %227 : vector<16x256xf32>
    %230 = math.tanh %229 : vector<16x256xf32>
    %cst_119 = arith.constant 1.000000e+00 : f32
    %231 = vector.broadcast %cst_119 : f32 to vector<16x256xf32>
    %232 = arith.addf %231, %230 : vector<16x256xf32>
    %233 = arith.mulf %222, %232 : vector<16x256xf32>
    %234 = arith.mulf %215, %233 : vector<16x256xf32>
    %235 = arith.truncf %234 : vector<16x256xf32> to vector<16x256xbf16>
    %236 = arith.truncf %209 : vector<256x64xf32> to vector<256x64xbf16>
    %cst_120 = arith.constant dense<0.000000e+00> : vector<16x64xf32>
    %237 = tpu.matmul %235, %236, %cst_120 {dimension_numbers = #tpu.dot_dimension_numbers<[1], [0], [0], [1], [0, 0, 1, 1], [], []>} : vector<16x256xbf16>, vector<256x64xbf16>, vector<16x64xf32> -> vector<16x64xf32>
    %238 = vector.broadcast %210 : vector<1x64xf32> to vector<16x64xf32>
    %239 = arith.addf %237, %238 : vector<16x64xf32>
    %240 = arith.addf %239, %182 : vector<16x64xf32>
    %c0_121 = arith.constant 0 : index
    %c0_122 = arith.constant 0 : index
    %c0_123 = arith.constant 0 : index
    %241 = vector.load %arg17[%c0_121, %c0_122, %c0_123] : memref<1x16x64xf32, #tpu.memory_space<vmem>>, vector<1x16x64xf32>
    %242 = vector.shape_cast %241 : vector<1x16x64xf32> to vector<16x64xf32>
    %243 = vector.shape_cast %240 : vector<16x64xf32> to vector<1x16x64xf32>
    tpu.vector_store %arg17[%c0_121, %c0_122, %c0_123], %243 {strides = array<i32>} : memref<1x16x64xf32, #tpu.memory_space<vmem>>, vector<1x16x64xf32>,
    return
  }
  func.func @transform_0(%arg0: i32) -> (i32, i32, i32) {
    %c0_i32 = arith.constant 0 : i32
    %c0_i32_0 = arith.constant 0 : i32
    %c0_i32_1 = arith.constant 0 : i32
    return %arg0, %c0_i32, %c0_i32_0 : i32, i32, i32
  }
  func.func @transform_1(%arg0: i32) -> (i32, i32) {
    %c0_i32 = arith.constant 0 : i32
    %c0_i32_0 = arith.constant 0 : i32
    %c0_i32_1 = arith.constant 0 : i32
    return %c0_i32, %c0_i32_0 : i32, i32
  }
  func.func @transform_2(%arg0: i32) -> (i32, i32) {
    %c0_i32 = arith.constant 0 : i32
    %c0_i32_0 = arith.constant 0 : i32
    %c0_i32_1 = arith.constant 0 : i32
    return %c0_i32, %c0_i32_0 : i32, i32
  }
  func.func @transform_3(%arg0: i32) -> (i32, i32, i32) {
    %c0_i32 = arith.constant 0 : i32
    %c0_i32_0 = arith.constant 0 : i32
    %c0_i32_1 = arith.constant 0 : i32
    %c0_i32_2 = arith.constant 0 : i32
    return %c0_i32, %c0_i32_0, %c0_i32_1 : i32, i32, i32
  }
  func.func @transform_4(%arg0: i32) -> (i32, i32, i32) {
    %c0_i32 = arith.constant 0 : i32
    %c0_i32_0 = arith.constant 0 : i32
    %c0_i32_1 = arith.constant 0 : i32
    %c0_i32_2 = arith.constant 0 : i32
    return %c0_i32, %c0_i32_0, %c0_i32_1 : i32, i32, i32
  }
  func.func @transform_5(%arg0: i32) -> (i32, i32, i32) {
    %c0_i32 = arith.constant 0 : i32
    %c0_i32_0 = arith.constant 0 : i32
    %c0_i32_1 = arith.constant 0 : i32
    %c0_i32_2 = arith.constant 0 : i32
    return %c0_i32, %c0_i32_0, %c0_i32_1 : i32, i32, i32
  }
  func.func @transform_6(%arg0: i32) -> (i32, i32, i32) {
    %c0_i32 = arith.constant 0 : i32
    %c0_i32_0 = arith.constant 0 : i32
    %c0_i32_1 = arith.constant 0 : i32
    %c0_i32_2 = arith.constant 0 : i32
    return %c0_i32, %c0_i32_0, %c0_i32_1 : i32, i32, i32
  }
  func.func @transform_7(%arg0: i32) -> (i32, i32) {
    %c0_i32 = arith.constant 0 : i32
    %c0_i32_0 = arith.constant 0 : i32
    %c0_i32_1 = arith.constant 0 : i32
    return %c0_i32, %c0_i32_0 : i32, i32
  }
  func.func @transform_8(%arg0: i32) -> (i32, i32) {
    %c0_i32 = arith.constant 0 : i32
    %c0_i32_0 = arith.constant 0 : i32
    %c0_i32_1 = arith.constant 0 : i32
    return %c0_i32, %c0_i32_0 : i32, i32
  }
  func.func @transform_9(%arg0: i32) -> (i32, i32) {
    %c0_i32 = arith.constant 0 : i32
    %c0_i32_0 = arith.constant 0 : i32
    %c0_i32_1 = arith.constant 0 : i32
    return %c0_i32, %c0_i32_0 : i32, i32
  }
  func.func @transform_10(%arg0: i32) -> (i32, i32) {
    %c0_i32 = arith.constant 0 : i32
    %c0_i32_0 = arith.constant 0 : i32
    %c0_i32_1 = arith.constant 0 : i32
    return %c0_i32, %c0_i32_0 : i32, i32
  }
  func.func @transform_11(%arg0: i32) -> (i32, i32) {
    %c0_i32 = arith.constant 0 : i32
    %c0_i32_0 = arith.constant 0 : i32
    %c0_i32_1 = arith.constant 0 : i32
    return %c0_i32, %c0_i32_0 : i32, i32
  }
  func.func @transform_12(%arg0: i32) -> (i32, i32) {
    %c0_i32 = arith.constant 0 : i32
    %c0_i32_0 = arith.constant 0 : i32
    %c0_i32_1 = arith.constant 0 : i32
    return %c0_i32, %c0_i32_0 : i32, i32
  }
  func.func @transform_13(%arg0: i32) -> (i32, i32) {
    %c0_i32 = arith.constant 0 : i32
    %c0_i32_0 = arith.constant 0 : i32
    %c0_i32_1 = arith.constant 0 : i32
    return %c0_i32, %c0_i32_0 : i32, i32
  }
  func.func @transform_14(%arg0: i32) -> (i32, i32) {
    %c0_i32 = arith.constant 0 : i32
    %c0_i32_0 = arith.constant 0 : i32
    %c0_i32_1 = arith.constant 0 : i32
    return %c0_i32, %c0_i32_0 : i32, i32
  }
  func.func @transform_15(%arg0: i32) -> (i32, i32) {
    %c0_i32 = arith.constant 0 : i32
    %c0_i32_0 = arith.constant 0 : i32
    %c0_i32_1 = arith.constant 0 : i32
    return %c0_i32, %c0_i32_0 : i32, i32
  }
  func.func @transform_16(%arg0: i32) -> (i32, i32, i32) {
    %c0_i32 = arith.constant 0 : i32
    %c0_i32_0 = arith.constant 0 : i32
    %c0_i32_1 = arith.constant 0 : i32
    return %arg0, %c0_i32, %c0_i32_0 : i32, i32, i32
  }
}

module attributes {stable_mosaic.version = 11 : i64} {
  func.func @_pool_classify_kernel(%arg0: i32, %arg1: memref<2x16x64xf32, #tpu.memory_space<vmem>>, %arg2: memref<64x5xf32, #tpu.memory_space<vmem>>, %arg3: memref<1x5xf32, #tpu.memory_space<vmem>>, %arg4: memref<2x5xf32, #tpu.memory_space<vmem>>) attributes {dimension_semantics = [#tpu.dimension_semantics<arbitrary>], iteration_bounds = array<i64: 1>, scalar_prefetch = 0 : i64, scratch_operands = 0 : i64, tpu.core_type = #tpu.core_type<tc>, window_params = [{pipeline_mode = #tpu.pipeline_mode<synchronous>, transform_indices = @transform_0, window_bounds = array<i64: 2, 16, 64>}, {pipeline_mode = #tpu.pipeline_mode<synchronous>, transform_indices = @transform_1, window_bounds = array<i64: 64, 5>}, {pipeline_mode = #tpu.pipeline_mode<synchronous>, transform_indices = @transform_2, window_bounds = array<i64: 1, 5>}, {pipeline_mode = #tpu.pipeline_mode<synchronous>, transform_indices = @transform_3, window_bounds = array<i64: 2, 5>}]} {
    %c0 = arith.constant 0 : index
    %c0_0 = arith.constant 0 : index
    %c0_1 = arith.constant 0 : index
    %0 = vector.load %arg1[%c0, %c0_0, %c0_1] : memref<2x16x64xf32, #tpu.memory_space<vmem>>, vector<2x16x64xf32>
    %cst = arith.constant dense<0.000000e+00> : vector<2x64xf32>
    %1 = vector.multi_reduction <add>, %0, %cst [1] : vector<2x16x64xf32> to vector<2x64xf32>
    %cst_2 = arith.constant 1.600000e+01 : f32
    %2 = vector.broadcast %cst_2 : f32 to vector<2x64xf32>
    %3 = arith.divf %1, %2 : vector<2x64xf32>
    %c0_3 = arith.constant 0 : index
    %c0_4 = arith.constant 0 : index
    %4 = vector.load %arg2[%c0_3, %c0_4] : memref<64x5xf32, #tpu.memory_space<vmem>>, vector<64x5xf32>
    %5 = arith.truncf %3 : vector<2x64xf32> to vector<2x64xbf16>
    %6 = arith.truncf %4 : vector<64x5xf32> to vector<64x5xbf16>
    %cst_5 = arith.constant dense<0.000000e+00> : vector<2x5xf32>
    %7 = tpu.matmul %5, %6, %cst_5 {dimension_numbers = #tpu.dot_dimension_numbers<[1], [0], [0], [1], [0, 0, 1, 1], [], []>} : vector<2x64xbf16>, vector<64x5xbf16>, vector<2x5xf32> -> vector<2x5xf32>
    %c0_6 = arith.constant 0 : index
    %c0_7 = arith.constant 0 : index
    %8 = vector.load %arg3[%c0_6, %c0_7] : memref<1x5xf32, #tpu.memory_space<vmem>>, vector<1x5xf32>
    %9 = vector.broadcast %8 : vector<1x5xf32> to vector<2x5xf32>
    %10 = arith.addf %7, %9 : vector<2x5xf32>
    %c0_8 = arith.constant 0 : index
    %c0_9 = arith.constant 0 : index
    %11 = vector.load %arg4[%c0_8, %c0_9] : memref<2x5xf32, #tpu.memory_space<vmem>>, vector<2x5xf32>
    tpu.vector_store %arg4[%c0_8, %c0_9], %10 {strides = array<i32>} : memref<2x5xf32, #tpu.memory_space<vmem>>, vector<2x5xf32>,
    return
  }
  func.func @transform_0(%arg0: i32) -> (i32, i32, i32) {
    %c0_i32 = arith.constant 0 : i32
    %c0_i32_0 = arith.constant 0 : i32
    %c0_i32_1 = arith.constant 0 : i32
    %c0_i32_2 = arith.constant 0 : i32
    return %c0_i32, %c0_i32_0, %c0_i32_1 : i32, i32, i32
  }
  func.func @transform_1(%arg0: i32) -> (i32, i32) {
    %c0_i32 = arith.constant 0 : i32
    %c0_i32_0 = arith.constant 0 : i32
    %c0_i32_1 = arith.constant 0 : i32
    return %c0_i32, %c0_i32_0 : i32, i32
  }
  func.func @transform_2(%arg0: i32) -> (i32, i32) {
    %c0_i32 = arith.constant 0 : i32
    %c0_i32_0 = arith.constant 0 : i32
    %c0_i32_1 = arith.constant 0 : i32
    return %c0_i32, %c0_i32_0 : i32, i32
  }
  func.func @transform_3(%arg0: i32) -> (i32, i32) {
    %c0_i32 = arith.constant 0 : i32
    %c0_i32_0 = arith.constant 0 : i32
    %c0_i32_1 = arith.constant 0 : i32
    return %c0_i32, %c0_i32_0 : i32, i32
  }
}

</mosaic_0001>

<llo_original>
// kernel: forward.9
$region0: #{forward.9}
  #allocation0 [shape = 'u32[]', space=smem, size = 0x4, offset = 0x4, fixed_abs, tag = 'smem constant byte address 0x4 - core index']
  #allocation1 [shape = 'u32[144,128]{1,0:T(1,128)}', space=vmem, size = 0x12000, scoped, tag = 'internal scratch']
  %s0 = inlined_call_operand.vmem [shape: f32[2,16,64], index: 0, kind: input, shape index: {}]
  %s1 = inlined_call_operand.vmem [shape: f32[64,5], index: 1, kind: input, shape index: {}]
  %s2 = inlined_call_operand.vmem [shape: f32[1,5], index: 2, kind: input, shape index: {}]
  %s3 = inlined_call_operand.hbm [shape: f32[2,5], index: 3, kind: output, shape index: {}]
  %s4 = sld [smem:[#allocation0]]
  $region22: #{forward.9} parent=0
    _
  %s6 = ssub.s32 1, %s4
  %s7 = scalar_select 0, %s6, %s4
  $region1: #{forward.9} parent=0
    #allocation2 [shape = 'u8[1024]{0}', space=vmem, size = 0x400, scoped, tag = 'output window, operand 0, single buffered']
    #allocation3 [shape = 's32[1]{0}', space=sflag, size = 0x4, scoped, tag = 'scoped memory for forward.9']
    %8 = vsyncpa [#allocation3], 0
    // Predicated region
    $region2: #{forward.9} parent=1 // pred_check
      _
    $region3: #{forward.9} parent=1 // pred_check_branch
      %10 = sbr.rel (0) target = $region5
    $region4: #{forward.9} parent=1 // pred_region
      _
    $region5: #{forward.9} parent=1 // pred_fallthru
      _
    // Predicated region
    $region6: #{forward.9} parent=1 // pred_check
      _
    $region7: #{forward.9} parent=1 // pred_check_branch
      %12 = sbr.rel (0) target = $region9
    $region8: #{forward.9} parent=1 // pred_region
      _
    $region9: #{forward.9} parent=1 // pred_fallthru
      _
    // Predicated region
    $region10: #{forward.9} parent=1 // pred_check
      _
    $region11: #{forward.9} parent=1 // pred_check_branch
      %14 = sbr.rel (0) target = $region13
    $region12: #{forward.9} parent=1 // pred_region
      _
    $region13: #{forward.9} parent=1 // pred_fallthru
      _
    %v16 = vld [vmem:[%s0] sm:$0xff]
    %v17 = vld [vmem:[%s0 + $0x8] sm:$0xff]
    %v18 = vld [vmem:[%s0 + $0x10] sm:$0xff]
    %v19 = vld [vmem:[%s0 + $0x18] sm:$0xff]
    %vm20 = vcmask 523264
    %v21 = vsel %vm20, %v16, 0.0
    %v22 = vsel %vm20, %v17, 0.0
    %v23 = vadd.f32 %v21, %v22
    %v24 = vrot.slane %v23, 4
    %v25 = vadd.f32 %v23, %v24
    %v26 = vrot.slane %v25, 2
    %v27 = vadd.f32 %v25, %v26
    %v28 = vrot.slane %v27, 1
    %v29 = vadd.f32 %v27, %v28
    %v30 = vsel %vm20, %v18, 0.0
    %v31 = vsel %vm20, %v19, 0.0
    %v32 = vadd.f32 %v30, %v31
    %v33 = vrot.slane %v32, 4
    %v34 = vadd.f32 %v32, %v33
    %v35 = vrot.slane %v34, 2
    %v36 = vadd.f32 %v34, %v35
    %v37 = vrot.slane %v36, 1
    %v38 = vadd.f32 %v36, %v37
    %v39 = vrcp.pop 16.0
    %v40 = vmul.f32 %v29, %v39
    %v41 = vmul.f32 %v38, %v39
    %v42 = vld [vmem:[%s1] sm:$0xff]
    %v43 = vld [vmem:[%s1 + $0x8] sm:$0xff]
    %v44 = vld [vmem:[%s1 + $0x10] sm:$0xff]
    %v45 = vld [vmem:[%s1 + $0x18] sm:$0xff]
    %v46 = vld [vmem:[%s1 + $0x20] sm:$0xff]
    %v47 = vld [vmem:[%s1 + $0x28] sm:$0xff]
    %v48 = vld [vmem:[%s1 + $0x30] sm:$0xff]
    %v49 = vld [vmem:[%s1 + $0x38] sm:$0xff]
    %v50 = vpack.c.bf16 %v40, %v40
    %v51 = vpack.c.bf16 %v41, %v41
    %v52 = vpack.c.bf16 %v43, %v42
    %v53 = vpack.c.bf16 %v45, %v44
    %v54 = vpack.c.bf16 %v47, %v46
    %v55 = vpack.c.bf16 %v49, %v48
    %v56 = vld [vmem:[%s2] sm:$0x1]
    %v58 = vlaneseq
    %v59 = vshrl.u32 %v58, 7
    %v60 = vsub.s32 0, %v59
    %v61 = vrot.slane %v56, %v60
    %v65 = vunpack.c.l.b16 %v50
    %v66 = vunpack.c.l.b16 %v51
    %vm67 = vcmask 1041409
    %v68 = vsel %vm67, %v66, %v65
    %v69 = vpack.c.b16 %v68, %v68
    %v71 = vsel %vm20, %v69, 0
    %73 = vmatprep.subr.bf16.mxu0 0
    %74 = vmatpush1.bf16.msra.mxu0 %v52
    %75 = vmatprep.subr.bf16.mxu0 0
    %76 = vmatpush1.bf16.msra.mxu0 %v53
    %77 = vmatprep.subr.bf16.mxu0 0
    %78 = vmatpush1.bf16.msra.mxu0 %v54
    %79 = vmatprep.subr.bf16.mxu0 0
    %80 = vmatpush1.bf16.msra.mxu0 %v55
    %81 = vmatprep.subr.bf16.mxu0 0
    %82 = vmatpush1.bf16.msra.mxu0 0
    %83 = vmatprep.subr.bf16.mxu0 0
    %84 = vmatpush1.bf16.msra.mxu0 0
    %85 = vmatprep.subr.bf16.mxu0 0
    %86 = vmatpush1.bf16.msra.mxu0 0
    %87 = vmatprep.subr.bf16.mxu0 0
    %88 = vmatpush1.bf16.msra.mxu0 0
    %89 = vmatprep.subr.bf16.mxu0 0
    %90 = vmatpush1.bf16.msra.mxu0 0
    %91 = vmatprep.subr.bf16.mxu0 0
    %92 = vmatpush1.bf16.msra.mxu0 0
    %93 = vmatprep.subr.bf16.mxu0 0
    %94 = vmatpush1.bf16.msra.mxu0 0
    %95 = vmatprep.subr.bf16.mxu0 0
    %96 = vmatpush1.bf16.msra.mxu0 0
    %97 = vmatprep.subr.bf16.mxu0 0
    %98 = vmatpush1.bf16.msra.mxu0 0
    %99 = vmatprep.subr.bf16.mxu0 0
    %100 = vmatpush1.bf16.msra.mxu0 0
    %101 = vmatprep.subr.bf16.mxu0 0
    %102 = vmatpush1.bf16.msra.mxu0 0
    %103 = vmatprep.subr.bf16.mxu0 0
    %104 = vmatpush1.bf16.msra.mxu0 0
    %105 = vmatprep.mubr.bf16.mxu0 0
    %106 = vmatmul.mubr.bf16.gmra.mrb[0].mxu0 %v71
    %v107 = vpop.f32.mrb[0].mxu0
    %v108 = vadd.f32 %v61, %v107
    %v109 = vpop.f32.mrb[0].mxu0
    %v110 = vpop.f32.mrb[0].mxu0
    %v111 = vpop.f32.mrb[0].mxu0
    %112 = vdwg.mxu0
    %vm113 = vcmask 33792
    %114 = vst.msk [vmem:[#allocation2] sm:$0x3] %vm113, %v108
    // Predicated region
    $region14: #{forward.9} parent=1 // pred_check
      _
    $region15: #{forward.9} parent=1 // pred_check_branch
      %116 = sbr.rel (0) target = $region17
    $region16: #{forward.9} parent=1 // pred_region
      %s118 = ssub.s32 32, 32
      %119 = vsyncadd [#allocation3], %s118
      %s121 = sshll.u32 [#allocation2], 4
      %s122 = int_to_ptr.vmem [resolvable:$true] %s121
      %124 = dma.vmem_to_hbm [thread:$0]  %s122, 32, %s3, [#allocation3]
    $region17: #{forward.9} parent=1 // pred_fallthru
      _
    // Predicated region
    $region18: #{forward.9} parent=1 // pred_check
      _
    $region19: #{forward.9} parent=1 // pred_check_branch
      %126 = sbr.rel (0) target = $region21
    $region20: #{forward.9} parent=1 // pred_region
      %127 = dma.done [#allocation3], 32
    $region21: #{forward.9} parent=1 // pred_fallthru
      _
    %128 = vsyncpa [#allocation3], 1

// kernel: forward.5
$region0: #{forward.5}
  #allocation0 [shape = 'u32[]', space=smem, size = 0x4, offset = 0x4, fixed_abs, tag = 'smem constant byte address 0x4 - core index']
  #allocation1 [shape = 'u32[144,128]{1,0:T(1,128)}', space=vmem, size = 0x12000, scoped, tag = 'internal scratch']
  %s0 = inlined_call_operand.vmem [shape: f32[2,8,32], index: 0, kind: input, shape index: {}]
  %s1 = inlined_call_operand.vmem [shape: f32[2,6,48], index: 1, kind: input, shape index: {}]
  %s2 = inlined_call_operand.vmem [shape: f32[1,32], index: 2, kind: input, shape index: {}]
  %s3 = inlined_call_operand.vmem [shape: f32[1,32], index: 3, kind: input, shape index: {}]
  %s4 = inlined_call_operand.vmem [shape: f32[32,64], index: 4, kind: input, shape index: {}]
  %s5 = inlined_call_operand.vmem [shape: f32[1,64], index: 5, kind: input, shape index: {}]
  %s6 = inlined_call_operand.vmem [shape: f32[48,64], index: 6, kind: input, shape index: {}]
  %s7 = inlined_call_operand.vmem [shape: f32[1,64], index: 7, kind: input, shape index: {}]
  %s8 = inlined_call_operand.vmem [shape: f32[2,16,64], index: 8, kind: output, shape index: {}]
  %s9 = sld [smem:[#allocation0]]
  $region65: #{forward.5} parent=0
    _
  %s11 = ssub.s32 1, %s9
  %s12 = scalar_select 0, %s11, %s9
  loop: start=0, step=1, limit=4
  $region2: #{forward.5} parent=0 // loop_pre_header
    _
  $region3: #{forward.5} parent=0 // loop_header
    %s14 = sphi 0, %s18
    %p15 = scmp.ge.s32.totalorder %s14, 4
    %s24 = sphi 0, %s26
    %s27 = sphi 0, %s24
    %s28 = sphi 0, %s27
    %s44 = sphi 0, %s28
    %s50 = sphi 0, %s52
    %s53 = sphi 0, %s50
    %s54 = sphi 0, %s53
    %s70 = sphi 0, %s54
    %s74 = sphi 0, %s74
    %s76 = sphi 0, %s74
    %s77 = sphi 0, %s76
    %s91 = sphi 0, %s77
    %s95 = sphi 0, %s95
    %s97 = sphi 0, %s95
    %s98 = sphi 0, %s97
    %s112 = sphi 0, %s98
    %s116 = sphi 0, %s116
    %s118 = sphi 0, %s116
    %s119 = sphi 0, %s118
    %s133 = sphi 0, %s119
    %s137 = sphi 0, %s137
    %s139 = sphi 0, %s137
    %s140 = sphi 0, %s139
    %s154 = sphi 0, %s140
    %s158 = sphi 0, %s158
    %s160 = sphi 0, %s158
    %s161 = sphi 0, %s160
    %s175 = sphi 0, %s161
    %s179 = sphi 0, %s179
    %s181 = sphi 0, %s179
    %s182 = sphi 0, %s181
    %s196 = sphi 0, %s182
    %s202 = sphi 0, %s204
    %s205 = sphi 0, %s202
    %s206 = sphi 0, %s205
    %s222 = sphi 0, %s206
  $region4: #{forward.5} parent=0 // loop_header_branch
    %17 = sbr.rel (%p15) target = $region8
  $region5: #{forward.5} parent=0 // loop_body
    %s19 = ssub.s32 %s14, 1
    %s20 = ssub.s32 %s14, 2
    %s21 = sadd.s32 %s14, 1
    %s22 = ssub.s32 %s14, %s21
    %p23 = scmp.eq.s32.totalorder %s22, 0
    %s25 = sadd.s32 %s24, 1
    %s26 = scalar_select %p23, %s24, %s25
    %p29 = pneg %p23
    %p30 = scmp.eq.s32.totalorder %s14, 1
    %p31 = por %p29, %p30
    %p32 = scmp.ne.s32.totalorder %s24, %s27
    %p33 = scmp.eq.s32.totalorder %s14, 0
    %p34 = por %p32, %p33
    %p35 = scmp.ne.s32.totalorder %s24, %s27
    %p36 = scmp.eq.s32.totalorder %s19, 1
    %p37 = por %p35, %p36
    %p38 = scmp.ne.s32.totalorder %s27, %s28
    %p39 = scmp.eq.s32.totalorder %s19, 0
    %p40 = por %p38, %p39
    %p41 = scmp.ne.s32.totalorder %s27, %s28
    %p42 = scmp.eq.s32.totalorder %s20, 1
    %p43 = por %p41, %p42
    %p45 = scmp.ne.s32.totalorder %s28, %s44
    %p46 = scmp.eq.s32.totalorder %s20, 0
    %p47 = por %p45, %p46
    %s48 = ssub.s32 %s14, %s21
    %p49 = scmp.eq.s32.totalorder %s48, 0
    %s51 = sadd.s32 %s50, 1
    %s52 = scalar_select %p49, %s50, %s51
    %p55 = pneg %p49
    %p56 = scmp.eq.s32.totalorder %s14, 1
    %p57 = por %p55, %p56
    %p58 = scmp.ne.s32.totalorder %s50, %s53
    %p59 = scmp.eq.s32.totalorder %s14, 0
    %p60 = por %p58, %p59
    %p61 = scmp.ne.s32.totalorder %s50, %s53
    %p62 = scmp.eq.s32.totalorder %s19, 1
    %p63 = por %p61, %p62
    %p64 = scmp.ne.s32.totalorder %s53, %s54
    %p65 = scmp.eq.s32.totalorder %s19, 0
    %p66 = por %p64, %p65
    %p67 = scmp.ne.s32.totalorder %s53, %s54
    %p68 = scmp.eq.s32.totalorder %s20, 1
    %p69 = por %p67, %p68
    %p71 = scmp.ne.s32.totalorder %s54, %s70
    %p72 = scmp.eq.s32.totalorder %s20, 0
    %p73 = por %p71, %p72
    %s75 = sadd.s32 %s74, 1
    %p78 = scmp.eq.s32.totalorder %s14, 1
    %p79 = scmp.ne.s32.totalorder %s74, %s76
    %p80 = scmp.eq.s32.totalorder %s14, 0
    %p81 = por %p79, %p80
    %p82 = scmp.ne.s32.totalorder %s74, %s76
    %p83 = scmp.eq.s32.totalorder %s19, 1
    %p84 = por %p82, %p83
    %p85 = scmp.ne.s32.totalorder %s76, %s77
    %p86 = scmp.eq.s32.totalorder %s19, 0
    %p87 = por %p85, %p86
    %p88 = scmp.ne.s32.totalorder %s76, %s77
    %p89 = scmp.eq.s32.totalorder %s20, 1
    %p90 = por %p88, %p89
    %p92 = scmp.ne.s32.totalorder %s77, %s91
    %p93 = scmp.eq.s32.totalorder %s20, 0
    %p94 = por %p92, %p93
    %s96 = sadd.s32 %s95, 1
    %p99 = scmp.eq.s32.totalorder %s14, 1
    %p100 = scmp.ne.s32.totalorder %s95, %s97
    %p101 = scmp.eq.s32.totalorder %s14, 0
    %p102 = por %p100, %p101
    %p103 = scmp.ne.s32.totalorder %s95, %s97
    %p104 = scmp.eq.s32.totalorder %s19, 1
    %p105 = por %p103, %p104
    %p106 = scmp.ne.s32.totalorder %s97, %s98
    %p107 = scmp.eq.s32.totalorder %s19, 0
    %p108 = por %p106, %p107
    %p109 = scmp.ne.s32.totalorder %s97, %s98
    %p110 = scmp.eq.s32.totalorder %s20, 1
    %p111 = por %p109, %p110
    %p113 = scmp.ne.s32.totalorder %s98, %s112
    %p114 = scmp.eq.s32.totalorder %s20, 0
    %p115 = por %p113, %p114
    %s117 = sadd.s32 %s116, 1
    %p120 = scmp.eq.s32.totalorder %s14, 1
    %p121 = scmp.ne.s32.totalorder %s116, %s118
    %p122 = scmp.eq.s32.totalorder %s14, 0
    %p123 = por %p121, %p122
    %p124 = scmp.ne.s32.totalorder %s116, %s118
    %p125 = scmp.eq.s32.totalorder %s19, 1
    %p126 = por %p124, %p125
    %p127 = scmp.ne.s32.totalorder %s118, %s119
    %p128 = scmp.eq.s32.totalorder %s19, 0
    %p129 = por %p127, %p128
    %p130 = scmp.ne.s32.totalorder %s118, %s119
    %p131 = scmp.eq.s32.totalorder %s20, 1
    %p132 = por %p130, %p131
    %p134 = scmp.ne.s32.totalorder %s119, %s133
    %p135 = scmp.eq.s32.totalorder %s20, 0
    %p136 = por %p134, %p135
    %s138 = sadd.s32 %s137, 1
    %p141 = scmp.eq.s32.totalorder %s14, 1
    %p142 = scmp.ne.s32.totalorder %s137, %s139
    %p143 = scmp.eq.s32.totalorder %s14, 0
    %p144 = por %p142, %p143
    %p145 = scmp.ne.s32.totalorder %s137, %s139
    %p146 = scmp.eq.s32.totalorder %s19, 1
    %p147 = por %p145, %p146
    %p148 = scmp.ne.s32.totalorder %s139, %s140
    %p149 = scmp.eq.s32.totalorder %s19, 0
    %p150 = por %p148, %p149
    %p151 = scmp.ne.s32.totalorder %s139, %s140
    %p152 = scmp.eq.s32.totalorder %s20, 1
    %p153 = por %p151, %p152
    %p155 = scmp.ne.s32.totalorder %s140, %s154
    %p156 = scmp.eq.s32.totalorder %s20, 0
    %p157 = por %p155, %p156
    %s159 = sadd.s32 %s158, 1
    %p162 = scmp.eq.s32.totalorder %s14, 1
    %p163 = scmp.ne.s32.totalorder %s158, %s160
    %p164 = scmp.eq.s32.totalorder %s14, 0
    %p165 = por %p163, %p164
    %p166 = scmp.ne.s32.totalorder %s158, %s160
    %p167 = scmp.eq.s32.totalorder %s19, 1
    %p168 = por %p166, %p167
    %p169 = scmp.ne.s32.totalorder %s160, %s161
    %p170 = scmp.eq.s32.totalorder %s19, 0
    %p171 = por %p169, %p170
    %p172 = scmp.ne.s32.totalorder %s160, %s161
    %p173 = scmp.eq.s32.totalorder %s20, 1
    %p174 = por %p172, %p173
    %p176 = scmp.ne.s32.totalorder %s161, %s175
    %p177 = scmp.eq.s32.totalorder %s20, 0
    %p178 = por %p176, %p177
    %s180 = sadd.s32 %s179, 1
    %p183 = scmp.eq.s32.totalorder %s14, 1
    %p184 = scmp.ne.s32.totalorder %s179, %s181
    %p185 = scmp.eq.s32.totalorder %s14, 0
    %p186 = por %p184, %p185
    %p187 = scmp.ne.s32.totalorder %s179, %s181
    %p188 = scmp.eq.s32.totalorder %s19, 1
    %p189 = por %p187, %p188
    %p190 = scmp.ne.s32.totalorder %s181, %s182
    %p191 = scmp.eq.s32.totalorder %s19, 0
    %p192 = por %p190, %p191
    %p193 = scmp.ne.s32.totalorder %s181, %s182
    %p194 = scmp.eq.s32.totalorder %s20, 1
    %p195 = por %p193, %p194
    %p197 = scmp.ne.s32.totalorder %s182, %s196
    %p198 = scmp.eq.s32.totalorder %s20, 0
    %p199 = por %p197, %p198
    %s200 = ssub.s32 %s14, %s21
    %p201 = scmp.eq.s32.totalorder %s200, 0
    %s203 = sadd.s32 %s202, 1
    %s204 = scalar_select %p201, %s202, %s203
    %p207 = pneg %p201
    %p208 = scmp.eq.s32.totalorder %s14, 1
    %p209 = por %p207, %p208
    %p210 = scmp.ne.s32.totalorder %s202, %s205
    %p211 = scmp.eq.s32.totalorder %s14, 0
    %p212 = por %p210, %p211
    %p213 = scmp.ne.s32.totalorder %s202, %s205
    %p214 = scmp.eq.s32.totalorder %s19, 1
    %p215 = por %p213, %p214
    %p216 = scmp.ne.s32.totalorder %s205, %s206
    %p217 = scmp.eq.s32.totalorder %s19, 0
    %p218 = por %p216, %p217
    %p219 = scmp.ne.s32.totalorder %s205, %s206
    %p220 = scmp.eq.s32.totalorder %s20, 1
    %p221 = por %p219, %p220
    %p223 = scmp.ne.s32.totalorder %s206, %s222
    %p224 = scmp.eq.s32.totalorder %s20, 0
    %p225 = por %p223, %p224
    %p226 = scmp.le.s32.totalorder 1, %s14
    %p227 = scmp.lt.s32.totalorder %s14, 3
    %p228 = pnand %p226, %p227
    %p229 = pneg %p228
    // Predicated region
    $region9: #{forward.5} parent=5 // pred_check
      _
    $region10: #{forward.5} parent=5 // pred_check_branch
      %231 = sbr.rel (%p228) target = $region12
    $region11: #{forward.5} parent=5 // pred_region
      %s232 = ssub.s32 %s14, 1
      // Predicated region
      $region13: #{forward.5} parent=11 // pred_check
        %p233 = pneg %p87
      $region14: #{forward.5} parent=11 // pred_check_branch
        %235 = sbr.rel (%p233) target = $region16
      $region15: #{forward.5} parent=11 // pred_region
        _
      $region16: #{forward.5} parent=11 // pred_fallthru
        _
      // Predicated region
      $region17: #{forward.5} parent=11 // pred_check
        %p236 = pneg %p108
      $region18: #{forward.5} parent=11 // pred_check_branch
        %238 = sbr.rel (%p236) target = $region20
      $region19: #{forward.5} parent=11 // pred_region
        _
      $region20: #{forward.5} parent=11 // pred_fallthru
        _
      // Predicated region
      $region21: #{forward.5} parent=11 // pred_check
        %p239 = pneg %p129
      $region22: #{forward.5} parent=11 // pred_check_branch
        %241 = sbr.rel (%p239) target = $region24
      $region23: #{forward.5} parent=11 // pred_region
        _
      $region24: #{forward.5} parent=11 // pred_fallthru
        _
      // Predicated region
      $region25: #{forward.5} parent=11 // pred_check
        %p242 = pneg %p150
      $region26: #{forward.5} parent=11 // pred_check_branch
        %244 = sbr.rel (%p242) target = $region28
      $region27: #{forward.5} parent=11 // pred_region
        _
      $region28: #{forward.5} parent=11 // pred_fallthru
        _
      // Predicated region
      $region29: #{forward.5} parent=11 // pred_check
        %p245 = pneg %p171
      $region30: #{forward.5} parent=11 // pred_check_branch
        %247 = sbr.rel (%p245) target = $region32
      $region31: #{forward.5} parent=11 // pred_region
        _
      $region32: #{forward.5} parent=11 // pred_fallthru
        _
      // Predicated region
      $region33: #{forward.5} parent=11 // pred_check
        %p248 = pneg %p192
      $region34: #{forward.5} parent=11 // pred_check_branch
        %250 = sbr.rel (%p248) target = $region36
      $region35: #{forward.5} parent=11 // pred_region
        _
      $region36: #{forward.5} parent=11 // pred_fallthru
        _
    $region12: #{forward.5} parent=5 // pred_fallthru
      _
    %p251 = scmp.lt.s32.totalorder %s14, 2
    // Predicated region
    $region37: #{forward.5} parent=5 // pred_check
      %p252 = pneg %p251
    $region38: #{forward.5} parent=5 // pred_check_branch
      %254 = sbr.rel (%p252) target = $region40
    $region39: #{forward.5} parent=5 // pred_region
      // Predicated region
      $region41: #{forward.5} parent=39 // pred_check
        %p255 = pneg %p34
      $region42: #{forward.5} parent=39 // pred_check_branch
        %257 = sbr.rel (%p255) target = $region44
      $region43: #{forward.5} parent=39 // pred_region
        %p258 = scmp.lt.s32.totalorder %s14, 1
        %s259 = scalar_select %p258, %s14, 1
        %s260 = smul.addr %s259, 8
        %s261 = scalar_lea.vmem %s0, %s260
      $region44: #{forward.5} parent=39 // pred_fallthru
        _
      // Predicated region
      $region45: #{forward.5} parent=39 // pred_check
        %p262 = pneg %p60
      $region46: #{forward.5} parent=39 // pred_check_branch
        %264 = sbr.rel (%p262) target = $region48
      $region47: #{forward.5} parent=39 // pred_region
        %p265 = scmp.lt.s32.totalorder %s14, 1
        %s266 = scalar_select %p265, %s14, 1
        %s267 = smul.addr %s266, 8
        %s268 = scalar_lea.vmem %s1, %s267
      $region48: #{forward.5} parent=39 // pred_fallthru
        _
    $region40: #{forward.5} parent=5 // pred_fallthru
      _
    %p269 = scmp.le.s32.totalorder 1, %s14
    %p270 = scmp.lt.s32.totalorder %s14, 3
    %p271 = pnand %p269, %p270
    %p272 = pneg %p271
    // Predicated region
    $region49: #{forward.5} parent=5 // pred_check
      _
    $region50: #{forward.5} parent=5 // pred_check_branch
      %274 = sbr.rel (%p271) target = $region52
    $region51: #{forward.5} parent=5 // pred_region
      %s275 = ssub.s32 %s14, 1
      %p276 = scmp.lt.s32.totalorder %s19, 1
      %s277 = scalar_select %p276, %s19, 1
      %s278 = smul.addr %s277, 8
      %s279 = scalar_lea.vmem %s0, %s278
      %p280 = pneg %p40
      %p281 = pneg %p37
      %p282 = scmp.lt.s32.totalorder %s19, 1
      %s283 = scalar_select %p282, %s19, 1
      %s284 = smul.addr %s283, 8
      %s285 = scalar_lea.vmem %s1, %s284
      %p286 = pneg %p66
      %p287 = pneg %p63
      %p288 = pneg %p87
      %p289 = pneg %p84
      %p290 = pneg %p108
      %p291 = pneg %p105
      %p292 = pneg %p129
      %p293 = pneg %p126
      %p294 = pneg %p150
      %p295 = pneg %p147
      %p296 = pneg %p171
      %p297 = pneg %p168
      %p298 = pneg %p192
      %p299 = pneg %p189
      %p300 = pneg %p218
      %p301 = pneg %p215
      %p302 = scmp.lt.s32.totalorder %s19, 1
      %s303 = scalar_select %p302, %s19, 1
      %s304 = smul.addr %s303, 2
      %s305 = smul.addr %s304, 8
      %s306 = scalar_lea.vmem %s8, %s305
      %p307 = scmp.lt.s32.totalorder %s19, 1
      %s308 = scalar_select %p307, %s19, 1
      %s309 = smul.addr %s308, 8
      %s310 = scalar_lea.vmem %s0, %s309
      %p311 = scmp.lt.s32.totalorder %s19, 1
      %s312 = scalar_select %p311, %s19, 1
      %s313 = smul.addr %s312, 8
      %s314 = scalar_lea.vmem %s1, %s313
      %p315 = scmp.lt.s32.totalorder %s19, 1
      %s316 = scalar_select %p315, %s19, 1
      %s317 = smul.addr %s316, 2
      %s318 = smul.addr %s317, 8
      %s319 = scalar_lea.vmem %s8, %s318
      %v321 = vld [vmem:[%s310] sm:$0xff]
      %v322 = vld [vmem:[%s2] sm:$0x1]
      %v323 = vld [vmem:[%s3] sm:$0x1]
      %vm324 = vcmask 261120
      %v325 = vsel %vm324, %v321, 0.0
      %326 = vadd.xlane.f32.xlu0 %v325
      %v327 = vpop.xlane.xlu0 %326
      %v328 = vrcp.pop 32.0
      %v329 = vmul.f32 %v327, %v328
      %v330 = vsub.f32 %v321, %v329
      %v331 = vmul.f32 %v330, %v330
      %v332 = vsel %vm324, %v331, 0.0
      %333 = vadd.xlane.f32.xlu0 %v332
      %v334 = vpop.xlane.xlu0 %333
      %v335 = vmul.f32 %v334, %v328
      %v336 = vadd.f32 %v335, 1e-12
      %v337 = vrsqrt.pop %v336
      %v338 = vmul.f32 %v330, %v337
      %v340 = vlaneseq
      %v341 = vshrl.u32 %v340, 7
      %v342 = vsub.s32 0, %v341
      %v343 = vrot.slane %v322, %v342
      %v345 = vmul.f32 %v338, %v343
      %v347 = vlaneseq
      %v348 = vshrl.u32 %v347, 7
      %v349 = vsub.s32 0, %v348
      %v350 = vrot.slane %v323, %v349
      %v352 = vadd.f32 %v345, %v350
      %v353 = vld [vmem:[%s4] sm:$0xff]
      %v354 = vld [vmem:[%s4 + $0x8] sm:$0xff]
      %v355 = vld [vmem:[%s4 + $0x10] sm:$0xff]
      %v356 = vld [vmem:[%s4 + $0x18] sm:$0xff]
      %v357 = vpack.c.bf16 %v352, %v352
      %v358 = vpack.c.bf16 %v354, %v353
      %v359 = vpack.c.bf16 %v356, %v355
      %v360 = vld [vmem:[%s5] sm:$0x1]
      %v362 = vlaneseq
      %v363 = vshrl.u32 %v362, 7
      %v364 = vsub.s32 0, %v363
      %v365 = vrot.slane %v360, %v364
      %v368 = vsel %vm324, %v357, 0
      %370 = vmatprep.subr.bf16.mxu0 0
      %371 = vmatpush1.bf16.msra.mxu0 %v358
      %372 = vmatprep.subr.bf16.mxu0 0
      %373 = vmatpush1.bf16.msra.mxu0 %v359
      %374 = vmatprep.subr.bf16.mxu0 0
      %375 = vmatpush1.bf16.msra.mxu0 0
      %376 = vmatprep.subr.bf16.mxu0 0
      %377 = vmatpush1.bf16.msra.mxu0 0
      %378 = vmatprep.subr.bf16.mxu0 0
      %379 = vmatpush1.bf16.msra.mxu0 0
      %380 = vmatprep.subr.bf16.mxu0 0
      %381 = vmatpush1.bf16.msra.mxu0 0
      %382 = vmatprep.subr.bf16.mxu0 0
      %383 = vmatpush1.bf16.msra.mxu0 0
      %384 = vmatprep.subr.bf16.mxu0 0
      %385 = vmatpush1.bf16.msra.mxu0 0
      %386 = vmatprep.subr.bf16.mxu0 0
      %387 = vmatpush1.bf16.msra.mxu0 0
      %388 = vmatprep.subr.bf16.mxu0 0
      %389 = vmatpush1.bf16.msra.mxu0 0
      %390 = vmatprep.subr.bf16.mxu0 0
      %391 = vmatpush1.bf16.msra.mxu0 0
      %392 = vmatprep.subr.bf16.mxu0 0
      %393 = vmatpush1.bf16.msra.mxu0 0
      %394 = vmatprep.subr.bf16.mxu0 0
      %395 = vmatpush1.bf16.msra.mxu0 0
      %396 = vmatprep.subr.bf16.mxu0 0
      %397 = vmatpush1.bf16.msra.mxu0 0
      %398 = vmatprep.subr.bf16.mxu0 0
      %399 = vmatpush1.bf16.msra.mxu0 0
      %400 = vmatprep.subr.bf16.mxu0 0
      %401 = vmatpush1.bf16.msra.mxu0 0
      %402 = vmatprep.mubr.bf16.mxu0 0
      %403 = vmatmul.mubr.bf16.gmra.mrb[0].mxu0 %v368
      %v404 = vpop.f32.mrb[0].mxu0
      %v405 = vadd.f32 %v365, %v404
      %v406 = vpop.f32.mrb[0].mxu0
      %v407 = vpop.f32.mrb[0].mxu0
      %v408 = vpop.f32.mrb[0].mxu0
      %409 = vdwg.mxu0
      %v410 = vld [vmem:[%s314] sm:$0x3f]
      %v411 = vld [vmem:[%s6] sm:$0xff]
      %v412 = vld [vmem:[%s6 + $0x8] sm:$0xff]
      %v413 = vld [vmem:[%s6 + $0x10] sm:$0xff]
      %v414 = vld [vmem:[%s6 + $0x18] sm:$0xff]
      %v415 = vld [vmem:[%s6 + $0x20] sm:$0xff]
      %v416 = vld [vmem:[%s6 + $0x28] sm:$0xff]
      %v417 = vpack.c.bf16 %v410, %v410
      %v418 = vpack.c.bf16 %v412, %v411
      %v419 = vpack.c.bf16 %v414, %v413
      %v420 = vpack.c.bf16 %v416, %v415
      %v421 = vld [vmem:[%s7] sm:$0x1]
      %v423 = vlaneseq
      %v424 = vshrl.u32 %v423, 7
      %v425 = vsub.s32 0, %v424
      %v426 = vrot.slane %v421, %v425
      %vm428 = vcmask 392192
      %v430 = vsel %vm428, %v417, 0
      %432 = vmatprep.subr.bf16.mxu0 0
      %433 = vmatpush1.bf16.msra.mxu0 %v418
      %434 = vmatprep.subr.bf16.mxu0 0
      %435 = vmatpush1.bf16.msra.mxu0 %v419
      %436 = vmatprep.subr.bf16.mxu0 0
      %437 = vmatpush1.bf16.msra.mxu0 %v420
      %438 = vmatprep.subr.bf16.mxu0 0
      %439 = vmatpush1.bf16.msra.mxu0 0
      %440 = vmatprep.subr.bf16.mxu0 0
      %441 = vmatpush1.bf16.msra.mxu0 0
      %442 = vmatprep.subr.bf16.mxu0 0
      %443 = vmatpush1.bf16.msra.mxu0 0
      %444 = vmatprep.subr.bf16.mxu0 0
      %445 = vmatpush1.bf16.msra.mxu0 0
      %446 = vmatprep.subr.bf16.mxu0 0
      %447 = vmatpush1.bf16.msra.mxu0 0
      %448 = vmatprep.subr.bf16.mxu0 0
      %449 = vmatpush1.bf16.msra.mxu0 0
      %450 = vmatprep.subr.bf16.mxu0 0
      %451 = vmatpush1.bf16.msra.mxu0 0
      %452 = vmatprep.subr.bf16.mxu0 0
      %453 = vmatpush1.bf16.msra.mxu0 0
      %454 = vmatprep.subr.bf16.mxu0 0
      %455 = vmatpush1.bf16.msra.mxu0 0
      %456 = vmatprep.subr.bf16.mxu0 0
      %457 = vmatpush1.bf16.msra.mxu0 0
      %458 = vmatprep.subr.bf16.mxu0 0
      %459 = vmatpush1.bf16.msra.mxu0 0
      %460 = vmatprep.subr.bf16.mxu0 0
      %461 = vmatpush1.bf16.msra.mxu0 0
      %462 = vmatprep.subr.bf16.mxu0 0
      %463 = vmatpush1.bf16.msra.mxu0 0
      %464 = vmatprep.mubr.bf16.mxu0 0
      %465 = vmatmul.mubr.bf16.gmra.mrb[0].mxu0 %v430
      %v466 = vpop.f32.mrb[0].mxu0
      %v467 = vadd.f32 %v426, %v466
      %v468 = vpop.f32.mrb[0].mxu0
      %v469 = vpop.f32.mrb[0].mxu0
      %v470 = vpop.f32.mrb[0].mxu0
      %471 = vdwg.mxu0
      %vm472 = vcmask 523264
      %473 = vst.msk [vmem:[%s319] sm:$0xff] %vm472, 0.0
      %474 = vst.msk [vmem:[%s319 + $0x8] sm:$0xff] %vm472, 0.0
      %475 = vst.msk [vmem:[%s319] sm:$0xff] %vm472, %v405
      %vm476 = vcmask 521216
      %477 = vst.msk [vmem:[%s319 + $0x8] sm:$0x3f] %vm476, %v467
      %p478 = scmp.lt.s32.totalorder %s19, 1
      %s479 = scalar_select %p478, %s19, 1
      %s480 = smul.addr %s479, 2
      %s481 = smul.addr %s480, 8
      %s482 = scalar_lea.vmem %s8, %s481
      // Predicated region
      $region53: #{forward.5} parent=51 // pred_check
        %p483 = pneg %p215
      $region54: #{forward.5} parent=51 // pred_check_branch
        %485 = sbr.rel (%p483) target = $region56
      $region55: #{forward.5} parent=51 // pred_region
        _
      $region56: #{forward.5} parent=51 // pred_fallthru
        _
    $region52: #{forward.5} parent=5 // pred_fallthru
      _
    %p486 = scmp.le.s32.totalorder 2, %s14
    // Predicated region
    $region57: #{forward.5} parent=5 // pred_check
      %p487 = pneg %p486
    $region58: #{forward.5} parent=5 // pred_check_branch
      %489 = sbr.rel (%p487) target = $region60
    $region59: #{forward.5} parent=5 // pred_region
      %s490 = ssub.s32 %s14, 2
      // Predicated region
      $region61: #{forward.5} parent=59 // pred_check
        %p491 = pneg %p221
      $region62: #{forward.5} parent=59 // pred_check_branch
        %493 = sbr.rel (%p491) target = $region64
      $region63: #{forward.5} parent=59 // pred_region
        %p494 = scmp.lt.s32.totalorder %s20, 1
        %s495 = scalar_select %p494, %s20, 1
        %s496 = smul.addr %s495, 2
        %s497 = smul.addr %s496, 8
        %s498 = scalar_lea.vmem %s8, %s497
      $region64: #{forward.5} parent=59 // pred_fallthru
        _
    $region60: #{forward.5} parent=5 // pred_fallthru
      _
  $region6: #{forward.5} parent=0 // loop_footer
    %s18 = sadd.s32 1, %s14
  $region7: #{forward.5} parent=0 // loop_footer_branch
    %13 = sbr.rel target = $region3
  $region8: #{forward.5} parent=0 // loop_exit
    _

// kernel: forward.6
$region0: #{forward.6}
  #allocation0 [shape = 'u32[]', space=smem, size = 0x4, offset = 0x4, fixed_abs, tag = 'smem constant byte address 0x4 - core index']
  #allocation1 [shape = 'u32[144,128]{1,0:T(1,128)}', space=vmem, size = 0x12000, scoped, tag = 'internal scratch']
  %s0 = inlined_call_operand.vmem [shape: f32[2,16,64], index: 0, kind: input, shape index: {}]
  %s1 = inlined_call_operand.vmem [shape: f32[2,16,64], index: 1, kind: input, shape index: {}]
  %s2 = inlined_call_operand.vmem [shape: f32[2,1,16], index: 2, kind: input, shape index: {}]
  %s3 = inlined_call_operand.vmem [shape: f32[1,64], index: 3, kind: input, shape index: {}]
  %s4 = inlined_call_operand.vmem [shape: f32[1,64], index: 4, kind: input, shape index: {}]
  %s5 = inlined_call_operand.vmem [shape: f32[1,64], index: 5, kind: input, shape index: {}]
  %s6 = inlined_call_operand.vmem [shape: f32[1,64], index: 6, kind: input, shape index: {}]
  %s7 = inlined_call_operand.vmem [shape: f32[1,64,16], index: 7, kind: input, shape index: {}]
  %s8 = inlined_call_operand.vmem [shape: f32[1,64,16], index: 8, kind: input, shape index: {}]
  %s9 = inlined_call_operand.vmem [shape: f32[1,64,16], index: 9, kind: input, shape index: {}]
  %s10 = inlined_call_operand.vmem [shape: f32[1,16,64], index: 10, kind: input, shape index: {}]
  %s11 = inlined_call_operand.vmem [shape: f32[1,64], index: 11, kind: input, shape index: {}]
  %s12 = inlined_call_operand.vmem [shape: f32[1,64], index: 12, kind: input, shape index: {}]
  %s13 = inlined_call_operand.vmem [shape: f32[1,64], index: 13, kind: input, shape index: {}]
  %s14 = inlined_call_operand.vmem [shape: f32[64,256], index: 14, kind: input, shape index: {}]
  %s15 = inlined_call_operand.vmem [shape: f32[1,256], index: 15, kind: input, shape index: {}]
  %s16 = inlined_call_operand.vmem [shape: f32[64,256], index: 16, kind: input, shape index: {}]
  %s17 = inlined_call_operand.vmem [shape: f32[1,256], index: 17, kind: input, shape index: {}]
  %s18 = inlined_call_operand.vmem [shape: f32[256,64], index: 18, kind: input, shape index: {}]
  %s19 = inlined_call_operand.vmem [shape: f32[1,64], index: 19, kind: input, shape index: {}]
  %s20 = inlined_call_operand.vmem [shape: f32[2,16,64], index: 20, kind: output, shape index: {}]
  %s21 = sld [smem:[#allocation0]]
  $region113: #{forward.6} parent=0
    _
  %s23 = ssub.s32 1, %s21
  %s24 = scalar_select 0, %s23, %s21
  loop: start=0, step=1, limit=4
  $region2: #{forward.6} parent=0 // loop_pre_header
    _
  $region3: #{forward.6} parent=0 // loop_header
    %s26 = sphi 0, %s30
    %p27 = scmp.ge.s32.totalorder %s26, 4
    %s36 = sphi 0, %s38
    %s39 = sphi 0, %s36
    %s40 = sphi 0, %s39
    %s56 = sphi 0, %s40
    %s62 = sphi 0, %s64
    %s65 = sphi 0, %s62
    %s66 = sphi 0, %s65
    %s82 = sphi 0, %s66
    %s88 = sphi 0, %s90
    %s91 = sphi 0, %s88
    %s92 = sphi 0, %s91
    %s108 = sphi 0, %s92
    %s112 = sphi 0, %s112
    %s114 = sphi 0, %s112
    %s115 = sphi 0, %s114
    %s129 = sphi 0, %s115
    %s133 = sphi 0, %s133
    %s135 = sphi 0, %s133
    %s136 = sphi 0, %s135
    %s150 = sphi 0, %s136
    %s154 = sphi 0, %s154
    %s156 = sphi 0, %s154
    %s157 = sphi 0, %s156
    %s171 = sphi 0, %s157
    %s175 = sphi 0, %s175
    %s177 = sphi 0, %s175
    %s178 = sphi 0, %s177
    %s192 = sphi 0, %s178
    %s196 = sphi 0, %s196
    %s198 = sphi 0, %s196
    %s199 = sphi 0, %s198
    %s213 = sphi 0, %s199
    %s217 = sphi 0, %s217
    %s219 = sphi 0, %s217
    %s220 = sphi 0, %s219
    %s234 = sphi 0, %s220
    %s238 = sphi 0, %s238
    %s240 = sphi 0, %s238
    %s241 = sphi 0, %s240
    %s255 = sphi 0, %s241
    %s259 = sphi 0, %s259
    %s261 = sphi 0, %s259
    %s262 = sphi 0, %s261
    %s276 = sphi 0, %s262
    %s280 = sphi 0, %s280
    %s282 = sphi 0, %s280
    %s283 = sphi 0, %s282
    %s297 = sphi 0, %s283
    %s301 = sphi 0, %s301
    %s303 = sphi 0, %s301
    %s304 = sphi 0, %s303
    %s318 = sphi 0, %s304
    %s322 = sphi 0, %s322
    %s324 = sphi 0, %s322
    %s325 = sphi 0, %s324
    %s339 = sphi 0, %s325
    %s343 = sphi 0, %s343
    %s345 = sphi 0, %s343
    %s346 = sphi 0, %s345
    %s360 = sphi 0, %s346
    %s364 = sphi 0, %s364
    %s366 = sphi 0, %s364
    %s367 = sphi 0, %s366
    %s381 = sphi 0, %s367
    %s385 = sphi 0, %s385
    %s387 = sphi 0, %s385
    %s388 = sphi 0, %s387
    %s402 = sphi 0, %s388
    %s406 = sphi 0, %s406
    %s408 = sphi 0, %s406
    %s409 = sphi 0, %s408
    %s423 = sphi 0, %s409
    %s427 = sphi 0, %s427
    %s429 = sphi 0, %s427
    %s430 = sphi 0, %s429
    %s444 = sphi 0, %s430
    %s448 = sphi 0, %s448
    %s450 = sphi 0, %s448
    %s451 = sphi 0, %s450
    %s465 = sphi 0, %s451
    %s471 = sphi 0, %s473
    %s474 = sphi 0, %s471
    %s475 = sphi 0, %s474
    %s491 = sphi 0, %s475
  $region4: #{forward.6} parent=0 // loop_header_branch
    %29 = sbr.rel (%p27) target = $region8
  $region5: #{forward.6} parent=0 // loop_body
    %s31 = ssub.s32 %s26, 1
    %s32 = ssub.s32 %s26, 2
    %s33 = sadd.s32 %s26, 1
    %s34 = ssub.s32 %s26, %s33
    %p35 = scmp.eq.s32.totalorder %s34, 0
    %s37 = sadd.s32 %s36, 1
    %s38 = scalar_select %p35, %s36, %s37
    %p41 = pneg %p35
    %p42 = scmp.eq.s32.totalorder %s26, 1
    %p43 = por %p41, %p42
    %p44 = scmp.ne.s32.totalorder %s36, %s39
    %p45 = scmp.eq.s32.totalorder %s26, 0
    %p46 = por %p44, %p45
    %p47 = scmp.ne.s32.totalorder %s36, %s39
    %p48 = scmp.eq.s32.totalorder %s31, 1
    %p49 = por %p47, %p48
    %p50 = scmp.ne.s32.totalorder %s39, %s40
    %p51 = scmp.eq.s32.totalorder %s31, 0
    %p52 = por %p50, %p51
    %p53 = scmp.ne.s32.totalorder %s39, %s40
    %p54 = scmp.eq.s32.totalorder %s32, 1
    %p55 = por %p53, %p54
    %p57 = scmp.ne.s32.totalorder %s40, %s56
    %p58 = scmp.eq.s32.totalorder %s32, 0
    %p59 = por %p57, %p58
    %s60 = ssub.s32 %s26, %s33
    %p61 = scmp.eq.s32.totalorder %s60, 0
    %s63 = sadd.s32 %s62, 1
    %s64 = scalar_select %p61, %s62, %s63
    %p67 = pneg %p61
    %p68 = scmp.eq.s32.totalorder %s26, 1
    %p69 = por %p67, %p68
    %p70 = scmp.ne.s32.totalorder %s62, %s65
    %p71 = scmp.eq.s32.totalorder %s26, 0
    %p72 = por %p70, %p71
    %p73 = scmp.ne.s32.totalorder %s62, %s65
    %p74 = scmp.eq.s32.totalorder %s31, 1
    %p75 = por %p73, %p74
    %p76 = scmp.ne.s32.totalorder %s65, %s66
    %p77 = scmp.eq.s32.totalorder %s31, 0
    %p78 = por %p76, %p77
    %p79 = scmp.ne.s32.totalorder %s65, %s66
    %p80 = scmp.eq.s32.totalorder %s32, 1
    %p81 = por %p79, %p80
    %p83 = scmp.ne.s32.totalorder %s66, %s82
    %p84 = scmp.eq.s32.totalorder %s32, 0
    %p85 = por %p83, %p84
    %s86 = ssub.s32 %s26, %s33
    %p87 = scmp.eq.s32.totalorder %s86, 0
    %s89 = sadd.s32 %s88, 1
    %s90 = scalar_select %p87, %s88, %s89
    %p93 = pneg %p87
    %p94 = scmp.eq.s32.totalorder %s26, 1
    %p95 = por %p93, %p94
    %p96 = scmp.ne.s32.totalorder %s88, %s91
    %p97 = scmp.eq.s32.totalorder %s26, 0
    %p98 = por %p96, %p97
    %p99 = scmp.ne.s32.totalorder %s88, %s91
    %p100 = scmp.eq.s32.totalorder %s31, 1
    %p101 = por %p99, %p100
    %p102 = scmp.ne.s32.totalorder %s91, %s92
    %p103 = scmp.eq.s32.totalorder %s31, 0
    %p104 = por %p102, %p103
    %p105 = scmp.ne.s32.totalorder %s91, %s92
    %p106 = scmp.eq.s32.totalorder %s32, 1
    %p107 = por %p105, %p106
    %p109 = scmp.ne.s32.totalorder %s92, %s108
    %p110 = scmp.eq.s32.totalorder %s32, 0
    %p111 = por %p109, %p110
    %s113 = sadd.s32 %s112, 1
    %p116 = scmp.eq.s32.totalorder %s26, 1
    %p117 = scmp.ne.s32.totalorder %s112, %s114
    %p118 = scmp.eq.s32.totalorder %s26, 0
    %p119 = por %p117, %p118
    %p120 = scmp.ne.s32.totalorder %s112, %s114
    %p121 = scmp.eq.s32.totalorder %s31, 1
    %p122 = por %p120, %p121
    %p123 = scmp.ne.s32.totalorder %s114, %s115
    %p124 = scmp.eq.s32.totalorder %s31, 0
    %p125 = por %p123, %p124
    %p126 = scmp.ne.s32.totalorder %s114, %s115
    %p127 = scmp.eq.s32.totalorder %s32, 1
    %p128 = por %p126, %p127
    %p130 = scmp.ne.s32.totalorder %s115, %s129
    %p131 = scmp.eq.s32.totalorder %s32, 0
    %p132 = por %p130, %p131
    %s134 = sadd.s32 %s133, 1
    %p137 = scmp.eq.s32.totalorder %s26, 1
    %p138 = scmp.ne.s32.totalorder %s133, %s135
    %p139 = scmp.eq.s32.totalorder %s26, 0
    %p140 = por %p138, %p139
    %p141 = scmp.ne.s32.totalorder %s133, %s135
    %p142 = scmp.eq.s32.totalorder %s31, 1
    %p143 = por %p141, %p142
    %p144 = scmp.ne.s32.totalorder %s135, %s136
    %p145 = scmp.eq.s32.totalorder %s31, 0
    %p146 = por %p144, %p145
    %p147 = scmp.ne.s32.totalorder %s135, %s136
    %p148 = scmp.eq.s32.totalorder %s32, 1
    %p149 = por %p147, %p148
    %p151 = scmp.ne.s32.totalorder %s136, %s150
    %p152 = scmp.eq.s32.totalorder %s32, 0
    %p153 = por %p151, %p152
    %s155 = sadd.s32 %s154, 1
    %p158 = scmp.eq.s32.totalorder %s26, 1
    %p159 = scmp.ne.s32.totalorder %s154, %s156
    %p160 = scmp.eq.s32.totalorder %s26, 0
    %p161 = por %p159, %p160
    %p162 = scmp.ne.s32.totalorder %s154, %s156
    %p163 = scmp.eq.s32.totalorder %s31, 1
    %p164 = por %p162, %p163
    %p165 = scmp.ne.s32.totalorder %s156, %s157
    %p166 = scmp.eq.s32.totalorder %s31, 0
    %p167 = por %p165, %p166
    %p168 = scmp.ne.s32.totalorder %s156, %s157
    %p169 = scmp.eq.s32.totalorder %s32, 1
    %p170 = por %p168, %p169
    %p172 = scmp.ne.s32.totalorder %s157, %s171
    %p173 = scmp.eq.s32.totalorder %s32, 0
    %p174 = por %p172, %p173
    %s176 = sadd.s32 %s175, 1
    %p179 = scmp.eq.s32.totalorder %s26, 1
    %p180 = scmp.ne.s32.totalorder %s175, %s177
    %p181 = scmp.eq.s32.totalorder %s26, 0
    %p182 = por %p180, %p181
    %p183 = scmp.ne.s32.totalorder %s175, %s177
    %p184 = scmp.eq.s32.totalorder %s31, 1
    %p185 = por %p183, %p184
    %p186 = scmp.ne.s32.totalorder %s177, %s178
    %p187 = scmp.eq.s32.totalorder %s31, 0
    %p188 = por %p186, %p187
    %p189 = scmp.ne.s32.totalorder %s177, %s178
    %p190 = scmp.eq.s32.totalorder %s32, 1
    %p191 = por %p189, %p190
    %p193 = scmp.ne.s32.totalorder %s178, %s192
    %p194 = scmp.eq.s32.totalorder %s32, 0
    %p195 = por %p193, %p194
    %s197 = sadd.s32 %s196, 1
    %p200 = scmp.eq.s32.totalorder %s26, 1
    %p201 = scmp.ne.s32.totalorder %s196, %s198
    %p202 = scmp.eq.s32.totalorder %s26, 0
    %p203 = por %p201, %p202
    %p204 = scmp.ne.s32.totalorder %s196, %s198
    %p205 = scmp.eq.s32.totalorder %s31, 1
    %p206 = por %p204, %p205
    %p207 = scmp.ne.s32.totalorder %s198, %s199
    %p208 = scmp.eq.s32.totalorder %s31, 0
    %p209 = por %p207, %p208
    %p210 = scmp.ne.s32.totalorder %s198, %s199
    %p211 = scmp.eq.s32.totalorder %s32, 1
    %p212 = por %p210, %p211
    %p214 = scmp.ne.s32.totalorder %s199, %s213
    %p215 = scmp.eq.s32.totalorder %s32, 0
    %p216 = por %p214, %p215
    %s218 = sadd.s32 %s217, 1
    %p221 = scmp.eq.s32.totalorder %s26, 1
    %p222 = scmp.ne.s32.totalorder %s217, %s219
    %p223 = scmp.eq.s32.totalorder %s26, 0
    %p224 = por %p222, %p223
    %p225 = scmp.ne.s32.totalorder %s217, %s219
    %p226 = scmp.eq.s32.totalorder %s31, 1
    %p227 = por %p225, %p226
    %p228 = scmp.ne.s32.totalorder %s219, %s220
    %p229 = scmp.eq.s32.totalorder %s31, 0
    %p230 = por %p228, %p229
    %p231 = scmp.ne.s32.totalorder %s219, %s220
    %p232 = scmp.eq.s32.totalorder %s32, 1
    %p233 = por %p231, %p232
    %p235 = scmp.ne.s32.totalorder %s220, %s234
    %p236 = scmp.eq.s32.totalorder %s32, 0
    %p237 = por %p235, %p236
    %s239 = sadd.s32 %s238, 1
    %p242 = scmp.eq.s32.totalorder %s26, 1
    %p243 = scmp.ne.s32.totalorder %s238, %s240
    %p244 = scmp.eq.s32.totalorder %s26, 0
    %p245 = por %p243, %p244
    %p246 = scmp.ne.s32.totalorder %s238, %s240
    %p247 = scmp.eq.s32.totalorder %s31, 1
    %p248 = por %p246, %p247
    %p249 = scmp.ne.s32.totalorder %s240, %s241
    %p250 = scmp.eq.s32.totalorder %s31, 0
    %p251 = por %p249, %p250
    %p252 = scmp.ne.s32.totalorder %s240, %s241
    %p253 = scmp.eq.s32.totalorder %s32, 1
    %p254 = por %p252, %p253
    %p256 = scmp.ne.s32.totalorder %s241, %s255
    %p257 = scmp.eq.s32.totalorder %s32, 0
    %p258 = por %p256, %p257
    %s260 = sadd.s32 %s259, 1
    %p263 = scmp.eq.s32.totalorder %s26, 1
    %p264 = scmp.ne.s32.totalorder %s259, %s261
    %p265 = scmp.eq.s32.totalorder %s26, 0
    %p266 = por %p264, %p265
    %p267 = scmp.ne.s32.totalorder %s259, %s261
    %p268 = scmp.eq.s32.totalorder %s31, 1
    %p269 = por %p267, %p268
    %p270 = scmp.ne.s32.totalorder %s261, %s262
    %p271 = scmp.eq.s32.totalorder %s31, 0
    %p272 = por %p270, %p271
    %p273 = scmp.ne.s32.totalorder %s261, %s262
    %p274 = scmp.eq.s32.totalorder %s32, 1
    %p275 = por %p273, %p274
    %p277 = scmp.ne.s32.totalorder %s262, %s276
    %p278 = scmp.eq.s32.totalorder %s32, 0
    %p279 = por %p277, %p278
    %s281 = sadd.s32 %s280, 1
    %p284 = scmp.eq.s32.totalorder %s26, 1
    %p285 = scmp.ne.s32.totalorder %s280, %s282
    %p286 = scmp.eq.s32.totalorder %s26, 0
    %p287 = por %p285, %p286
    %p288 = scmp.ne.s32.totalorder %s280, %s282
    %p289 = scmp.eq.s32.totalorder %s31, 1
    %p290 = por %p288, %p289
    %p291 = scmp.ne.s32.totalorder %s282, %s283
    %p292 = scmp.eq.s32.totalorder %s31, 0
    %p293 = por %p291, %p292
    %p294 = scmp.ne.s32.totalorder %s282, %s283
    %p295 = scmp.eq.s32.totalorder %s32, 1
    %p296 = por %p294, %p295
    %p298 = scmp.ne.s32.totalorder %s283, %s297
    %p299 = scmp.eq.s32.totalorder %s32, 0
    %p300 = por %p298, %p299
    %s302 = sadd.s32 %s301, 1
    %p305 = scmp.eq.s32.totalorder %s26, 1
    %p306 = scmp.ne.s32.totalorder %s301, %s303
    %p307 = scmp.eq.s32.totalorder %s26, 0
    %p308 = por %p306, %p307
    %p309 = scmp.ne.s32.totalorder %s301, %s303
    %p310 = scmp.eq.s32.totalorder %s31, 1
    %p311 = por %p309, %p310
    %p312 = scmp.ne.s32.totalorder %s303, %s304
    %p313 = scmp.eq.s32.totalorder %s31, 0
    %p314 = por %p312, %p313
    %p315 = scmp.ne.s32.totalorder %s303, %s304
    %p316 = scmp.eq.s32.totalorder %s32, 1
    %p317 = por %p315, %p316
    %p319 = scmp.ne.s32.totalorder %s304, %s318
    %p320 = scmp.eq.s32.totalorder %s32, 0
    %p321 = por %p319, %p320
    %s323 = sadd.s32 %s322, 1
    %p326 = scmp.eq.s32.totalorder %s26, 1
    %p327 = scmp.ne.s32.totalorder %s322, %s324
    %p328 = scmp.eq.s32.totalorder %s26, 0
    %p329 = por %p327, %p328
    %p330 = scmp.ne.s32.totalorder %s322, %s324
    %p331 = scmp.eq.s32.totalorder %s31, 1
    %p332 = por %p330, %p331
    %p333 = scmp.ne.s32.totalorder %s324, %s325
    %p334 = scmp.eq.s32.totalorder %s31, 0
    %p335 = por %p333, %p334
    %p336 = scmp.ne.s32.totalorder %s324, %s325
    %p337 = scmp.eq.s32.totalorder %s32, 1
    %p338 = por %p336, %p337
    %p340 = scmp.ne.s32.totalorder %s325, %s339
    %p341 = scmp.eq.s32.totalorder %s32, 0
    %p342 = por %p340, %p341
    %s344 = sadd.s32 %s343, 1
    %p347 = scmp.eq.s32.totalorder %s26, 1
    %p348 = scmp.ne.s32.totalorder %s343, %s345
    %p349 = scmp.eq.s32.totalorder %s26, 0
    %p350 = por %p348, %p349
    %p351 = scmp.ne.s32.totalorder %s343, %s345
    %p352 = scmp.eq.s32.totalorder %s31, 1
    %p353 = por %p351, %p352
    %p354 = scmp.ne.s32.totalorder %s345, %s346
    %p355 = scmp.eq.s32.totalorder %s31, 0
    %p356 = por %p354, %p355
    %p357 = scmp.ne.s32.totalorder %s345, %s346
    %p358 = scmp.eq.s32.totalorder %s32, 1
    %p359 = por %p357, %p358
    %p361 = scmp.ne.s32.totalorder %s346, %s360
    %p362 = scmp.eq.s32.totalorder %s32, 0
    %p363 = por %p361, %p362
    %s365 = sadd.s32 %s364, 1
    %p368 = scmp.eq.s32.totalorder %s26, 1
    %p369 = scmp.ne.s32.totalorder %s364, %s366
    %p370 = scmp.eq.s32.totalorder %s26, 0
    %p371 = por %p369, %p370
    %p372 = scmp.ne.s32.totalorder %s364, %s366
    %p373 = scmp.eq.s32.totalorder %s31, 1
    %p374 = por %p372, %p373
    %p375 = scmp.ne.s32.totalorder %s366, %s367
    %p376 = scmp.eq.s32.totalorder %s31, 0
    %p377 = por %p375, %p376
    %p378 = scmp.ne.s32.totalorder %s366, %s367
    %p379 = scmp.eq.s32.totalorder %s32, 1
    %p380 = por %p378, %p379
    %p382 = scmp.ne.s32.totalorder %s367, %s381
    %p383 = scmp.eq.s32.totalorder %s32, 0
    %p384 = por %p382, %p383
    %s386 = sadd.s32 %s385, 1
    %p389 = scmp.eq.s32.totalorder %s26, 1
    %p390 = scmp.ne.s32.totalorder %s385, %s387
    %p391 = scmp.eq.s32.totalorder %s26, 0
    %p392 = por %p390, %p391
    %p393 = scmp.ne.s32.totalorder %s385, %s387
    %p394 = scmp.eq.s32.totalorder %s31, 1
    %p395 = por %p393, %p394
    %p396 = scmp.ne.s32.totalorder %s387, %s388
    %p397 = scmp.eq.s32.totalorder %s31, 0
    %p398 = por %p396, %p397
    %p399 = scmp.ne.s32.totalorder %s387, %s388
    %p400 = scmp.eq.s32.totalorder %s32, 1
    %p401 = por %p399, %p400
    %p403 = scmp.ne.s32.totalorder %s388, %s402
    %p404 = scmp.eq.s32.totalorder %s32, 0
    %p405 = por %p403, %p404
    %s407 = sadd.s32 %s406, 1
    %p410 = scmp.eq.s32.totalorder %s26, 1
    %p411 = scmp.ne.s32.totalorder %s406, %s408
    %p412 = scmp.eq.s32.totalorder %s26, 0
    %p413 = por %p411, %p412
    %p414 = scmp.ne.s32.totalorder %s406, %s408
    %p415 = scmp.eq.s32.totalorder %s31, 1
    %p416 = por %p414, %p415
    %p417 = scmp.ne.s32.totalorder %s408, %s409
    %p418 = scmp.eq.s32.totalorder %s31, 0
    %p419 = por %p417, %p418
    %p420 = scmp.ne.s32.totalorder %s408, %s409
    %p421 = scmp.eq.s32.totalorder %s32, 1
    %p422 = por %p420, %p421
    %p424 = scmp.ne.s32.totalorder %s409, %s423
    %p425 = scmp.eq.s32.totalorder %s32, 0
    %p426 = por %p424, %p425
    %s428 = sadd.s32 %s427, 1
    %p431 = scmp.eq.s32.totalorder %s26, 1
    %p432 = scmp.ne.s32.totalorder %s427, %s429
    %p433 = scmp.eq.s32.totalorder %s26, 0
    %p434 = por %p432, %p433
    %p435 = scmp.ne.s32.totalorder %s427, %s429
    %p436 = scmp.eq.s32.totalorder %s31, 1
    %p437 = por %p435, %p436
    %p438 = scmp.ne.s32.totalorder %s429, %s430
    %p439 = scmp.eq.s32.totalorder %s31, 0
    %p440 = por %p438, %p439
    %p441 = scmp.ne.s32.totalorder %s429, %s430
    %p442 = scmp.eq.s32.totalorder %s32, 1
    %p443 = por %p441, %p442
    %p445 = scmp.ne.s32.totalorder %s430, %s444
    %p446 = scmp.eq.s32.totalorder %s32, 0
    %p447 = por %p445, %p446
    %s449 = sadd.s32 %s448, 1
    %p452 = scmp.eq.s32.totalorder %s26, 1
    %p453 = scmp.ne.s32.totalorder %s448, %s450
    %p454 = scmp.eq.s32.totalorder %s26, 0
    %p455 = por %p453, %p454
    %p456 = scmp.ne.s32.totalorder %s448, %s450
    %p457 = scmp.eq.s32.totalorder %s31, 1
    %p458 = por %p456, %p457
    %p459 = scmp.ne.s32.totalorder %s450, %s451
    %p460 = scmp.eq.s32.totalorder %s31, 0
    %p461 = por %p459, %p460
    %p462 = scmp.ne.s32.totalorder %s450, %s451
    %p463 = scmp.eq.s32.totalorder %s32, 1
    %p464 = por %p462, %p463
    %p466 = scmp.ne.s32.totalorder %s451, %s465
    %p467 = scmp.eq.s32.totalorder %s32, 0
    %p468 = por %p466, %p467
    %s469 = ssub.s32 %s26, %s33
    %p470 = scmp.eq.s32.totalorder %s469, 0
    %s472 = sadd.s32 %s471, 1
    %s473 = scalar_select %p470, %s471, %s472
    %p476 = pneg %p470
    %p477 = scmp.eq.s32.totalorder %s26, 1
    %p478 = por %p476, %p477
    %p479 = scmp.ne.s32.totalorder %s471, %s474
    %p480 = scmp.eq.s32.totalorder %s26, 0
    %p481 = por %p479, %p480
    %p482 = scmp.ne.s32.totalorder %s471, %s474
    %p483 = scmp.eq.s32.totalorder %s31, 1
    %p484 = por %p482, %p483
    %p485 = scmp.ne.s32.totalorder %s474, %s475
    %p486 = scmp.eq.s32.totalorder %s31, 0
    %p487 = por %p485, %p486
    %p488 = scmp.ne.s32.totalorder %s474, %s475
    %p489 = scmp.eq.s32.totalorder %s32, 1
    %p490 = por %p488, %p489
    %p492 = scmp.ne.s32.totalorder %s475, %s491
    %p493 = scmp.eq.s32.totalorder %s32, 0
    %p494 = por %p492, %p493
    %p495 = scmp.le.s32.totalorder 1, %s26
    %p496 = scmp.lt.s32.totalorder %s26, 3
    %p497 = pnand %p495, %p496
    %p498 = pneg %p497
    // Predicated region
    $region9: #{forward.6} parent=5 // pred_check
      _
    $region10: #{forward.6} parent=5 // pred_check_branch
      %500 = sbr.rel (%p497) target = $region12
    $region11: #{forward.6} parent=5 // pred_region
      %s501 = ssub.s32 %s26, 1
      // Predicated region
      $region13: #{forward.6} parent=11 // pred_check
        %p502 = pneg %p125
      $region14: #{forward.6} parent=11 // pred_check_branch
        %504 = sbr.rel (%p502) target = $region16
      $region15: #{forward.6} parent=11 // pred_region
        _
      $region16: #{forward.6} parent=11 // pred_fallthru
        _
      // Predicated region
      $region17: #{forward.6} parent=11 // pred_check
        %p505 = pneg %p146
      $region18: #{forward.6} parent=11 // pred_check_branch
        %507 = sbr.rel (%p505) target = $region20
      $region19: #{forward.6} parent=11 // pred_region
        _
      $region20: #{forward.6} parent=11 // pred_fallthru
        _
      // Predicated region
      $region21: #{forward.6} parent=11 // pred_check
        %p508 = pneg %p167
      $region22: #{forward.6} parent=11 // pred_check_branch
        %510 = sbr.rel (%p508) target = $region24
      $region23: #{forward.6} parent=11 // pred_region
        _
      $region24: #{forward.6} parent=11 // pred_fallthru
        _
      // Predicated region
      $region25: #{forward.6} parent=11 // pred_check
        %p511 = pneg %p188
      $region26: #{forward.6} parent=11 // pred_check_branch
        %513 = sbr.rel (%p511) target = $region28
      $region27: #{forward.6} parent=11 // pred_region
        _
      $region28: #{forward.6} parent=11 // pred_fallthru
        _
      // Predicated region
      $region29: #{forward.6} parent=11 // pred_check
        %p514 = pneg %p209
      $region30: #{forward.6} parent=11 // pred_check_branch
        %516 = sbr.rel (%p514) target = $region32
      $region31: #{forward.6} parent=11 // pred_region
        _
      $region32: #{forward.6} parent=11 // pred_fallthru
        _
      // Predicated region
      $region33: #{forward.6} parent=11 // pred_check
        %p517 = pneg %p230
      $region34: #{forward.6} parent=11 // pred_check_branch
        %519 = sbr.rel (%p517) target = $region36
      $region35: #{forward.6} parent=11 // pred_region
        _
      $region36: #{forward.6} parent=11 // pred_fallthru
        _
      // Predicated region
      $region37: #{forward.6} parent=11 // pred_check
        %p520 = pneg %p251
      $region38: #{forward.6} parent=11 // pred_check_branch
        %522 = sbr.rel (%p520) target = $region40
      $region39: #{forward.6} parent=11 // pred_region
        _
      $region40: #{forward.6} parent=11 // pred_fallthru
        _
      // Predicated region
      $region41: #{forward.6} parent=11 // pred_check
        %p523 = pneg %p272
      $region42: #{forward.6} parent=11 // pred_check_branch
        %525 = sbr.rel (%p523) target = $region44
      $region43: #{forward.6} parent=11 // pred_region
        _
      $region44: #{forward.6} parent=11 // pred_fallthru
        _
      // Predicated region
      $region45: #{forward.6} parent=11 // pred_check
        %p526 = pneg %p293
      $region46: #{forward.6} parent=11 // pred_check_branch
        %528 = sbr.rel (%p526) target = $region48
      $region47: #{forward.6} parent=11 // pred_region
        _
      $region48: #{forward.6} parent=11 // pred_fallthru
        _
      // Predicated region
      $region49: #{forward.6} parent=11 // pred_check
        %p529 = pneg %p314
      $region50: #{forward.6} parent=11 // pred_check_branch
        %531 = sbr.rel (%p529) target = $region52
      $region51: #{forward.6} parent=11 // pred_region
        _
      $region52: #{forward.6} parent=11 // pred_fallthru
        _
      // Predicated region
      $region53: #{forward.6} parent=11 // pred_check
        %p532 = pneg %p335
      $region54: #{forward.6} parent=11 // pred_check_branch
        %534 = sbr.rel (%p532) target = $region56
      $region55: #{forward.6} parent=11 // pred_region
        _
      $region56: #{forward.6} parent=11 // pred_fallthru
        _
      // Predicated region
      $region57: #{forward.6} parent=11 // pred_check
        %p535 = pneg %p356
      $region58: #{forward.6} parent=11 // pred_check_branch
        %537 = sbr.rel (%p535) target = $region60
      $region59: #{forward.6} parent=11 // pred_region
        _
      $region60: #{forward.6} parent=11 // pred_fallthru
        _
      // Predicated region
      $region61: #{forward.6} parent=11 // pred_check
        %p538 = pneg %p377
      $region62: #{forward.6} parent=11 // pred_check_branch
        %540 = sbr.rel (%p538) target = $region64
      $region63: #{forward.6} parent=11 // pred_region
        _
      $region64: #{forward.6} parent=11 // pred_fallthru
        _
      // Predicated region
      $region65: #{forward.6} parent=11 // pred_check
        %p541 = pneg %p398
      $region66: #{forward.6} parent=11 // pred_check_branch
        %543 = sbr.rel (%p541) target = $region68
      $region67: #{forward.6} parent=11 // pred_region
        _
      $region68: #{forward.6} parent=11 // pred_fallthru
        _
      // Predicated region
      $region69: #{forward.6} parent=11 // pred_check
        %p544 = pneg %p419
      $region70: #{forward.6} parent=11 // pred_check_branch
        %546 = sbr.rel (%p544) target = $region72
      $region71: #{forward.6} parent=11 // pred_region
        _
      $region72: #{forward.6} parent=11 // pred_fallthru
        _
      // Predicated region
      $region73: #{forward.6} parent=11 // pred_check
        %p547 = pneg %p440
      $region74: #{forward.6} parent=11 // pred_check_branch
        %549 = sbr.rel (%p547) target = $region76
      $region75: #{forward.6} parent=11 // pred_region
        _
      $region76: #{forward.6} parent=11 // pred_fallthru
        _
      // Predicated region
      $region77: #{forward.6} parent=11 // pred_check
        %p550 = pneg %p461
      $region78: #{forward.6} parent=11 // pred_check_branch
        %552 = sbr.rel (%p550) target = $region80
      $region79: #{forward.6} parent=11 // pred_region
        _
      $region80: #{forward.6} parent=11 // pred_fallthru
        _
    $region12: #{forward.6} parent=5 // pred_fallthru
      _
    %p553 = scmp.lt.s32.totalorder %s26, 2
    // Predicated region
    $region81: #{forward.6} parent=5 // pred_check
      %p554 = pneg %p553
    $region82: #{forward.6} parent=5 // pred_check_branch
      %556 = sbr.rel (%p554) target = $region84
    $region83: #{forward.6} parent=5 // pred_region
      // Predicated region
      $region85: #{forward.6} parent=83 // pred_check
        %p557 = pneg %p46
      $region86: #{forward.6} parent=83 // pred_check_branch
        %559 = sbr.rel (%p557) target = $region88
      $region87: #{forward.6} parent=83 // pred_region
        %p560 = scmp.lt.s32.totalorder %s26, 1
        %s561 = scalar_select %p560, %s26, 1
        %s562 = smul.addr %s561, 2
        %s563 = smul.addr %s562, 8
        %s564 = scalar_lea.vmem %s0, %s563
      $region88: #{forward.6} parent=83 // pred_fallthru
        _
      // Predicated region
      $region89: #{forward.6} parent=83 // pred_check
        %p565 = pneg %p72
      $region90: #{forward.6} parent=83 // pred_check_branch
        %567 = sbr.rel (%p565) target = $region92
      $region91: #{forward.6} parent=83 // pred_region
        %p568 = scmp.lt.s32.totalorder %s26, 1
        %s569 = scalar_select %p568, %s26, 1
        %s570 = smul.addr %s569, 2
        %s571 = smul.addr %s570, 8
        %s572 = scalar_lea.vmem %s1, %s571
      $region92: #{forward.6} parent=83 // pred_fallthru
        _
      // Predicated region
      $region93: #{forward.6} parent=83 // pred_check
        %p573 = pneg %p98
      $region94: #{forward.6} parent=83 // pred_check_branch
        %575 = sbr.rel (%p573) target = $region96
      $region95: #{forward.6} parent=83 // pred_region
        %p576 = scmp.lt.s32.totalorder %s26, 1
        %s577 = scalar_select %p576, %s26, 1
        %s578 = scalar_lea.vmem %s2, %s577
      $region96: #{forward.6} parent=83 // pred_fallthru
        _
    $region84: #{forward.6} parent=5 // pred_fallthru
      _
    %p579 = scmp.le.s32.totalorder 1, %s26
    %p580 = scmp.lt.s32.totalorder %s26, 3
    %p581 = pnand %p579, %p580
    %p582 = pneg %p581
    // Predicated region
    $region97: #{forward.6} parent=5 // pred_check
      _
    $region98: #{forward.6} parent=5 // pred_check_branch
      %584 = sbr.rel (%p581) target = $region100
    $region99: #{forward.6} parent=5 // pred_region
      %s585 = ssub.s32 %s26, 1
      %p586 = scmp.lt.s32.totalorder %s31, 1
      %s587 = scalar_select %p586, %s31, 1
      %s588 = smul.addr %s587, 2
      %s589 = smul.addr %s588, 8
      %s590 = scalar_lea.vmem %s0, %s589
      %p591 = pneg %p52
      %p592 = pneg %p49
      %p593 = scmp.lt.s32.totalorder %s31, 1
      %s594 = scalar_select %p593, %s31, 1
      %s595 = smul.addr %s594, 2
      %s596 = smul.addr %s595, 8
      %s597 = scalar_lea.vmem %s1, %s596
      %p598 = pneg %p78
      %p599 = pneg %p75
      %p600 = scmp.lt.s32.totalorder %s31, 1
      %s601 = scalar_select %p600, %s31, 1
      %s602 = scalar_lea.vmem %s2, %s601
      %p603 = pneg %p104
      %p604 = pneg %p101
      %p605 = pneg %p125
      %p606 = pneg %p122
      %p607 = pneg %p146
      %p608 = pneg %p143
      %p609 = pneg %p167
      %p610 = pneg %p164
      %p611 = pneg %p188
      %p612 = pneg %p185
      %p613 = pneg %p209
      %p614 = pneg %p206
      %p615 = pneg %p230
      %p616 = pneg %p227
      %p617 = pneg %p251
      %p618 = pneg %p248
      %p619 = pneg %p272
      %p620 = pneg %p269
      %p621 = pneg %p293
      %p622 = pneg %p290
      %p623 = pneg %p314
      %p624 = pneg %p311
      %p625 = pneg %p335
      %p626 = pneg %p332
      %p627 = pneg %p356
      %p628 = pneg %p353
      %p629 = pneg %p377
      %p630 = pneg %p374
      %p631 = pneg %p398
      %p632 = pneg %p395
      %p633 = pneg %p419
      %p634 = pneg %p416
      %p635 = pneg %p440
      %p636 = pneg %p437
      %p637 = pneg %p461
      %p638 = pneg %p458
      %p639 = pneg %p487
      %p640 = pneg %p484
      %p641 = scmp.lt.s32.totalorder %s31, 1
      %s642 = scalar_select %p641, %s31, 1
      %s643 = smul.addr %s642, 2
      %s644 = smul.addr %s643, 8
      %s645 = scalar_lea.vmem %s20, %s644
      %p646 = scmp.lt.s32.totalorder %s31, 1
      %s647 = scalar_select %p646, %s31, 1
      %s648 = smul.addr %s647, 2
      %s649 = smul.addr %s648, 8
      %s650 = scalar_lea.vmem %s0, %s649
      %p651 = scmp.lt.s32.totalorder %s31, 1
      %s652 = scalar_select %p651, %s31, 1
      %s653 = smul.addr %s652, 2
      %s654 = smul.addr %s653, 8
      %s655 = scalar_lea.vmem %s1, %s654
      %p656 = scmp.lt.s32.totalorder %s31, 1
      %s657 = scalar_select %p656, %s31, 1
      %s658 = scalar_lea.vmem %s2, %s657
      %p659 = scmp.lt.s32.totalorder %s31, 1
      %s660 = scalar_select %p659, %s31, 1
      %s661 = smul.addr %s660, 2
      %s662 = smul.addr %s661, 8
      %s663 = scalar_lea.vmem %s20, %s662
      %v665 = vld [vmem:[%s650] sm:$0xff]
      %v666 = vld [vmem:[%s650 + $0x8] sm:$0xff]
      %v667 = vld [vmem:[%s3] sm:$0x1]
      %v668 = vld [vmem:[%s4] sm:$0x1]
      %vm669 = vcmask 523264
      %v670 = vsel %vm669, %v665, 0.0
      %671 = vadd.xlane.f32.xlu0 %v670
      %v672 = vpop.xlane.xlu0 %671
      %v673 = vsel %vm669, %v666, 0.0
      %674 = vadd.xlane.f32.xlu0 %v673
      %v675 = vpop.xlane.xlu0 %674
      %v676 = vrcp.pop 64.0
      %v677 = vmul.f32 %v672, %v676
      %v678 = vmul.f32 %v675, %v676
      %v679 = vsub.f32 %v665, %v677
      %v680 = vsub.f32 %v666, %v678
      %v681 = vmul.f32 %v679, %v679
      %v682 = vmul.f32 %v680, %v680
      %v683 = vsel %vm669, %v681, 0.0
      %684 = vadd.xlane.f32.xlu0 %v683
      %v685 = vpop.xlane.xlu0 %684
      %v686 = vsel %vm669, %v682, 0.0
      %687 = vadd.xlane.f32.xlu0 %v686
      %v688 = vpop.xlane.xlu0 %687
      %v689 = vmul.f32 %v685, %v676
      %v690 = vmul.f32 %v688, %v676
      %v691 = vadd.f32 %v689, 1e-05
      %v692 = vadd.f32 %v690, 1e-05
      %v693 = vrsqrt.pop %v691
      %v694 = vrsqrt.pop %v692
      %v695 = vmul.f32 %v679, %v693
      %v696 = vmul.f32 %v680, %v694
      %v698 = vlaneseq
      %v699 = vshrl.u32 %v698, 7
      %v700 = vsub.s32 0, %v699
      %v701 = vrot.slane %v667, %v700
      %v703 = vmul.f32 %v695, %v701
      %v704 = vmul.f32 %v696, %v701
      %v706 = vlaneseq
      %v707 = vshrl.u32 %v706, 7
      %v708 = vsub.s32 0, %v707
      %v709 = vrot.slane %v668, %v708
      %v711 = vadd.f32 %v703, %v709
      %v712 = vadd.f32 %v704, %v709
      %v713 = vld [vmem:[%s655] sm:$0xff]
      %v714 = vld [vmem:[%s655 + $0x8] sm:$0xff]
      %v715 = vld [vmem:[%s5] sm:$0x1]
      %v716 = vld [vmem:[%s6] sm:$0x1]
      %v717 = vsel %vm669, %v713, 0.0
      %718 = vadd.xlane.f32.xlu0 %v717
      %v719 = vpop.xlane.xlu0 %718
      %v720 = vsel %vm669, %v714, 0.0
      %721 = vadd.xlane.f32.xlu0 %v720
      %v722 = vpop.xlane.xlu0 %721
      %v723 = vmul.f32 %v719, %v676
      %v724 = vmul.f32 %v722, %v676
      %v725 = vsub.f32 %v713, %v723
      %v726 = vsub.f32 %v714, %v724
      %v727 = vmul.f32 %v725, %v725
      %v728 = vmul.f32 %v726, %v726
      %v729 = vsel %vm669, %v727, 0.0
      %730 = vadd.xlane.f32.xlu0 %v729
      %v731 = vpop.xlane.xlu0 %730
      %v732 = vsel %vm669, %v728, 0.0
      %733 = vadd.xlane.f32.xlu0 %v732
      %v734 = vpop.xlane.xlu0 %733
      %v735 = vmul.f32 %v731, %v676
      %v736 = vmul.f32 %v734, %v676
      %v737 = vadd.f32 %v735, 1e-05
      %v738 = vadd.f32 %v736, 1e-05
      %v739 = vrsqrt.pop %v737
      %v740 = vrsqrt.pop %v738
      %v741 = vmul.f32 %v725, %v739
      %v742 = vmul.f32 %v726, %v740
      %v744 = vlaneseq
      %v745 = vshrl.u32 %v744, 7
      %v746 = vsub.s32 0, %v745
      %v747 = vrot.slane %v715, %v746
      %v749 = vmul.f32 %v741, %v747
      %v750 = vmul.f32 %v742, %v747
      %v752 = vlaneseq
      %v753 = vshrl.u32 %v752, 7
      %v754 = vsub.s32 0, %v753
      %v755 = vrot.slane %v716, %v754
      %v757 = vadd.f32 %v749, %v755
      %v758 = vadd.f32 %v750, %v755
      %v759 = vld [vmem:[%s658] sm:$0x1]
      %v760 = vld [vmem:[%s7] sm:$0xff]
      %v761 = vld [vmem:[%s7 + $0x8] sm:$0xff]
      %v762 = vld [vmem:[%s7 + $0x10] sm:$0xff]
      %v763 = vld [vmem:[%s7 + $0x18] sm:$0xff]
      %v764 = vld [vmem:[%s7 + $0x20] sm:$0xff]
      %v765 = vld [vmem:[%s7 + $0x28] sm:$0xff]
      %v766 = vld [vmem:[%s7 + $0x30] sm:$0xff]
      %v767 = vld [vmem:[%s7 + $0x38] sm:$0xff]
      %v768 = vpack.c.bf16 %v712, %v711
      %v769 = vpack.c.bf16 %v761, %v760
      %v770 = vpack.c.bf16 %v763, %v762
      %v771 = vpack.c.bf16 %v765, %v764
      %v772 = vpack.c.bf16 %v767, %v766
      %v774 = vsel %vm669, %v768, 0
      %776 = vmatprep.subr.bf16.mxu0 0
      %777 = vmatpush1.bf16.msra.mxu0 %v769
      %778 = vmatprep.subr.bf16.mxu0 0
      %779 = vmatpush1.bf16.msra.mxu0 %v770
      %780 = vmatprep.subr.bf16.mxu0 0
      %781 = vmatpush1.bf16.msra.mxu0 %v771
      %782 = vmatprep.subr.bf16.mxu0 0
      %783 = vmatpush1.bf16.msra.mxu0 %v772
      %784 = vmatprep.subr.bf16.mxu0 0
      %785 = vmatpush1.bf16.msra.mxu0 0
      %786 = vmatprep.subr.bf16.mxu0 0
      %787 = vmatpush1.bf16.msra.mxu0 0
      %788 = vmatprep.subr.bf16.mxu0 0
      %789 = vmatpush1.bf16.msra.mxu0 0
      %790 = vmatprep.subr.bf16.mxu0 0
      %791 = vmatpush1.bf16.msra.mxu0 0
      %792 = vmatprep.subr.bf16.mxu0 0
      %793 = vmatpush1.bf16.msra.mxu0 0
      %794 = vmatprep.subr.bf16.mxu0 0
      %795 = vmatpush1.bf16.msra.mxu0 0
      %796 = vmatprep.subr.bf16.mxu0 0
      %797 = vmatpush1.bf16.msra.mxu0 0
      %798 = vmatprep.subr.bf16.mxu0 0
      %799 = vmatpush1.bf16.msra.mxu0 0
      %800 = vmatprep.subr.bf16.mxu0 0
      %801 = vmatpush1.bf16.msra.mxu0 0
      %802 = vmatprep.subr.bf16.mxu0 0
      %803 = vmatpush1.bf16.msra.mxu0 0
      %804 = vmatprep.subr.bf16.mxu0 0
      %805 = vmatpush1.bf16.msra.mxu0 0
      %806 = vmatprep.subr.bf16.mxu0 0
      %807 = vmatpush1.bf16.msra.mxu0 0
      %808 = vmatprep.mubr.bf16.mxu0 0
      %809 = vmatmul.mubr.bf16.gmra.mrb[0].mxu0 %v774
      %v810 = vpop.f32.mrb[0].mxu0
      %v811 = vadd.f32 0.0, %v810
      %v812 = vpop.f32.mrb[0].mxu0
      %v813 = vpop.f32.mrb[0].mxu0
      %v814 = vadd.f32 0.0, %v813
      %v815 = vpop.f32.mrb[0].mxu0
      %816 = vdwg.mxu0
      %v817 = vld [vmem:[%s8] sm:$0xff]
      %v818 = vld [vmem:[%s8 + $0x8] sm:$0xff]
      %v819 = vld [vmem:[%s8 + $0x10] sm:$0xff]
      %v820 = vld [vmem:[%s8 + $0x18] sm:$0xff]
      %v821 = vld [vmem:[%s8 + $0x20] sm:$0xff]
      %v822 = vld [vmem:[%s8 + $0x28] sm:$0xff]
      %v823 = vld [vmem:[%s8 + $0x30] sm:$0xff]
      %v824 = vld [vmem:[%s8 + $0x38] sm:$0xff]
      %v825 = vpack.c.bf16 %v758, %v757
      %v826 = vpack.c.bf16 %v818, %v817
      %v827 = vpack.c.bf16 %v820, %v819
      %v828 = vpack.c.bf16 %v822, %v821
      %v829 = vpack.c.bf16 %v824, %v823
      %v831 = vsel %vm669, %v825, 0
      %833 = vmatprep.subr.bf16.mxu0 0
      %834 = vmatpush1.bf16.msra.mxu0 %v826
      %835 = vmatprep.subr.bf16.mxu0 0
      %836 = vmatpush1.bf16.msra.mxu0 %v827
      %837 = vmatprep.subr.bf16.mxu0 0
      %838 = vmatpush1.bf16.msra.mxu0 %v828
      %839 = vmatprep.subr.bf16.mxu0 0
      %840 = vmatpush1.bf16.msra.mxu0 %v829
      %841 = vmatprep.subr.bf16.mxu0 0
      %842 = vmatpush1.bf16.msra.mxu0 0
      %843 = vmatprep.subr.bf16.mxu0 0
      %844 = vmatpush1.bf16.msra.mxu0 0
      %845 = vmatprep.subr.bf16.mxu0 0
      %846 = vmatpush1.bf16.msra.mxu0 0
      %847 = vmatprep.subr.bf16.mxu0 0
      %848 = vmatpush1.bf16.msra.mxu0 0
      %849 = vmatprep.subr.bf16.mxu0 0
      %850 = vmatpush1.bf16.msra.mxu0 0
      %851 = vmatprep.subr.bf16.mxu0 0
      %852 = vmatpush1.bf16.msra.mxu0 0
      %853 = vmatprep.subr.bf16.mxu0 0
      %854 = vmatpush1.bf16.msra.mxu0 0
      %855 = vmatprep.subr.bf16.mxu0 0
      %856 = vmatpush1.bf16.msra.mxu0 0
      %857 = vmatprep.subr.bf16.mxu0 0
      %858 = vmatpush1.bf16.msra.mxu0 0
      %859 = vmatprep.subr.bf16.mxu0 0
      %860 = vmatpush1.bf16.msra.mxu0 0
      %861 = vmatprep.subr.bf16.mxu0 0
      %862 = vmatpush1.bf16.msra.mxu0 0
      %863 = vmatprep.subr.bf16.mxu0 0
      %864 = vmatpush1.bf16.msra.mxu0 0
      %865 = vmatprep.mubr.bf16.mxu0 0
      %866 = vmatmul.mubr.bf16.gmra.mrb[0].mxu0 %v831
      %v867 = vpop.f32.mrb[0].mxu0
      %v868 = vadd.f32 0.0, %v867
      %v869 = vpop.f32.mrb[0].mxu0
      %v870 = vpop.f32.mrb[0].mxu0
      %v871 = vadd.f32 0.0, %v870
      %v872 = vpop.f32.mrb[0].mxu0
      %873 = vdwg.mxu0
      %v874 = vld [vmem:[%s9] sm:$0xff]
      %v875 = vld [vmem:[%s9 + $0x8] sm:$0xff]
      %v876 = vld [vmem:[%s9 + $0x10] sm:$0xff]
      %v877 = vld [vmem:[%s9 + $0x18] sm:$0xff]
      %v878 = vld [vmem:[%s9 + $0x20] sm:$0xff]
      %v879 = vld [vmem:[%s9 + $0x28] sm:$0xff]
      %v880 = vld [vmem:[%s9 + $0x30] sm:$0xff]
      %v881 = vld [vmem:[%s9 + $0x38] sm:$0xff]
      %v882 = vpack.c.bf16 %v875, %v874
      %v883 = vpack.c.bf16 %v877, %v876
      %v884 = vpack.c.bf16 %v879, %v878
      %v885 = vpack.c.bf16 %v881, %v880
      %886 = vmatprep.subr.bf16.mxu0 0
      %887 = vmatpush1.bf16.msra.mxu0 %v882
      %888 = vmatprep.subr.bf16.mxu0 0
      %889 = vmatpush1.bf16.msra.mxu0 %v883
      %890 = vmatprep.subr.bf16.mxu0 0
      %891 = vmatpush1.bf16.msra.mxu0 %v884
      %892 = vmatprep.subr.bf16.mxu0 0
      %893 = vmatpush1.bf16.msra.mxu0 %v885
      %894 = vmatprep.subr.bf16.mxu0 0
      %895 = vmatpush1.bf16.msra.mxu0 0
      %896 = vmatprep.subr.bf16.mxu0 0
      %897 = vmatpush1.bf16.msra.mxu0 0
      %898 = vmatprep.subr.bf16.mxu0 0
      %899 = vmatpush1.bf16.msra.mxu0 0
      %900 = vmatprep.subr.bf16.mxu0 0
      %901 = vmatpush1.bf16.msra.mxu0 0
      %902 = vmatprep.subr.bf16.mxu0 0
      %903 = vmatpush1.bf16.msra.mxu0 0
      %904 = vmatprep.subr.bf16.mxu0 0
      %905 = vmatpush1.bf16.msra.mxu0 0
      %906 = vmatprep.subr.bf16.mxu0 0
      %907 = vmatpush1.bf16.msra.mxu0 0
      %908 = vmatprep.subr.bf16.mxu0 0
      %909 = vmatpush1.bf16.msra.mxu0 0
      %910 = vmatprep.subr.bf16.mxu0 0
      %911 = vmatpush1.bf16.msra.mxu0 0
      %912 = vmatprep.subr.bf16.mxu0 0
      %913 = vmatpush1.bf16.msra.mxu0 0
      %914 = vmatprep.subr.bf16.mxu0 0
      %915 = vmatpush1.bf16.msra.mxu0 0
      %916 = vmatprep.subr.bf16.mxu0 0
      %917 = vmatpush1.bf16.msra.mxu0 0
      %918 = vmatprep.mubr.bf16.mxu0 0
      %919 = vmatmul.mubr.bf16.gmra.mrb[0].mxu0 %v831
      %v920 = vpop.f32.mrb[0].mxu0
      %v921 = vadd.f32 0.0, %v920
      %v922 = vpop.f32.mrb[0].mxu0
      %v923 = vpop.f32.mrb[0].mxu0
      %v924 = vadd.f32 0.0, %v923
      %v925 = vpop.f32.mrb[0].mxu0
      %926 = vdwg.mxu0
      %v927 = vpack.c.bf16 %v814, %v811
      %v928 = vpack.c.bf16 %v871, %v868
      %vm929 = vcmask 130048
      %v931 = vsel %vm929, %v927, 0
      %v934 = vsel %vm929, %v928, 0
      %936 = vmatprep.subr.bf16.mxu0 0
      %937 = vmatpush1.bf16.xpose.msra.mxu0 %v934
      %938 = vmatprep.subr.bf16.mxu0 0
      %939 = vmatpush1.bf16.xpose.msra.mxu0 0
      %940 = vmatprep.subr.bf16.mxu0 0
      %941 = vmatpush1.bf16.xpose.msra.mxu0 0
      %942 = vmatprep.subr.bf16.mxu0 0
      %943 = vmatpush1.bf16.xpose.msra.mxu0 0
      %944 = vmatprep.subr.bf16.mxu0 0
      %945 = vmatpush1.bf16.xpose.msra.mxu0 0
      %946 = vmatprep.subr.bf16.mxu0 0
      %947 = vmatpush1.bf16.xpose.msra.mxu0 0
      %948 = vmatprep.subr.bf16.mxu0 0
      %949 = vmatpush1.bf16.xpose.msra.mxu0 0
      %950 = vmatprep.subr.bf16.mxu0 0
      %951 = vmatpush1.bf16.xpose.msra.mxu0 0
      %952 = vmatprep.subr.bf16.mxu0 0
      %953 = vmatpush1.bf16.xpose.msra.mxu0 0
      %954 = vmatprep.subr.bf16.mxu0 0
      %955 = vmatpush1.bf16.xpose.msra.mxu0 0
      %956 = vmatprep.subr.bf16.mxu0 0
      %957 = vmatpush1.bf16.xpose.msra.mxu0 0
      %958 = vmatprep.subr.bf16.mxu0 0
      %959 = vmatpush1.bf16.xpose.msra.mxu0 0
      %960 = vmatprep.subr.bf16.mxu0 0
      %961 = vmatpush1.bf16.xpose.msra.mxu0 0
      %962 = vmatprep.subr.bf16.mxu0 0
      %963 = vmatpush1.bf16.xpose.msra.mxu0 0
      %964 = vmatprep.subr.bf16.mxu0 0
      %965 = vmatpush1.bf16.xpose.msra.mxu0 0
      %966 = vmatprep.subr.bf16.mxu0 0
      %967 = vmatpush1.bf16.xpose.msra.mxu0 0
      %968 = vmatprep.mubr.bf16.mxu0 0
      %969 = vmatmul.mubr.bf16.gmra.mrb[0].mxu0 %v931
      %v970 = vpop.f32.mrb[0].mxu0
      %v971 = vadd.f32 0.0, %v970
      %v972 = vpop.f32.mrb[0].mxu0
      %v973 = vpop.f32.mrb[0].mxu0
      %v974 = vadd.f32 0.0, %v973
      %v975 = vpop.f32.mrb[0].mxu0
      %976 = vdwg.mxu0
      %v977 = vmul.f32 %v971, 0.25
      %v978 = vmul.f32 %v974, 0.25
      %vm979 = vcmp.gt.f32.partialorder %v759, 0.5
      %v980 = vsel %vm979, 1, 0
      %v981 = vlaneseq
      %v982 = vshrl.u32 %v981, 7
      %v983 = vsub.s32 0, %v982
      %v984 = vrot.slane %v980, %v983
      %vm985 = vcmp.eq.s32.totalorder %v984, 1
      %v986 = vsel %vm985, %v977, -3.4028235e+38
      %v987 = vsel %vm985, %v978, -3.4028235e+38
      %v988 = vsel %vm929, %v986, -inf
      %989 = vmax.xlane.f32.xlu0 %v988
      %v990 = vpop.xlane.xlu0 %989
      %v991 = vsel %vm929, %v987, -inf
      %992 = vmax.xlane.f32.xlu0 %v991
      %v993 = vpop.xlane.xlu0 %992
      %v994 = vsub.f32 %v986, %v990
      %v995 = vsub.f32 %v987, %v993
      %v996 = vmul.f32 %v994, 1.442695
      %v997 = vpow.pop %v996
      %v998 = vmul.f32 %v995, 1.442695
      %v999 = vpow.pop %v998
      %v1000 = vsel %vm929, %v997, 0.0
      %1001 = vadd.xlane.f32.xlu0 %v1000
      %v1002 = vpop.xlane.xlu0 %1001
      %v1003 = vsel %vm929, %v999, 0.0
      %1004 = vadd.xlane.f32.xlu0 %v1003
      %v1005 = vpop.xlane.xlu0 %1004
      %v1006 = vrcp.pop %v1002
      %v1007 = vrcp.pop %v1005
      %v1008 = vmul.f32 %v997, %v1006
      %v1009 = vmul.f32 %v999, %v1007
      %v1010 = vpack.c.bf16 %v1009, %v1008
      %v1011 = vpack.c.bf16 %v924, %v921
      %v1013 = vsel %vm929, %v1010, 0
      %1015 = vmatprep.subr.bf16.mxu0 0
      %1016 = vmatpush1.bf16.msra.mxu0 %v1011
      %1017 = vmatprep.subr.bf16.mxu0 0
      %1018 = vmatpush1.bf16.msra.mxu0 0
      %1019 = vmatprep.subr.bf16.mxu0 0
      %1020 = vmatpush1.bf16.msra.mxu0 0
      %1021 = vmatprep.subr.bf16.mxu0 0
      %1022 = vmatpush1.bf16.msra.mxu0 0
      %1023 = vmatprep.subr.bf16.mxu0 0
      %1024 = vmatpush1.bf16.msra.mxu0 0
      %1025 = vmatprep.subr.bf16.mxu0 0
      %1026 = vmatpush1.bf16.msra.mxu0 0
      %1027 = vmatprep.subr.bf16.mxu0 0
      %1028 = vmatpush1.bf16.msra.mxu0 0
      %1029 = vmatprep.subr.bf16.mxu0 0
      %1030 = vmatpush1.bf16.msra.mxu0 0
      %1031 = vmatprep.subr.bf16.mxu0 0
      %1032 = vmatpush1.bf16.msra.mxu0 0
      %1033 = vmatprep.subr.bf16.mxu0 0
      %1034 = vmatpush1.bf16.msra.mxu0 0
      %1035 = vmatprep.subr.bf16.mxu0 0
      %1036 = vmatpush1.bf16.msra.mxu0 0
      %1037 = vmatprep.subr.bf16.mxu0 0
      %1038 = vmatpush1.bf16.msra.mxu0 0
      %1039 = vmatprep.subr.bf16.mxu0 0
      %1040 = vmatpush1.bf16.msra.mxu0 0
      %1041 = vmatprep.subr.bf16.mxu0 0
      %1042 = vmatpush1.bf16.msra.mxu0 0
      %1043 = vmatprep.subr.bf16.mxu0 0
      %1044 = vmatpush1.bf16.msra.mxu0 0
      %1045 = vmatprep.subr.bf16.mxu0 0
      %1046 = vmatpush1.bf16.msra.mxu0 0
      %1047 = vmatprep.mubr.bf16.mxu0 0
      %1048 = vmatmul.mubr.bf16.gmra.mrb[0].mxu0 %v1013
      %v1049 = vpop.f32.mrb[0].mxu0
      %v1050 = vadd.f32 0.0, %v1049
      %v1051 = vpop.f32.mrb[0].mxu0
      %v1052 = vpop.f32.mrb[0].mxu0
      %v1053 = vadd.f32 0.0, %v1052
      %v1054 = vpop.f32.mrb[0].mxu0
      %1055 = vdwg.mxu0
      %v1056 = vld [vmem:[%s10] sm:$0xff]
      %v1057 = vld [vmem:[%s10 + $0x8] sm:$0xff]
      %v1058 = vpack.c.bf16 %v1053, %v1050
      %v1059 = vpack.c.bf16 %v1057, %v1056
      %v1060 = vld [vmem:[%s11] sm:$0x1]
      %v1062 = vlaneseq
      %v1063 = vshrl.u32 %v1062, 7
      %v1064 = vsub.s32 0, %v1063
      %v1065 = vrot.slane %v1060, %v1064
      %v1068 = vsel %vm929, %v1058, 0
      %1070 = vmatprep.subr.bf16.mxu0 0
      %1071 = vmatpush1.bf16.msra.mxu0 %v1059
      %1072 = vmatprep.subr.bf16.mxu0 0
      %1073 = vmatpush1.bf16.msra.mxu0 0
      %1074 = vmatprep.subr.bf16.mxu0 0
      %1075 = vmatpush1.bf16.msra.mxu0 0
      %1076 = vmatprep.subr.bf16.mxu0 0
      %1077 = vmatpush1.bf16.msra.mxu0 0
      %1078 = vmatprep.subr.bf16.mxu0 0
      %1079 = vmatpush1.bf16.msra.mxu0 0
      %1080 = vmatprep.subr.bf16.mxu0 0
      %1081 = vmatpush1.bf16.msra.mxu0 0
      %1082 = vmatprep.subr.bf16.mxu0 0
      %1083 = vmatpush1.bf16.msra.mxu0 0
      %1084 = vmatprep.subr.bf16.mxu0 0
      %1085 = vmatpush1.bf16.msra.mxu0 0
      %1086 = vmatprep.subr.bf16.mxu0 0
      %1087 = vmatpush1.bf16.msra.mxu0 0
      %1088 = vmatprep.subr.bf16.mxu0 0
      %1089 = vmatpush1.bf16.msra.mxu0 0
      %1090 = vmatprep.subr.bf16.mxu0 0
      %1091 = vmatpush1.bf16.msra.mxu0 0
      %1092 = vmatprep.subr.bf16.mxu0 0
      %1093 = vmatpush1.bf16.msra.mxu0 0
      %1094 = vmatprep.subr.bf16.mxu0 0
      %1095 = vmatpush1.bf16.msra.mxu0 0
      %1096 = vmatprep.subr.bf16.mxu0 0
      %1097 = vmatpush1.bf16.msra.mxu0 0
      %1098 = vmatprep.subr.bf16.mxu0 0
      %1099 = vmatpush1.bf16.msra.mxu0 0
      %1100 = vmatprep.subr.bf16.mxu0 0
      %1101 = vmatpush1.bf16.msra.mxu0 0
      %1102 = vmatprep.mubr.bf16.mxu0 0
      %1103 = vmatmul.mubr.bf16.gmra.mrb[0].mxu0 %v1068
      %v1104 = vpop.f32.mrb[0].mxu0
      %v1105 = vadd.f32 %v1065, %v1104
      %v1106 = vpop.f32.mrb[0].mxu0
      %v1107 = vpop.f32.mrb[0].mxu0
      %v1108 = vadd.f32 %v1065, %v1107
      %v1109 = vpop.f32.mrb[0].mxu0
      %1110 = vdwg.mxu0
      %v1111 = vadd.f32 %v1105, %v665
      %v1112 = vadd.f32 %v1108, %v666
      %v1113 = vld [vmem:[%s12] sm:$0x1]
      %v1114 = vld [vmem:[%s13] sm:$0x1]
      %v1115 = vsel %vm669, %v1111, 0.0
      %1116 = vadd.xlane.f32.xlu0 %v1115
      %v1117 = vpop.xlane.xlu0 %1116
      %v1118 = vsel %vm669, %v1112, 0.0
      %1119 = vadd.xlane.f32.xlu0 %v1118
      %v1120 = vpop.xlane.xlu0 %1119
      %v1121 = vmul.f32 %v1117, %v676
      %v1122 = vmul.f32 %v1120, %v676
      %v1123 = vsub.f32 %v1111, %v1121
      %v1124 = vsub.f32 %v1112, %v1122
      %v1125 = vmul.f32 %v1123, %v1123
      %v1126 = vmul.f32 %v1124, %v1124
      %v1127 = vsel %vm669, %v1125, 0.0
      %1128 = vadd.xlane.f32.xlu0 %v1127
      %v1129 = vpop.xlane.xlu0 %1128
      %v1130 = vsel %vm669, %v1126, 0.0
      %1131 = vadd.xlane.f32.xlu0 %v1130
      %v1132 = vpop.xlane.xlu0 %1131
      %v1133 = vmul.f32 %v1129, %v676
      %v1134 = vmul.f32 %v1132, %v676
      %v1135 = vadd.f32 %v1133, 1e-05
      %v1136 = vadd.f32 %v1134, 1e-05
      %v1137 = vrsqrt.pop %v1135
      %v1138 = vrsqrt.pop %v1136
      %v1139 = vmul.f32 %v1123, %v1137
      %v1140 = vmul.f32 %v1124, %v1138
      %v1142 = vlaneseq
      %v1143 = vshrl.u32 %v1142, 7
      %v1144 = vsub.s32 0, %v1143
      %v1145 = vrot.slane %v1113, %v1144
      %v1147 = vmul.f32 %v1139, %v1145
      %v1148 = vmul.f32 %v1140, %v1145
      %v1150 = vlaneseq
      %v1151 = vshrl.u32 %v1150, 7
      %v1152 = vsub.s32 0, %v1151
      %v1153 = vrot.slane %v1114, %v1152
      %v1155 = vadd.f32 %v1147, %v1153
      %v1156 = vadd.f32 %v1148, %v1153
      %v1157 = vld [vmem:[%s14] sm:$0xff]
      %v1158 = vld [vmem:[%s14 + $0x8] sm:$0xff]
      %v1159 = vld [vmem:[%s14 + $0x10] sm:$0xff]
      %v1160 = vld [vmem:[%s14 + $0x18] sm:$0xff]
      %v1161 = vld [vmem:[%s14 + $0x20] sm:$0xff]
      %v1162 = vld [vmem:[%s14 + $0x28] sm:$0xff]
      %v1163 = vld [vmem:[%s14 + $0x30] sm:$0xff]
      %v1164 = vld [vmem:[%s14 + $0x38] sm:$0xff]
      %v1165 = vld [vmem:[%s14 + $0x40] sm:$0xff]
      %v1166 = vld [vmem:[%s14 + $0x48] sm:$0xff]
      %v1167 = vld [vmem:[%s14 + $0x50] sm:$0xff]
      %v1168 = vld [vmem:[%s14 + $0x58] sm:$0xff]
      %v1169 = vld [vmem:[%s14 + $0x60] sm:$0xff]
      %v1170 = vld [vmem:[%s14 + $0x68] sm:$0xff]
      %v1171 = vld [vmem:[%s14 + $0x70] sm:$0xff]
      %v1172 = vld [vmem:[%s14 + $0x78] sm:$0xff]
      %v1173 = vld [vmem:[%s15] sm:$0x3]
      %v1174 = vld [vmem:[%s16] sm:$0xff]
      %v1175 = vld [vmem:[%s16 + $0x8] sm:$0xff]
      %v1176 = vld [vmem:[%s16 + $0x10] sm:$0xff]
      %v1177 = vld [vmem:[%s16 + $0x18] sm:$0xff]
      %v1178 = vld [vmem:[%s16 + $0x20] sm:$0xff]
      %v1179 = vld [vmem:[%s16 + $0x28] sm:$0xff]
      %v1180 = vld [vmem:[%s16 + $0x30] sm:$0xff]
      %v1181 = vld [vmem:[%s16 + $0x38] sm:$0xff]
      %v1182 = vld [vmem:[%s16 + $0x40] sm:$0xff]
      %v1183 = vld [vmem:[%s16 + $0x48] sm:$0xff]
      %v1184 = vld [vmem:[%s16 + $0x50] sm:$0xff]
      %v1185 = vld [vmem:[%s16 + $0x58] sm:$0xff]
      %v1186 = vld [vmem:[%s16 + $0x60] sm:$0xff]
      %v1187 = vld [vmem:[%s16 + $0x68] sm:$0xff]
      %v1188 = vld [vmem:[%s16 + $0x70] sm:$0xff]
      %v1189 = vld [vmem:[%s16 + $0x78] sm:$0xff]
      %v1190 = vld [vmem:[%s17] sm:$0x3]
      %v1191 = vld [vmem:[%s18] sm:$0xff]
      %v1192 = vld [vmem:[%s18 + $0x8] sm:$0xff]
      %v1193 = vld [vmem:[%s18 + $0x10] sm:$0xff]
      %v1194 = vld [vmem:[%s18 + $0x18] sm:$0xff]
      %v1195 = vld [vmem:[%s18 + $0x20] sm:$0xff]
      %v1196 = vld [vmem:[%s18 + $0x28] sm:$0xff]
      %v1197 = vld [vmem:[%s18 + $0x30] sm:$0xff]
      %v1198 = vld [vmem:[%s18 + $0x38] sm:$0xff]
      %v1199 = vld [vmem:[%s18 + $0x40] sm:$0xff]
      %v1200 = vld [vmem:[%s18 + $0x48] sm:$0xff]
      %v1201 = vld [vmem:[%s18 + $0x50] sm:$0xff]
      %v1202 = vld [vmem:[%s18 + $0x58] sm:$0xff]
      %v1203 = vld [vmem:[%s18 + $0x60] sm:$0xff]
      %v1204 = vld [vmem:[%s18 + $0x68] sm:$0xff]
      %v1205 = vld [vmem:[%s18 + $0x70] sm:$0xff]
      %v1206 = vld [vmem:[%s18 + $0x78] sm:$0xff]
      %v1207 = vld [vmem:[%s18 + $0x80] sm:$0xff]
      %v1208 = vld [vmem:[%s18 + $0x88] sm:$0xff]
      %v1209 = vld [vmem:[%s18 + $0x90] sm:$0xff]
      %v1210 = vld [vmem:[%s18 + $0x98] sm:$0xff]
      %v1211 = vld [vmem:[%s18 + $0xa0] sm:$0xff]
      %v1212 = vld [vmem:[%s18 + $0xa8] sm:$0xff]
      %v1213 = vld [vmem:[%s18 + $0xb0] sm:$0xff]
      %v1214 = vld [vmem:[%s18 + $0xb8] sm:$0xff]
      %v1215 = vld [vmem:[%s18 + $0xc0] sm:$0xff]
      %v1216 = vld [vmem:[%s18 + $0xc8] sm:$0xff]
      %v1217 = vld [vmem:[%s18 + $0xd0] sm:$0xff]
      %v1218 = vld [vmem:[%s18 + $0xd8] sm:$0xff]
      %v1219 = vld [vmem:[%s18 + $0xe0] sm:$0xff]
      %v1220 = vld [vmem:[%s18 + $0xe8] sm:$0xff]
      %v1221 = vld [vmem:[%s18 + $0xf0] sm:$0xff]
      %v1222 = vld [vmem:[%s18 + $0xf8] sm:$0xff]
      %v1223 = vld [vmem:[%s19] sm:$0x1]
      %v1224 = vpack.c.bf16 %v1156, %v1155
      %v1225 = vpack.c.bf16 %v1159, %v1157
      %v1226 = vpack.c.bf16 %v1160, %v1158
      %v1227 = vpack.c.bf16 %v1163, %v1161
      %v1228 = vpack.c.bf16 %v1164, %v1162
      %v1229 = vpack.c.bf16 %v1167, %v1165
      %v1230 = vpack.c.bf16 %v1168, %v1166
      %v1231 = vpack.c.bf16 %v1171, %v1169
      %v1232 = vpack.c.bf16 %v1172, %v1170
      %v1234 = vlaneseq
      %v1235 = vshrl.u32 %v1234, 7
      %v1236 = vsub.s32 0, %v1235
      %v1237 = vrot.slane %v1173, %v1236
      %v1238 = vlaneseq
      %v1239 = vshrl.u32 %v1238, 7
      %v1240 = vsub.s32 1, %v1239
      %v1241 = vrot.slane %v1173, %v1240
      %v1245 = vsel %vm669, %v1224, 0
      %1247 = vmatprep.subr.bf16.mxu0 %v1226
      %1248 = vmatpush1.bf16.msra.mxu0 %v1225
      %1249 = vmatprep.subr.bf16.mxu0 %v1228
      %1250 = vmatpush1.bf16.msra.mxu0 %v1227
      %1251 = vmatprep.subr.bf16.mxu0 %v1230
      %1252 = vmatpush1.bf16.msra.mxu0 %v1229
      %1253 = vmatprep.subr.bf16.mxu0 %v1232
      %1254 = vmatpush1.bf16.msra.mxu0 %v1231
      %1255 = vmatprep.subr.bf16.mxu0 0
      %1256 = vmatpush1.bf16.msra.mxu0 0
      %1257 = vmatprep.subr.bf16.mxu0 0
      %1258 = vmatpush1.bf16.msra.mxu0 0
      %1259 = vmatprep.subr.bf16.mxu0 0
      %1260 = vmatpush1.bf16.msra.mxu0 0
      %1261 = vmatprep.subr.bf16.mxu0 0
      %1262 = vmatpush1.bf16.msra.mxu0 0
      %1263 = vmatprep.subr.bf16.mxu0 0
      %1264 = vmatpush1.bf16.msra.mxu0 0
      %1265 = vmatprep.subr.bf16.mxu0 0
      %1266 = vmatpush1.bf16.msra.mxu0 0
      %1267 = vmatprep.subr.bf16.mxu0 0
      %1268 = vmatpush1.bf16.msra.mxu0 0
      %1269 = vmatprep.subr.bf16.mxu0 0
      %1270 = vmatpush1.bf16.msra.mxu0 0
      %1271 = vmatprep.subr.bf16.mxu0 0
      %1272 = vmatpush1.bf16.msra.mxu0 0
      %1273 = vmatprep.subr.bf16.mxu0 0
      %1274 = vmatpush1.bf16.msra.mxu0 0
      %1275 = vmatprep.subr.bf16.mxu0 0
      %1276 = vmatpush1.bf16.msra.mxu0 0
      %1277 = vmatprep.subr.bf16.mxu0 0
      %1278 = vmatpush1.bf16.msra.mxu0 0
      %1279 = vmatprep.mubr.bf16.mxu0 0
      %1280 = vmatmul.mubr.bf16.gmra.mrb[0].mxu0 %v1245
      %v1281 = vpop.f32.mrb[0].mxu0
      %v1282 = vadd.f32 %v1237, %v1281
      %v1283 = vpop.f32.mrb[0].mxu0
      %v1284 = vadd.f32 %v1241, %v1283
      %v1285 = vpop.f32.mrb[0].mxu0
      %v1286 = vadd.f32 %v1237, %v1285
      %v1287 = vpop.f32.mrb[0].mxu0
      %v1288 = vadd.f32 %v1241, %v1287
      %1289 = vdwg.mxu0
      %v1290 = vpack.c.bf16 %v1176, %v1174
      %v1291 = vpack.c.bf16 %v1177, %v1175
      %v1292 = vpack.c.bf16 %v1180, %v1178
      %v1293 = vpack.c.bf16 %v1181, %v1179
      %v1294 = vpack.c.bf16 %v1184, %v1182
      %v1295 = vpack.c.bf16 %v1185, %v1183
      %v1296 = vpack.c.bf16 %v1188, %v1186
      %v1297 = vpack.c.bf16 %v1189, %v1187
      %v1299 = vlaneseq
      %v1300 = vshrl.u32 %v1299, 7
      %v1301 = vsub.s32 0, %v1300
      %v1302 = vrot.slane %v1190, %v1301
      %v1303 = vlaneseq
      %v1304 = vshrl.u32 %v1303, 7
      %v1305 = vsub.s32 1, %v1304
      %v1306 = vrot.slane %v1190, %v1305
      %1309 = vmatprep.subr.bf16.mxu0 %v1291
      %1310 = vmatpush1.bf16.msra.mxu0 %v1290
      %1311 = vmatprep.subr.bf16.mxu0 %v1293
      %1312 = vmatpush1.bf16.msra.mxu0 %v1292
      %1313 = vmatprep.subr.bf16.mxu0 %v1295
      %1314 = vmatpush1.bf16.msra.mxu0 %v1294
      %1315 = vmatprep.subr.bf16.mxu0 %v1297
      %1316 = vmatpush1.bf16.msra.mxu0 %v1296
      %1317 = vmatprep.subr.bf16.mxu0 0
      %1318 = vmatpush1.bf16.msra.mxu0 0
      %1319 = vmatprep.subr.bf16.mxu0 0
      %1320 = vmatpush1.bf16.msra.mxu0 0
      %1321 = vmatprep.subr.bf16.mxu0 0
      %1322 = vmatpush1.bf16.msra.mxu0 0
      %1323 = vmatprep.subr.bf16.mxu0 0
      %1324 = vmatpush1.bf16.msra.mxu0 0
      %1325 = vmatprep.subr.bf16.mxu0 0
      %1326 = vmatpush1.bf16.msra.mxu0 0
      %1327 = vmatprep.subr.bf16.mxu0 0
      %1328 = vmatpush1.bf16.msra.mxu0 0
      %1329 = vmatprep.subr.bf16.mxu0 0
      %1330 = vmatpush1.bf16.msra.mxu0 0
      %1331 = vmatprep.subr.bf16.mxu0 0
      %1332 = vmatpush1.bf16.msra.mxu0 0
      %1333 = vmatprep.subr.bf16.mxu0 0
      %1334 = vmatpush1.bf16.msra.mxu0 0
      %1335 = vmatprep.subr.bf16.mxu0 0
      %1336 = vmatpush1.bf16.msra.mxu0 0
      %1337 = vmatprep.subr.bf16.mxu0 0
      %1338 = vmatpush1.bf16.msra.mxu0 0
      %1339 = vmatprep.subr.bf16.mxu0 0
      %1340 = vmatpush1.bf16.msra.mxu0 0
      %1341 = vmatprep.mubr.bf16.mxu0 0
      %1342 = vmatmul.mubr.bf16.gmra.mrb[0].mxu0 %v1245
      %v1343 = vpop.f32.mrb[0].mxu0
      %v1344 = vadd.f32 %v1302, %v1343
      %v1345 = vpop.f32.mrb[0].mxu0
      %v1346 = vadd.f32 %v1306, %v1345
      %v1347 = vpop.f32.mrb[0].mxu0
      %v1348 = vadd.f32 %v1302, %v1347
      %v1349 = vpop.f32.mrb[0].mxu0
      %v1350 = vadd.f32 %v1306, %v1349
      %1351 = vdwg.mxu0
      %v1352 = vmul.f32 %v1344, 0.5
      %v1353 = vmul.f32 %v1346, 0.5
      %v1354 = vmul.f32 %v1348, 0.5
      %v1355 = vmul.f32 %v1350, 0.5
      %v1356 = vmul.f32 %v1344, 0.044715
      %v1357 = vmul.f32 %v1346, 0.044715
      %v1358 = vmul.f32 %v1348, 0.044715
      %v1359 = vmul.f32 %v1350, 0.044715
      %v1360 = vmul.f32 %v1356, %v1344
      %v1361 = vmul.f32 %v1357, %v1346
      %v1362 = vmul.f32 %v1358, %v1348
      %v1363 = vmul.f32 %v1359, %v1350
      %v1364 = vmul.f32 %v1360, %v1344
      %v1365 = vmul.f32 %v1361, %v1346
      %v1366 = vmul.f32 %v1362, %v1348
      %v1367 = vmul.f32 %v1363, %v1350
      %v1368 = vadd.f32 %v1344, %v1364
      %v1369 = vadd.f32 %v1346, %v1365
      %v1370 = vadd.f32 %v1348, %v1366
      %v1371 = vadd.f32 %v1350, %v1367
      %v1372 = vmul.f32 %v1368, 0.7978846
      %v1373 = vmul.f32 %v1369, 0.7978846
      %v1374 = vmul.f32 %v1370, 0.7978846
      %v1375 = vmul.f32 %v1371, 0.7978846
      %v1376 = vtanh.pop %v1372
      %v1377 = vtanh.pop %v1373
      %v1378 = vtanh.pop %v1374
      %v1379 = vtanh.pop %v1375
      %v1380 = vadd.f32 %v1376, 1.0
      %v1381 = vadd.f32 %v1377, 1.0
      %v1382 = vadd.f32 %v1378, 1.0
      %v1383 = vadd.f32 %v1379, 1.0
      %v1384 = vmul.f32 %v1352, %v1380
      %v1385 = vmul.f32 %v1353, %v1381
      %v1386 = vmul.f32 %v1354, %v1382
      %v1387 = vmul.f32 %v1355, %v1383
      %v1388 = vmul.f32 %v1282, %v1384
      %v1389 = vmul.f32 %v1284, %v1385
      %v1390 = vmul.f32 %v1286, %v1386
      %v1391 = vmul.f32 %v1288, %v1387
      %v1392 = vpack.c.bf16 %v1390, %v1388
      %v1393 = vpack.c.bf16 %v1391, %v1389
      %v1394 = vpack.c.bf16 %v1192, %v1191
      %v1395 = vpack.c.bf16 %v1194, %v1193
      %v1396 = vpack.c.bf16 %v1196, %v1195
      %v1397 = vpack.c.bf16 %v1198, %v1197
      %v1398 = vpack.c.bf16 %v1200, %v1199
      %v1399 = vpack.c.bf16 %v1202, %v1201
      %v1400 = vpack.c.bf16 %v1204, %v1203
      %v1401 = vpack.c.bf16 %v1206, %v1205
      %v1402 = vpack.c.bf16 %v1208, %v1207
      %v1403 = vpack.c.bf16 %v1210, %v1209
      %v1404 = vpack.c.bf16 %v1212, %v1211
      %v1405 = vpack.c.bf16 %v1214, %v1213
      %v1406 = vpack.c.bf16 %v1216, %v1215
      %v1407 = vpack.c.bf16 %v1218, %v1217
      %v1408 = vpack.c.bf16 %v1220, %v1219
      %v1409 = vpack.c.bf16 %v1222, %v1221
      %v1411 = vlaneseq
      %v1412 = vshrl.u32 %v1411, 7
      %v1413 = vsub.s32 0, %v1412
      %v1414 = vrot.slane %v1223, %v1413
      %1416 = vmatprep.subr.bf16.mxu0 0
      %1417 = vmatpush1.bf16.msra.mxu0 %v1394
      %1418 = vmatprep.subr.bf16.mxu0 0
      %1419 = vmatpush1.bf16.msra.mxu0 %v1395
      %1420 = vmatprep.subr.bf16.mxu0 0
      %1421 = vmatpush1.bf16.msra.mxu0 %v1396
      %1422 = vmatprep.subr.bf16.mxu0 0
      %1423 = vmatpush1.bf16.msra.mxu0 %v1397
      %1424 = vmatprep.subr.bf16.mxu0 0
      %1425 = vmatpush1.bf16.msra.mxu0 %v1398
      %1426 = vmatprep.subr.bf16.mxu0 0
      %1427 = vmatpush1.bf16.msra.mxu0 %v1399
      %1428 = vmatprep.subr.bf16.mxu0 0
      %1429 = vmatpush1.bf16.msra.mxu0 %v1400
      %1430 = vmatprep.subr.bf16.mxu0 0
      %1431 = vmatpush1.bf16.msra.mxu0 %v1401
      %1432 = vmatprep.subr.bf16.mxu0 0
      %1433 = vmatpush1.bf16.msra.mxu0 %v1402
      %1434 = vmatprep.subr.bf16.mxu0 0
      %1435 = vmatpush1.bf16.msra.mxu0 %v1403
      %1436 = vmatprep.subr.bf16.mxu0 0
      %1437 = vmatpush1.bf16.msra.mxu0 %v1404
      %1438 = vmatprep.subr.bf16.mxu0 0
      %1439 = vmatpush1.bf16.msra.mxu0 %v1405
      %1440 = vmatprep.subr.bf16.mxu0 0
      %1441 = vmatpush1.bf16.msra.mxu0 %v1406
      %1442 = vmatprep.subr.bf16.mxu0 0
      %1443 = vmatpush1.bf16.msra.mxu0 %v1407
      %1444 = vmatprep.subr.bf16.mxu0 0
      %1445 = vmatpush1.bf16.msra.mxu0 %v1408
      %1446 = vmatprep.subr.bf16.mxu0 0
      %1447 = vmatpush1.bf16.msra.mxu0 %v1409
      %1448 = vmatprep.mubr.bf16.mxu0 %v1393
      %1449 = vmatmul.mubr.bf16.gmra.mrb[0].mxu0 %v1392
      %v1450 = vpop.f32.mrb[0].mxu0
      %v1451 = vadd.f32 %v1414, %v1450
      %v1452 = vpop.f32.mrb[0].mxu0
      %v1453 = vpop.f32.mrb[0].mxu0
      %v1454 = vadd.f32 %v1414, %v1453
      %v1455 = vpop.f32.mrb[0].mxu0
      %1456 = vdwg.mxu0
      %v1457 = vadd.f32 %v1451, %v1111
      %v1458 = vadd.f32 %v1454, %v1112
      %1459 = vst.msk [vmem:[%s663] sm:$0xff] %vm669, %v1457
      %1460 = vst.msk [vmem:[%s663 + $0x8] sm:$0xff] %vm669, %v1458
      %p1461 = scmp.lt.s32.totalorder %s31, 1
      %s1462 = scalar_select %p1461, %s31, 1
      %s1463 = smul.addr %s1462, 2
      %s1464 = smul.addr %s1463, 8
      %s1465 = scalar_lea.vmem %s20, %s1464
      // Predicated region
      $region101: #{forward.6} parent=99 // pred_check
        %p1466 = pneg %p484
      $region102: #{forward.6} parent=99 // pred_check_branch
        %1468 = sbr.rel (%p1466) target = $region104
      $region103: #{forward.6} parent=99 // pred_region
        _
      $region104: #{forward.6} parent=99 // pred_fallthru
        _
    $region100: #{forward.6} parent=5 // pred_fallthru
      _
    %p1469 = scmp.le.s32.totalorder 2, %s26
    // Predicated region
    $region105: #{forward.6} parent=5 // pred_check
      %p1470 = pneg %p1469
    $region106: #{forward.6} parent=5 // pred_check_branch
      %1472 = sbr.rel (%p1470) target = $region108
    $region107: #{forward.6} parent=5 // pred_region
      %s1473 = ssub.s32 %s26, 2
      // Predicated region
      $region109: #{forward.6} parent=107 // pred_check
        %p1474 = pneg %p490
      $region110: #{forward.6} parent=107 // pred_check_branch
        %1476 = sbr.rel (%p1474) target = $region112
      $region111: #{forward.6} parent=107 // pred_region
        %p1477 = scmp.lt.s32.totalorder %s32, 1
        %s1478 = scalar_select %p1477, %s32, 1
        %s1479 = smul.addr %s1478, 2
        %s1480 = smul.addr %s1479, 8
        %s1481 = scalar_lea.vmem %s20, %s1480
      $region112: #{forward.6} parent=107 // pred_fallthru
        _
    $region108: #{forward.6} parent=5 // pred_fallthru
      _
  $region6: #{forward.6} parent=0 // loop_footer
    %s30 = sadd.s32 1, %s26
  $region7: #{forward.6} parent=0 // loop_footer_branch
    %25 = sbr.rel target = $region3
  $region8: #{forward.6} parent=0 // loop_exit
    _

// kernel: forward.7
$region0: #{forward.7}
  #allocation0 [shape = 'u32[]', space=smem, size = 0x4, offset = 0x4, fixed_abs, tag = 'smem constant byte address 0x4 - core index']
  #allocation1 [shape = 'u32[144,128]{1,0:T(1,128)}', space=vmem, size = 0x12000, scoped, tag = 'internal scratch']
  %s0 = inlined_call_operand.vmem [shape: f32[2,16,64], index: 0, kind: input, shape index: {}]
  %s1 = inlined_call_operand.vmem [shape: f32[1,64], index: 1, kind: input, shape index: {}]
  %s2 = inlined_call_operand.vmem [shape: f32[1,64], index: 2, kind: input, shape index: {}]
  %s3 = inlined_call_operand.vmem [shape: f32[4,64,16], index: 3, kind: input, shape index: {}]
  %s4 = inlined_call_operand.vmem [shape: f32[4,64,16], index: 4, kind: input, shape index: {}]
  %s5 = inlined_call_operand.vmem [shape: f32[4,64,16], index: 5, kind: input, shape index: {}]
  %s6 = inlined_call_operand.vmem [shape: f32[4,16,64], index: 6, kind: input, shape index: {}]
  %s7 = inlined_call_operand.vmem [shape: f32[1,64], index: 7, kind: input, shape index: {}]
  %s8 = inlined_call_operand.vmem [shape: f32[1,64], index: 8, kind: input, shape index: {}]
  %s9 = inlined_call_operand.vmem [shape: f32[1,64], index: 9, kind: input, shape index: {}]
  %s10 = inlined_call_operand.vmem [shape: f32[64,256], index: 10, kind: input, shape index: {}]
  %s11 = inlined_call_operand.vmem [shape: f32[1,256], index: 11, kind: input, shape index: {}]
  %s12 = inlined_call_operand.vmem [shape: f32[64,256], index: 12, kind: input, shape index: {}]
  %s13 = inlined_call_operand.vmem [shape: f32[1,256], index: 13, kind: input, shape index: {}]
  %s14 = inlined_call_operand.vmem [shape: f32[256,64], index: 14, kind: input, shape index: {}]
  %s15 = inlined_call_operand.vmem [shape: f32[1,64], index: 15, kind: input, shape index: {}]
  %s16 = inlined_call_operand.vmem [shape: f32[2,16,64], index: 16, kind: output, shape index: {}]
  %s17 = sld [smem:[#allocation0]]
  $region97: #{forward.7} parent=0
    _
  %s19 = ssub.s32 1, %s17
  %s20 = scalar_select 0, %s19, %s17
  loop: start=0, step=1, limit=4
  $region2: #{forward.7} parent=0 // loop_pre_header
    _
  $region3: #{forward.7} parent=0 // loop_header
    %s22 = sphi 0, %s26
    %p23 = scmp.ge.s32.totalorder %s22, 4
    %s32 = sphi 0, %s34
    %s35 = sphi 0, %s32
    %s36 = sphi 0, %s35
    %s52 = sphi 0, %s36
    %s56 = sphi 0, %s56
    %s58 = sphi 0, %s56
    %s59 = sphi 0, %s58
    %s73 = sphi 0, %s59
    %s77 = sphi 0, %s77
    %s79 = sphi 0, %s77
    %s80 = sphi 0, %s79
    %s94 = sphi 0, %s80
    %s98 = sphi 0, %s98
    %s100 = sphi 0, %s98
    %s101 = sphi 0, %s100
    %s115 = sphi 0, %s101
    %s119 = sphi 0, %s119
    %s121 = sphi 0, %s119
    %s122 = sphi 0, %s121
    %s136 = sphi 0, %s122
    %s140 = sphi 0, %s140
    %s142 = sphi 0, %s140
    %s143 = sphi 0, %s142
    %s157 = sphi 0, %s143
    %s161 = sphi 0, %s161
    %s163 = sphi 0, %s161
    %s164 = sphi 0, %s163
    %s178 = sphi 0, %s164
    %s182 = sphi 0, %s182
    %s184 = sphi 0, %s182
    %s185 = sphi 0, %s184
    %s199 = sphi 0, %s185
    %s203 = sphi 0, %s203
    %s205 = sphi 0, %s203
    %s206 = sphi 0, %s205
    %s220 = sphi 0, %s206
    %s224 = sphi 0, %s224
    %s226 = sphi 0, %s224
    %s227 = sphi 0, %s226
    %s241 = sphi 0, %s227
    %s245 = sphi 0, %s245
    %s247 = sphi 0, %s245
    %s248 = sphi 0, %s247
    %s262 = sphi 0, %s248
    %s266 = sphi 0, %s266
    %s268 = sphi 0, %s266
    %s269 = sphi 0, %s268
    %s283 = sphi 0, %s269
    %s287 = sphi 0, %s287
    %s289 = sphi 0, %s287
    %s290 = sphi 0, %s289
    %s304 = sphi 0, %s290
    %s308 = sphi 0, %s308
    %s310 = sphi 0, %s308
    %s311 = sphi 0, %s310
    %s325 = sphi 0, %s311
    %s329 = sphi 0, %s329
    %s331 = sphi 0, %s329
    %s332 = sphi 0, %s331
    %s346 = sphi 0, %s332
    %s350 = sphi 0, %s350
    %s352 = sphi 0, %s350
    %s353 = sphi 0, %s352
    %s367 = sphi 0, %s353
    %s373 = sphi 0, %s375
    %s376 = sphi 0, %s373
    %s377 = sphi 0, %s376
    %s393 = sphi 0, %s377
  $region4: #{forward.7} parent=0 // loop_header_branch
    %25 = sbr.rel (%p23) target = $region8
  $region5: #{forward.7} parent=0 // loop_body
    %s27 = ssub.s32 %s22, 1
    %s28 = ssub.s32 %s22, 2
    %s29 = sadd.s32 %s22, 1
    %s30 = ssub.s32 %s22, %s29
    %p31 = scmp.eq.s32.totalorder %s30, 0
    %s33 = sadd.s32 %s32, 1
    %s34 = scalar_select %p31, %s32, %s33
    %p37 = pneg %p31
    %p38 = scmp.eq.s32.totalorder %s22, 1
    %p39 = por %p37, %p38
    %p40 = scmp.ne.s32.totalorder %s32, %s35
    %p41 = scmp.eq.s32.totalorder %s22, 0
    %p42 = por %p40, %p41
    %p43 = scmp.ne.s32.totalorder %s32, %s35
    %p44 = scmp.eq.s32.totalorder %s27, 1
    %p45 = por %p43, %p44
    %p46 = scmp.ne.s32.totalorder %s35, %s36
    %p47 = scmp.eq.s32.totalorder %s27, 0
    %p48 = por %p46, %p47
    %p49 = scmp.ne.s32.totalorder %s35, %s36
    %p50 = scmp.eq.s32.totalorder %s28, 1
    %p51 = por %p49, %p50
    %p53 = scmp.ne.s32.totalorder %s36, %s52
    %p54 = scmp.eq.s32.totalorder %s28, 0
    %p55 = por %p53, %p54
    %s57 = sadd.s32 %s56, 1
    %p60 = scmp.eq.s32.totalorder %s22, 1
    %p61 = scmp.ne.s32.totalorder %s56, %s58
    %p62 = scmp.eq.s32.totalorder %s22, 0
    %p63 = por %p61, %p62
    %p64 = scmp.ne.s32.totalorder %s56, %s58
    %p65 = scmp.eq.s32.totalorder %s27, 1
    %p66 = por %p64, %p65
    %p67 = scmp.ne.s32.totalorder %s58, %s59
    %p68 = scmp.eq.s32.totalorder %s27, 0
    %p69 = por %p67, %p68
    %p70 = scmp.ne.s32.totalorder %s58, %s59
    %p71 = scmp.eq.s32.totalorder %s28, 1
    %p72 = por %p70, %p71
    %p74 = scmp.ne.s32.totalorder %s59, %s73
    %p75 = scmp.eq.s32.totalorder %s28, 0
    %p76 = por %p74, %p75
    %s78 = sadd.s32 %s77, 1
    %p81 = scmp.eq.s32.totalorder %s22, 1
    %p82 = scmp.ne.s32.totalorder %s77, %s79
    %p83 = scmp.eq.s32.totalorder %s22, 0
    %p84 = por %p82, %p83
    %p85 = scmp.ne.s32.totalorder %s77, %s79
    %p86 = scmp.eq.s32.totalorder %s27, 1
    %p87 = por %p85, %p86
    %p88 = scmp.ne.s32.totalorder %s79, %s80
    %p89 = scmp.eq.s32.totalorder %s27, 0
    %p90 = por %p88, %p89
    %p91 = scmp.ne.s32.totalorder %s79, %s80
    %p92 = scmp.eq.s32.totalorder %s28, 1
    %p93 = por %p91, %p92
    %p95 = scmp.ne.s32.totalorder %s80, %s94
    %p96 = scmp.eq.s32.totalorder %s28, 0
    %p97 = por %p95, %p96
    %s99 = sadd.s32 %s98, 1
    %p102 = scmp.eq.s32.totalorder %s22, 1
    %p103 = scmp.ne.s32.totalorder %s98, %s100
    %p104 = scmp.eq.s32.totalorder %s22, 0
    %p105 = por %p103, %p104
    %p106 = scmp.ne.s32.totalorder %s98, %s100
    %p107 = scmp.eq.s32.totalorder %s27, 1
    %p108 = por %p106, %p107
    %p109 = scmp.ne.s32.totalorder %s100, %s101
    %p110 = scmp.eq.s32.totalorder %s27, 0
    %p111 = por %p109, %p110
    %p112 = scmp.ne.s32.totalorder %s100, %s101
    %p113 = scmp.eq.s32.totalorder %s28, 1
    %p114 = por %p112, %p113
    %p116 = scmp.ne.s32.totalorder %s101, %s115
    %p117 = scmp.eq.s32.totalorder %s28, 0
    %p118 = por %p116, %p117
    %s120 = sadd.s32 %s119, 1
    %p123 = scmp.eq.s32.totalorder %s22, 1
    %p124 = scmp.ne.s32.totalorder %s119, %s121
    %p125 = scmp.eq.s32.totalorder %s22, 0
    %p126 = por %p124, %p125
    %p127 = scmp.ne.s32.totalorder %s119, %s121
    %p128 = scmp.eq.s32.totalorder %s27, 1
    %p129 = por %p127, %p128
    %p130 = scmp.ne.s32.totalorder %s121, %s122
    %p131 = scmp.eq.s32.totalorder %s27, 0
    %p132 = por %p130, %p131
    %p133 = scmp.ne.s32.totalorder %s121, %s122
    %p134 = scmp.eq.s32.totalorder %s28, 1
    %p135 = por %p133, %p134
    %p137 = scmp.ne.s32.totalorder %s122, %s136
    %p138 = scmp.eq.s32.totalorder %s28, 0
    %p139 = por %p137, %p138
    %s141 = sadd.s32 %s140, 1
    %p144 = scmp.eq.s32.totalorder %s22, 1
    %p145 = scmp.ne.s32.totalorder %s140, %s142
    %p146 = scmp.eq.s32.totalorder %s22, 0
    %p147 = por %p145, %p146
    %p148 = scmp.ne.s32.totalorder %s140, %s142
    %p149 = scmp.eq.s32.totalorder %s27, 1
    %p150 = por %p148, %p149
    %p151 = scmp.ne.s32.totalorder %s142, %s143
    %p152 = scmp.eq.s32.totalorder %s27, 0
    %p153 = por %p151, %p152
    %p154 = scmp.ne.s32.totalorder %s142, %s143
    %p155 = scmp.eq.s32.totalorder %s28, 1
    %p156 = por %p154, %p155
    %p158 = scmp.ne.s32.totalorder %s143, %s157
    %p159 = scmp.eq.s32.totalorder %s28, 0
    %p160 = por %p158, %p159
    %s162 = sadd.s32 %s161, 1
    %p165 = scmp.eq.s32.totalorder %s22, 1
    %p166 = scmp.ne.s32.totalorder %s161, %s163
    %p167 = scmp.eq.s32.totalorder %s22, 0
    %p168 = por %p166, %p167
    %p169 = scmp.ne.s32.totalorder %s161, %s163
    %p170 = scmp.eq.s32.totalorder %s27, 1
    %p171 = por %p169, %p170
    %p172 = scmp.ne.s32.totalorder %s163, %s164
    %p173 = scmp.eq.s32.totalorder %s27, 0
    %p174 = por %p172, %p173
    %p175 = scmp.ne.s32.totalorder %s163, %s164
    %p176 = scmp.eq.s32.totalorder %s28, 1
    %p177 = por %p175, %p176
    %p179 = scmp.ne.s32.totalorder %s164, %s178
    %p180 = scmp.eq.s32.totalorder %s28, 0
    %p181 = por %p179, %p180
    %s183 = sadd.s32 %s182, 1
    %p186 = scmp.eq.s32.totalorder %s22, 1
    %p187 = scmp.ne.s32.totalorder %s182, %s184
    %p188 = scmp.eq.s32.totalorder %s22, 0
    %p189 = por %p187, %p188
    %p190 = scmp.ne.s32.totalorder %s182, %s184
    %p191 = scmp.eq.s32.totalorder %s27, 1
    %p192 = por %p190, %p191
    %p193 = scmp.ne.s32.totalorder %s184, %s185
    %p194 = scmp.eq.s32.totalorder %s27, 0
    %p195 = por %p193, %p194
    %p196 = scmp.ne.s32.totalorder %s184, %s185
    %p197 = scmp.eq.s32.totalorder %s28, 1
    %p198 = por %p196, %p197
    %p200 = scmp.ne.s32.totalorder %s185, %s199
    %p201 = scmp.eq.s32.totalorder %s28, 0
    %p202 = por %p200, %p201
    %s204 = sadd.s32 %s203, 1
    %p207 = scmp.eq.s32.totalorder %s22, 1
    %p208 = scmp.ne.s32.totalorder %s203, %s205
    %p209 = scmp.eq.s32.totalorder %s22, 0
    %p210 = por %p208, %p209
    %p211 = scmp.ne.s32.totalorder %s203, %s205
    %p212 = scmp.eq.s32.totalorder %s27, 1
    %p213 = por %p211, %p212
    %p214 = scmp.ne.s32.totalorder %s205, %s206
    %p215 = scmp.eq.s32.totalorder %s27, 0
    %p216 = por %p214, %p215
    %p217 = scmp.ne.s32.totalorder %s205, %s206
    %p218 = scmp.eq.s32.totalorder %s28, 1
    %p219 = por %p217, %p218
    %p221 = scmp.ne.s32.totalorder %s206, %s220
    %p222 = scmp.eq.s32.totalorder %s28, 0
    %p223 = por %p221, %p222
    %s225 = sadd.s32 %s224, 1
    %p228 = scmp.eq.s32.totalorder %s22, 1
    %p229 = scmp.ne.s32.totalorder %s224, %s226
    %p230 = scmp.eq.s32.totalorder %s22, 0
    %p231 = por %p229, %p230
    %p232 = scmp.ne.s32.totalorder %s224, %s226
    %p233 = scmp.eq.s32.totalorder %s27, 1
    %p234 = por %p232, %p233
    %p235 = scmp.ne.s32.totalorder %s226, %s227
    %p236 = scmp.eq.s32.totalorder %s27, 0
    %p237 = por %p235, %p236
    %p238 = scmp.ne.s32.totalorder %s226, %s227
    %p239 = scmp.eq.s32.totalorder %s28, 1
    %p240 = por %p238, %p239
    %p242 = scmp.ne.s32.totalorder %s227, %s241
    %p243 = scmp.eq.s32.totalorder %s28, 0
    %p244 = por %p242, %p243
    %s246 = sadd.s32 %s245, 1
    %p249 = scmp.eq.s32.totalorder %s22, 1
    %p250 = scmp.ne.s32.totalorder %s245, %s247
    %p251 = scmp.eq.s32.totalorder %s22, 0
    %p252 = por %p250, %p251
    %p253 = scmp.ne.s32.totalorder %s245, %s247
    %p254 = scmp.eq.s32.totalorder %s27, 1
    %p255 = por %p253, %p254
    %p256 = scmp.ne.s32.totalorder %s247, %s248
    %p257 = scmp.eq.s32.totalorder %s27, 0
    %p258 = por %p256, %p257
    %p259 = scmp.ne.s32.totalorder %s247, %s248
    %p260 = scmp.eq.s32.totalorder %s28, 1
    %p261 = por %p259, %p260
    %p263 = scmp.ne.s32.totalorder %s248, %s262
    %p264 = scmp.eq.s32.totalorder %s28, 0
    %p265 = por %p263, %p264
    %s267 = sadd.s32 %s266, 1
    %p270 = scmp.eq.s32.totalorder %s22, 1
    %p271 = scmp.ne.s32.totalorder %s266, %s268
    %p272 = scmp.eq.s32.totalorder %s22, 0
    %p273 = por %p271, %p272
    %p274 = scmp.ne.s32.totalorder %s266, %s268
    %p275 = scmp.eq.s32.totalorder %s27, 1
    %p276 = por %p274, %p275
    %p277 = scmp.ne.s32.totalorder %s268, %s269
    %p278 = scmp.eq.s32.totalorder %s27, 0
    %p279 = por %p277, %p278
    %p280 = scmp.ne.s32.totalorder %s268, %s269
    %p281 = scmp.eq.s32.totalorder %s28, 1
    %p282 = por %p280, %p281
    %p284 = scmp.ne.s32.totalorder %s269, %s283
    %p285 = scmp.eq.s32.totalorder %s28, 0
    %p286 = por %p284, %p285
    %s288 = sadd.s32 %s287, 1
    %p291 = scmp.eq.s32.totalorder %s22, 1
    %p292 = scmp.ne.s32.totalorder %s287, %s289
    %p293 = scmp.eq.s32.totalorder %s22, 0
    %p294 = por %p292, %p293
    %p295 = scmp.ne.s32.totalorder %s287, %s289
    %p296 = scmp.eq.s32.totalorder %s27, 1
    %p297 = por %p295, %p296
    %p298 = scmp.ne.s32.totalorder %s289, %s290
    %p299 = scmp.eq.s32.totalorder %s27, 0
    %p300 = por %p298, %p299
    %p301 = scmp.ne.s32.totalorder %s289, %s290
    %p302 = scmp.eq.s32.totalorder %s28, 1
    %p303 = por %p301, %p302
    %p305 = scmp.ne.s32.totalorder %s290, %s304
    %p306 = scmp.eq.s32.totalorder %s28, 0
    %p307 = por %p305, %p306
    %s309 = sadd.s32 %s308, 1
    %p312 = scmp.eq.s32.totalorder %s22, 1
    %p313 = scmp.ne.s32.totalorder %s308, %s310
    %p314 = scmp.eq.s32.totalorder %s22, 0
    %p315 = por %p313, %p314
    %p316 = scmp.ne.s32.totalorder %s308, %s310
    %p317 = scmp.eq.s32.totalorder %s27, 1
    %p318 = por %p316, %p317
    %p319 = scmp.ne.s32.totalorder %s310, %s311
    %p320 = scmp.eq.s32.totalorder %s27, 0
    %p321 = por %p319, %p320
    %p322 = scmp.ne.s32.totalorder %s310, %s311
    %p323 = scmp.eq.s32.totalorder %s28, 1
    %p324 = por %p322, %p323
    %p326 = scmp.ne.s32.totalorder %s311, %s325
    %p327 = scmp.eq.s32.totalorder %s28, 0
    %p328 = por %p326, %p327
    %s330 = sadd.s32 %s329, 1
    %p333 = scmp.eq.s32.totalorder %s22, 1
    %p334 = scmp.ne.s32.totalorder %s329, %s331
    %p335 = scmp.eq.s32.totalorder %s22, 0
    %p336 = por %p334, %p335
    %p337 = scmp.ne.s32.totalorder %s329, %s331
    %p338 = scmp.eq.s32.totalorder %s27, 1
    %p339 = por %p337, %p338
    %p340 = scmp.ne.s32.totalorder %s331, %s332
    %p341 = scmp.eq.s32.totalorder %s27, 0
    %p342 = por %p340, %p341
    %p343 = scmp.ne.s32.totalorder %s331, %s332
    %p344 = scmp.eq.s32.totalorder %s28, 1
    %p345 = por %p343, %p344
    %p347 = scmp.ne.s32.totalorder %s332, %s346
    %p348 = scmp.eq.s32.totalorder %s28, 0
    %p349 = por %p347, %p348
    %s351 = sadd.s32 %s350, 1
    %p354 = scmp.eq.s32.totalorder %s22, 1
    %p355 = scmp.ne.s32.totalorder %s350, %s352
    %p356 = scmp.eq.s32.totalorder %s22, 0
    %p357 = por %p355, %p356
    %p358 = scmp.ne.s32.totalorder %s350, %s352
    %p359 = scmp.eq.s32.totalorder %s27, 1
    %p360 = por %p358, %p359
    %p361 = scmp.ne.s32.totalorder %s352, %s353
    %p362 = scmp.eq.s32.totalorder %s27, 0
    %p363 = por %p361, %p362
    %p364 = scmp.ne.s32.totalorder %s352, %s353
    %p365 = scmp.eq.s32.totalorder %s28, 1
    %p366 = por %p364, %p365
    %p368 = scmp.ne.s32.totalorder %s353, %s367
    %p369 = scmp.eq.s32.totalorder %s28, 0
    %p370 = por %p368, %p369
    %s371 = ssub.s32 %s22, %s29
    %p372 = scmp.eq.s32.totalorder %s371, 0
    %s374 = sadd.s32 %s373, 1
    %s375 = scalar_select %p372, %s373, %s374
    %p378 = pneg %p372
    %p379 = scmp.eq.s32.totalorder %s22, 1
    %p380 = por %p378, %p379
    %p381 = scmp.ne.s32.totalorder %s373, %s376
    %p382 = scmp.eq.s32.totalorder %s22, 0
    %p383 = por %p381, %p382
    %p384 = scmp.ne.s32.totalorder %s373, %s376
    %p385 = scmp.eq.s32.totalorder %s27, 1
    %p386 = por %p384, %p385
    %p387 = scmp.ne.s32.totalorder %s376, %s377
    %p388 = scmp.eq.s32.totalorder %s27, 0
    %p389 = por %p387, %p388
    %p390 = scmp.ne.s32.totalorder %s376, %s377
    %p391 = scmp.eq.s32.totalorder %s28, 1
    %p392 = por %p390, %p391
    %p394 = scmp.ne.s32.totalorder %s377, %s393
    %p395 = scmp.eq.s32.totalorder %s28, 0
    %p396 = por %p394, %p395
    %p397 = scmp.le.s32.totalorder 1, %s22
    %p398 = scmp.lt.s32.totalorder %s22, 3
    %p399 = pnand %p397, %p398
    %p400 = pneg %p399
    // Predicated region
    $region9: #{forward.7} parent=5 // pred_check
      _
    $region10: #{forward.7} parent=5 // pred_check_branch
      %402 = sbr.rel (%p399) target = $region12
    $region11: #{forward.7} parent=5 // pred_region
      %s403 = ssub.s32 %s22, 1
      // Predicated region
      $region13: #{forward.7} parent=11 // pred_check
        %p404 = pneg %p69
      $region14: #{forward.7} parent=11 // pred_check_branch
        %406 = sbr.rel (%p404) target = $region16
      $region15: #{forward.7} parent=11 // pred_region
        _
      $region16: #{forward.7} parent=11 // pred_fallthru
        _
      // Predicated region
      $region17: #{forward.7} parent=11 // pred_check
        %p407 = pneg %p90
      $region18: #{forward.7} parent=11 // pred_check_branch
        %409 = sbr.rel (%p407) target = $region20
      $region19: #{forward.7} parent=11 // pred_region
        _
      $region20: #{forward.7} parent=11 // pred_fallthru
        _
      // Predicated region
      $region21: #{forward.7} parent=11 // pred_check
        %p410 = pneg %p111
      $region22: #{forward.7} parent=11 // pred_check_branch
        %412 = sbr.rel (%p410) target = $region24
      $region23: #{forward.7} parent=11 // pred_region
        _
      $region24: #{forward.7} parent=11 // pred_fallthru
        _
      // Predicated region
      $region25: #{forward.7} parent=11 // pred_check
        %p413 = pneg %p132
      $region26: #{forward.7} parent=11 // pred_check_branch
        %415 = sbr.rel (%p413) target = $region28
      $region27: #{forward.7} parent=11 // pred_region
        _
      $region28: #{forward.7} parent=11 // pred_fallthru
        _
      // Predicated region
      $region29: #{forward.7} parent=11 // pred_check
        %p416 = pneg %p153
      $region30: #{forward.7} parent=11 // pred_check_branch
        %418 = sbr.rel (%p416) target = $region32
      $region31: #{forward.7} parent=11 // pred_region
        _
      $region32: #{forward.7} parent=11 // pred_fallthru
        _
      // Predicated region
      $region33: #{forward.7} parent=11 // pred_check
        %p419 = pneg %p174
      $region34: #{forward.7} parent=11 // pred_check_branch
        %421 = sbr.rel (%p419) target = $region36
      $region35: #{forward.7} parent=11 // pred_region
        _
      $region36: #{forward.7} parent=11 // pred_fallthru
        _
      // Predicated region
      $region37: #{forward.7} parent=11 // pred_check
        %p422 = pneg %p195
      $region38: #{forward.7} parent=11 // pred_check_branch
        %424 = sbr.rel (%p422) target = $region40
      $region39: #{forward.7} parent=11 // pred_region
        _
      $region40: #{forward.7} parent=11 // pred_fallthru
        _
      // Predicated region
      $region41: #{forward.7} parent=11 // pred_check
        %p425 = pneg %p216
      $region42: #{forward.7} parent=11 // pred_check_branch
        %427 = sbr.rel (%p425) target = $region44
      $region43: #{forward.7} parent=11 // pred_region
        _
      $region44: #{forward.7} parent=11 // pred_fallthru
        _
      // Predicated region
      $region45: #{forward.7} parent=11 // pred_check
        %p428 = pneg %p237
      $region46: #{forward.7} parent=11 // pred_check_branch
        %430 = sbr.rel (%p428) target = $region48
      $region47: #{forward.7} parent=11 // pred_region
        _
      $region48: #{forward.7} parent=11 // pred_fallthru
        _
      // Predicated region
      $region49: #{forward.7} parent=11 // pred_check
        %p431 = pneg %p258
      $region50: #{forward.7} parent=11 // pred_check_branch
        %433 = sbr.rel (%p431) target = $region52
      $region51: #{forward.7} parent=11 // pred_region
        _
      $region52: #{forward.7} parent=11 // pred_fallthru
        _
      // Predicated region
      $region53: #{forward.7} parent=11 // pred_check
        %p434 = pneg %p279
      $region54: #{forward.7} parent=11 // pred_check_branch
        %436 = sbr.rel (%p434) target = $region56
      $region55: #{forward.7} parent=11 // pred_region
        _
      $region56: #{forward.7} parent=11 // pred_fallthru
        _
      // Predicated region
      $region57: #{forward.7} parent=11 // pred_check
        %p437 = pneg %p300
      $region58: #{forward.7} parent=11 // pred_check_branch
        %439 = sbr.rel (%p437) target = $region60
      $region59: #{forward.7} parent=11 // pred_region
        _
      $region60: #{forward.7} parent=11 // pred_fallthru
        _
      // Predicated region
      $region61: #{forward.7} parent=11 // pred_check
        %p440 = pneg %p321
      $region62: #{forward.7} parent=11 // pred_check_branch
        %442 = sbr.rel (%p440) target = $region64
      $region63: #{forward.7} parent=11 // pred_region
        _
      $region64: #{forward.7} parent=11 // pred_fallthru
        _
      // Predicated region
      $region65: #{forward.7} parent=11 // pred_check
        %p443 = pneg %p342
      $region66: #{forward.7} parent=11 // pred_check_branch
        %445 = sbr.rel (%p443) target = $region68
      $region67: #{forward.7} parent=11 // pred_region
        _
      $region68: #{forward.7} parent=11 // pred_fallthru
        _
      // Predicated region
      $region69: #{forward.7} parent=11 // pred_check
        %p446 = pneg %p363
      $region70: #{forward.7} parent=11 // pred_check_branch
        %448 = sbr.rel (%p446) target = $region72
      $region71: #{forward.7} parent=11 // pred_region
        _
      $region72: #{forward.7} parent=11 // pred_fallthru
        _
    $region12: #{forward.7} parent=5 // pred_fallthru
      _
    %p449 = scmp.lt.s32.totalorder %s22, 2
    // Predicated region
    $region73: #{forward.7} parent=5 // pred_check
      %p450 = pneg %p449
    $region74: #{forward.7} parent=5 // pred_check_branch
      %452 = sbr.rel (%p450) target = $region76
    $region75: #{forward.7} parent=5 // pred_region
      // Predicated region
      $region77: #{forward.7} parent=75 // pred_check
        %p453 = pneg %p42
      $region78: #{forward.7} parent=75 // pred_check_branch
        %455 = sbr.rel (%p453) target = $region80
      $region79: #{forward.7} parent=75 // pred_region
        %p456 = scmp.lt.s32.totalorder %s22, 1
        %s457 = scalar_select %p456, %s22, 1
        %s458 = smul.addr %s457, 2
        %s459 = smul.addr %s458, 8
        %s460 = scalar_lea.vmem %s0, %s459
      $region80: #{forward.7} parent=75 // pred_fallthru
        _
    $region76: #{forward.7} parent=5 // pred_fallthru
      _
    %p461 = scmp.le.s32.totalorder 1, %s22
    %p462 = scmp.lt.s32.totalorder %s22, 3
    %p463 = pnand %p461, %p462
    %p464 = pneg %p463
    // Predicated region
    $region81: #{forward.7} parent=5 // pred_check
      _
    $region82: #{forward.7} parent=5 // pred_check_branch
      %466 = sbr.rel (%p463) target = $region84
    $region83: #{forward.7} parent=5 // pred_region
      %s467 = ssub.s32 %s22, 1
      %p468 = scmp.lt.s32.totalorder %s27, 1
      %s469 = scalar_select %p468, %s27, 1
      %s470 = smul.addr %s469, 2
      %s471 = smul.addr %s470, 8
      %s472 = scalar_lea.vmem %s0, %s471
      %p473 = pneg %p48
      %p474 = pneg %p45
      %p475 = pneg %p69
      %p476 = pneg %p66
      %p477 = pneg %p90
      %p478 = pneg %p87
      %p479 = pneg %p111
      %p480 = pneg %p108
      %p481 = pneg %p132
      %p482 = pneg %p129
      %p483 = pneg %p153
      %p484 = pneg %p150
      %p485 = pneg %p174
      %p486 = pneg %p171
      %p487 = pneg %p195
      %p488 = pneg %p192
      %p489 = pneg %p216
      %p490 = pneg %p213
      %p491 = pneg %p237
      %p492 = pneg %p234
      %p493 = pneg %p258
      %p494 = pneg %p255
      %p495 = pneg %p279
      %p496 = pneg %p276
      %p497 = pneg %p300
      %p498 = pneg %p297
      %p499 = pneg %p321
      %p500 = pneg %p318
      %p501 = pneg %p342
      %p502 = pneg %p339
      %p503 = pneg %p363
      %p504 = pneg %p360
      %p505 = pneg %p389
      %p506 = pneg %p386
      %p507 = scmp.lt.s32.totalorder %s27, 1
      %s508 = scalar_select %p507, %s27, 1
      %s509 = smul.addr %s508, 2
      %s510 = smul.addr %s509, 8
      %s511 = scalar_lea.vmem %s16, %s510
      %p512 = scmp.lt.s32.totalorder %s27, 1
      %s513 = scalar_select %p512, %s27, 1
      %s514 = smul.addr %s513, 2
      %s515 = smul.addr %s514, 8
      %s516 = scalar_lea.vmem %s0, %s515
      %p517 = scmp.lt.s32.totalorder %s27, 1
      %s518 = scalar_select %p517, %s27, 1
      %s519 = smul.addr %s518, 2
      %s520 = smul.addr %s519, 8
      %s521 = scalar_lea.vmem %s16, %s520
      %v523 = vld [vmem:[%s516] sm:$0xff]
      %v524 = vld [vmem:[%s516 + $0x8] sm:$0xff]
      %v525 = vld [vmem:[%s1] sm:$0x1]
      %v526 = vld [vmem:[%s2] sm:$0x1]
      %vm527 = vcmask 523264
      %v528 = vsel %vm527, %v523, 0.0
      %529 = vadd.xlane.f32.xlu0 %v528
      %v530 = vpop.xlane.xlu0 %529
      %v531 = vsel %vm527, %v524, 0.0
      %532 = vadd.xlane.f32.xlu0 %v531
      %v533 = vpop.xlane.xlu0 %532
      %v534 = vrcp.pop 64.0
      %v535 = vmul.f32 %v530, %v534
      %v536 = vmul.f32 %v533, %v534
      %v537 = vsub.f32 %v523, %v535
      %v538 = vsub.f32 %v524, %v536
      %v539 = vmul.f32 %v537, %v537
      %v540 = vmul.f32 %v538, %v538
      %v541 = vsel %vm527, %v539, 0.0
      %542 = vadd.xlane.f32.xlu0 %v541
      %v543 = vpop.xlane.xlu0 %542
      %v544 = vsel %vm527, %v540, 0.0
      %545 = vadd.xlane.f32.xlu0 %v544
      %v546 = vpop.xlane.xlu0 %545
      %v547 = vmul.f32 %v543, %v534
      %v548 = vmul.f32 %v546, %v534
      %v549 = vadd.f32 %v547, 1e-05
      %v550 = vadd.f32 %v548, 1e-05
      %v551 = vrsqrt.pop %v549
      %v552 = vrsqrt.pop %v550
      %v553 = vmul.f32 %v537, %v551
      %v554 = vmul.f32 %v538, %v552
      %v556 = vlaneseq
      %v557 = vshrl.u32 %v556, 7
      %v558 = vsub.s32 0, %v557
      %v559 = vrot.slane %v525, %v558
      %v561 = vmul.f32 %v553, %v559
      %v562 = vmul.f32 %v554, %v559
      %v564 = vlaneseq
      %v565 = vshrl.u32 %v564, 7
      %v566 = vsub.s32 0, %v565
      %v567 = vrot.slane %v526, %v566
      %v569 = vadd.f32 %v561, %v567
      %v570 = vadd.f32 %v562, %v567
      %v571 = vld [vmem:[%s3] sm:$0xff]
      %v572 = vld [vmem:[%s3 + $0x8] sm:$0xff]
      %v573 = vld [vmem:[%s3 + $0x10] sm:$0xff]
      %v574 = vld [vmem:[%s3 + $0x18] sm:$0xff]
      %v575 = vld [vmem:[%s3 + $0x20] sm:$0xff]
      %v576 = vld [vmem:[%s3 + $0x28] sm:$0xff]
      %v577 = vld [vmem:[%s3 + $0x30] sm:$0xff]
      %v578 = vld [vmem:[%s3 + $0x38] sm:$0xff]
      %v579 = vpack.c.bf16 %v570, %v569
      %v580 = vpack.c.bf16 %v572, %v571
      %v581 = vpack.c.bf16 %v574, %v573
      %v582 = vpack.c.bf16 %v576, %v575
      %v583 = vpack.c.bf16 %v578, %v577
      %v585 = vsel %vm527, %v579, 0
      %587 = vmatprep.subr.bf16.mxu0 0
      %588 = vmatpush1.bf16.msra.mxu0 %v580
      %589 = vmatprep.subr.bf16.mxu0 0
      %590 = vmatpush1.bf16.msra.mxu0 %v581
      %591 = vmatprep.subr.bf16.mxu0 0
      %592 = vmatpush1.bf16.msra.mxu0 %v582
      %593 = vmatprep.subr.bf16.mxu0 0
      %594 = vmatpush1.bf16.msra.mxu0 %v583
      %595 = vmatprep.subr.bf16.mxu0 0
      %596 = vmatpush1.bf16.msra.mxu0 0
      %597 = vmatprep.subr.bf16.mxu0 0
      %598 = vmatpush1.bf16.msra.mxu0 0
      %599 = vmatprep.subr.bf16.mxu0 0
      %600 = vmatpush1.bf16.msra.mxu0 0
      %601 = vmatprep.subr.bf16.mxu0 0
      %602 = vmatpush1.bf16.msra.mxu0 0
      %603 = vmatprep.subr.bf16.mxu0 0
      %604 = vmatpush1.bf16.msra.mxu0 0
      %605 = vmatprep.subr.bf16.mxu0 0
      %606 = vmatpush1.bf16.msra.mxu0 0
      %607 = vmatprep.subr.bf16.mxu0 0
      %608 = vmatpush1.bf16.msra.mxu0 0
      %609 = vmatprep.subr.bf16.mxu0 0
      %610 = vmatpush1.bf16.msra.mxu0 0
      %611 = vmatprep.subr.bf16.mxu0 0
      %612 = vmatpush1.bf16.msra.mxu0 0
      %613 = vmatprep.subr.bf16.mxu0 0
      %614 = vmatpush1.bf16.msra.mxu0 0
      %615 = vmatprep.subr.bf16.mxu0 0
      %616 = vmatpush1.bf16.msra.mxu0 0
      %617 = vmatprep.subr.bf16.mxu0 0
      %618 = vmatpush1.bf16.msra.mxu0 0
      %619 = vmatprep.mubr.bf16.mxu0 0
      %620 = vmatmul.mubr.bf16.gmra.mrb[0].mxu0 %v585
      %v621 = vpop.f32.mrb[0].mxu0
      %v622 = vadd.f32 0.0, %v621
      %v623 = vpop.f32.mrb[0].mxu0
      %v624 = vpop.f32.mrb[0].mxu0
      %v625 = vadd.f32 0.0, %v624
      %v626 = vpop.f32.mrb[0].mxu0
      %627 = vdwg.mxu0
      %v628 = vld [vmem:[%s4] sm:$0xff]
      %v629 = vld [vmem:[%s4 + $0x8] sm:$0xff]
      %v630 = vld [vmem:[%s4 + $0x10] sm:$0xff]
      %v631 = vld [vmem:[%s4 + $0x18] sm:$0xff]
      %v632 = vld [vmem:[%s4 + $0x20] sm:$0xff]
      %v633 = vld [vmem:[%s4 + $0x28] sm:$0xff]
      %v634 = vld [vmem:[%s4 + $0x30] sm:$0xff]
      %v635 = vld [vmem:[%s4 + $0x38] sm:$0xff]
      %v636 = vpack.c.bf16 %v629, %v628
      %v637 = vpack.c.bf16 %v631, %v630
      %v638 = vpack.c.bf16 %v633, %v632
      %v639 = vpack.c.bf16 %v635, %v634
      %640 = vmatprep.subr.bf16.mxu0 0
      %641 = vmatpush1.bf16.msra.mxu0 %v636
      %642 = vmatprep.subr.bf16.mxu0 0
      %643 = vmatpush1.bf16.msra.mxu0 %v637
      %644 = vmatprep.subr.bf16.mxu0 0
      %645 = vmatpush1.bf16.msra.mxu0 %v638
      %646 = vmatprep.subr.bf16.mxu0 0
      %647 = vmatpush1.bf16.msra.mxu0 %v639
      %648 = vmatprep.subr.bf16.mxu0 0
      %649 = vmatpush1.bf16.msra.mxu0 0
      %650 = vmatprep.subr.bf16.mxu0 0
      %651 = vmatpush1.bf16.msra.mxu0 0
      %652 = vmatprep.subr.bf16.mxu0 0
      %653 = vmatpush1.bf16.msra.mxu0 0
      %654 = vmatprep.subr.bf16.mxu0 0
      %655 = vmatpush1.bf16.msra.mxu0 0
      %656 = vmatprep.subr.bf16.mxu0 0
      %657 = vmatpush1.bf16.msra.mxu0 0
      %658 = vmatprep.subr.bf16.mxu0 0
      %659 = vmatpush1.bf16.msra.mxu0 0
      %660 = vmatprep.subr.bf16.mxu0 0
      %661 = vmatpush1.bf16.msra.mxu0 0
      %662 = vmatprep.subr.bf16.mxu0 0
      %663 = vmatpush1.bf16.msra.mxu0 0
      %664 = vmatprep.subr.bf16.mxu0 0
      %665 = vmatpush1.bf16.msra.mxu0 0
      %666 = vmatprep.subr.bf16.mxu0 0
      %667 = vmatpush1.bf16.msra.mxu0 0
      %668 = vmatprep.subr.bf16.mxu0 0
      %669 = vmatpush1.bf16.msra.mxu0 0
      %670 = vmatprep.subr.bf16.mxu0 0
      %671 = vmatpush1.bf16.msra.mxu0 0
      %672 = vmatprep.mubr.bf16.mxu0 0
      %673 = vmatmul.mubr.bf16.gmra.mrb[0].mxu0 %v585
      %v674 = vpop.f32.mrb[0].mxu0
      %v675 = vadd.f32 0.0, %v674
      %v676 = vpop.f32.mrb[0].mxu0
      %v677 = vpop.f32.mrb[0].mxu0
      %v678 = vadd.f32 0.0, %v677
      %v679 = vpop.f32.mrb[0].mxu0
      %680 = vdwg.mxu0
      %v681 = vld [vmem:[%s5] sm:$0xff]
      %v682 = vld [vmem:[%s5 + $0x8] sm:$0xff]
      %v683 = vld [vmem:[%s5 + $0x10] sm:$0xff]
      %v684 = vld [vmem:[%s5 + $0x18] sm:$0xff]
      %v685 = vld [vmem:[%s5 + $0x20] sm:$0xff]
      %v686 = vld [vmem:[%s5 + $0x28] sm:$0xff]
      %v687 = vld [vmem:[%s5 + $0x30] sm:$0xff]
      %v688 = vld [vmem:[%s5 + $0x38] sm:$0xff]
      %v689 = vpack.c.bf16 %v682, %v681
      %v690 = vpack.c.bf16 %v684, %v683
      %v691 = vpack.c.bf16 %v686, %v685
      %v692 = vpack.c.bf16 %v688, %v687
      %693 = vmatprep.subr.bf16.mxu0 0
      %694 = vmatpush1.bf16.msra.mxu0 %v689
      %695 = vmatprep.subr.bf16.mxu0 0
      %696 = vmatpush1.bf16.msra.mxu0 %v690
      %697 = vmatprep.subr.bf16.mxu0 0
      %698 = vmatpush1.bf16.msra.mxu0 %v691
      %699 = vmatprep.subr.bf16.mxu0 0
      %700 = vmatpush1.bf16.msra.mxu0 %v692
      %701 = vmatprep.subr.bf16.mxu0 0
      %702 = vmatpush1.bf16.msra.mxu0 0
      %703 = vmatprep.subr.bf16.mxu0 0
      %704 = vmatpush1.bf16.msra.mxu0 0
      %705 = vmatprep.subr.bf16.mxu0 0
      %706 = vmatpush1.bf16.msra.mxu0 0
      %707 = vmatprep.subr.bf16.mxu0 0
      %708 = vmatpush1.bf16.msra.mxu0 0
      %709 = vmatprep.subr.bf16.mxu0 0
      %710 = vmatpush1.bf16.msra.mxu0 0
      %711 = vmatprep.subr.bf16.mxu0 0
      %712 = vmatpush1.bf16.msra.mxu0 0
      %713 = vmatprep.subr.bf16.mxu0 0
      %714 = vmatpush1.bf16.msra.mxu0 0
      %715 = vmatprep.subr.bf16.mxu0 0
      %716 = vmatpush1.bf16.msra.mxu0 0
      %717 = vmatprep.subr.bf16.mxu0 0
      %718 = vmatpush1.bf16.msra.mxu0 0
      %719 = vmatprep.subr.bf16.mxu0 0
      %720 = vmatpush1.bf16.msra.mxu0 0
      %721 = vmatprep.subr.bf16.mxu0 0
      %722 = vmatpush1.bf16.msra.mxu0 0
      %723 = vmatprep.subr.bf16.mxu0 0
      %724 = vmatpush1.bf16.msra.mxu0 0
      %725 = vmatprep.mubr.bf16.mxu0 0
      %726 = vmatmul.mubr.bf16.gmra.mrb[0].mxu0 %v585
      %v727 = vpop.f32.mrb[0].mxu0
      %v728 = vadd.f32 0.0, %v727
      %v729 = vpop.f32.mrb[0].mxu0
      %v730 = vpop.f32.mrb[0].mxu0
      %v731 = vadd.f32 0.0, %v730
      %v732 = vpop.f32.mrb[0].mxu0
      %733 = vdwg.mxu0
      %v734 = vpack.c.bf16 %v625, %v622
      %v735 = vpack.c.bf16 %v678, %v675
      %vm736 = vcmask 130048
      %v738 = vsel %vm736, %v734, 0
      %v741 = vsel %vm736, %v735, 0
      %743 = vmatprep.subr.bf16.mxu0 0
      %744 = vmatpush1.bf16.xpose.msra.mxu0 %v741
      %745 = vmatprep.subr.bf16.mxu0 0
      %746 = vmatpush1.bf16.xpose.msra.mxu0 0
      %747 = vmatprep.subr.bf16.mxu0 0
      %748 = vmatpush1.bf16.xpose.msra.mxu0 0
      %749 = vmatprep.subr.bf16.mxu0 0
      %750 = vmatpush1.bf16.xpose.msra.mxu0 0
      %751 = vmatprep.subr.bf16.mxu0 0
      %752 = vmatpush1.bf16.xpose.msra.mxu0 0
      %753 = vmatprep.subr.bf16.mxu0 0
      %754 = vmatpush1.bf16.xpose.msra.mxu0 0
      %755 = vmatprep.subr.bf16.mxu0 0
      %756 = vmatpush1.bf16.xpose.msra.mxu0 0
      %757 = vmatprep.subr.bf16.mxu0 0
      %758 = vmatpush1.bf16.xpose.msra.mxu0 0
      %759 = vmatprep.subr.bf16.mxu0 0
      %760 = vmatpush1.bf16.xpose.msra.mxu0 0
      %761 = vmatprep.subr.bf16.mxu0 0
      %762 = vmatpush1.bf16.xpose.msra.mxu0 0
      %763 = vmatprep.subr.bf16.mxu0 0
      %764 = vmatpush1.bf16.xpose.msra.mxu0 0
      %765 = vmatprep.subr.bf16.mxu0 0
      %766 = vmatpush1.bf16.xpose.msra.mxu0 0
      %767 = vmatprep.subr.bf16.mxu0 0
      %768 = vmatpush1.bf16.xpose.msra.mxu0 0
      %769 = vmatprep.subr.bf16.mxu0 0
      %770 = vmatpush1.bf16.xpose.msra.mxu0 0
      %771 = vmatprep.subr.bf16.mxu0 0
      %772 = vmatpush1.bf16.xpose.msra.mxu0 0
      %773 = vmatprep.subr.bf16.mxu0 0
      %774 = vmatpush1.bf16.xpose.msra.mxu0 0
      %775 = vmatprep.mubr.bf16.mxu0 0
      %776 = vmatmul.mubr.bf16.gmra.mrb[0].mxu0 %v738
      %v777 = vpop.f32.mrb[0].mxu0
      %v778 = vadd.f32 0.0, %v777
      %v779 = vpop.f32.mrb[0].mxu0
      %v780 = vpop.f32.mrb[0].mxu0
      %v781 = vadd.f32 0.0, %v780
      %v782 = vpop.f32.mrb[0].mxu0
      %783 = vdwg.mxu0
      %v784 = vmul.f32 %v778, 0.25
      %v785 = vmul.f32 %v781, 0.25
      %v786 = vsel %vm736, %v784, -inf
      %787 = vmax.xlane.f32.xlu0 %v786
      %v788 = vpop.xlane.xlu0 %787
      %v789 = vsel %vm736, %v785, -inf
      %790 = vmax.xlane.f32.xlu0 %v789
      %v791 = vpop.xlane.xlu0 %790
      %v792 = vsub.f32 %v784, %v788
      %v793 = vsub.f32 %v785, %v791
      %v794 = vmul.f32 %v792, 1.442695
      %v795 = vpow.pop %v794
      %v796 = vmul.f32 %v793, 1.442695
      %v797 = vpow.pop %v796
      %v798 = vsel %vm736, %v795, 0.0
      %799 = vadd.xlane.f32.xlu0 %v798
      %v800 = vpop.xlane.xlu0 %799
      %v801 = vsel %vm736, %v797, 0.0
      %802 = vadd.xlane.f32.xlu0 %v801
      %v803 = vpop.xlane.xlu0 %802
      %v804 = vrcp.pop %v800
      %v805 = vrcp.pop %v803
      %v806 = vmul.f32 %v795, %v804
      %v807 = vmul.f32 %v797, %v805
      %v808 = vpack.c.bf16 %v807, %v806
      %v809 = vpack.c.bf16 %v731, %v728
      %v811 = vsel %vm736, %v808, 0
      %813 = vmatprep.subr.bf16.mxu0 0
      %814 = vmatpush1.bf16.msra.mxu0 %v809
      %815 = vmatprep.subr.bf16.mxu0 0
      %816 = vmatpush1.bf16.msra.mxu0 0
      %817 = vmatprep.subr.bf16.mxu0 0
      %818 = vmatpush1.bf16.msra.mxu0 0
      %819 = vmatprep.subr.bf16.mxu0 0
      %820 = vmatpush1.bf16.msra.mxu0 0
      %821 = vmatprep.subr.bf16.mxu0 0
      %822 = vmatpush1.bf16.msra.mxu0 0
      %823 = vmatprep.subr.bf16.mxu0 0
      %824 = vmatpush1.bf16.msra.mxu0 0
      %825 = vmatprep.subr.bf16.mxu0 0
      %826 = vmatpush1.bf16.msra.mxu0 0
      %827 = vmatprep.subr.bf16.mxu0 0
      %828 = vmatpush1.bf16.msra.mxu0 0
      %829 = vmatprep.subr.bf16.mxu0 0
      %830 = vmatpush1.bf16.msra.mxu0 0
      %831 = vmatprep.subr.bf16.mxu0 0
      %832 = vmatpush1.bf16.msra.mxu0 0
      %833 = vmatprep.subr.bf16.mxu0 0
      %834 = vmatpush1.bf16.msra.mxu0 0
      %835 = vmatprep.subr.bf16.mxu0 0
      %836 = vmatpush1.bf16.msra.mxu0 0
      %837 = vmatprep.subr.bf16.mxu0 0
      %838 = vmatpush1.bf16.msra.mxu0 0
      %839 = vmatprep.subr.bf16.mxu0 0
      %840 = vmatpush1.bf16.msra.mxu0 0
      %841 = vmatprep.subr.bf16.mxu0 0
      %842 = vmatpush1.bf16.msra.mxu0 0
      %843 = vmatprep.subr.bf16.mxu0 0
      %844 = vmatpush1.bf16.msra.mxu0 0
      %845 = vmatprep.mubr.bf16.mxu0 0
      %846 = vmatmul.mubr.bf16.gmra.mrb[0].mxu0 %v811
      %v847 = vpop.f32.mrb[0].mxu0
      %v848 = vadd.f32 0.0, %v847
      %v849 = vpop.f32.mrb[0].mxu0
      %v850 = vpop.f32.mrb[0].mxu0
      %v851 = vadd.f32 0.0, %v850
      %v852 = vpop.f32.mrb[0].mxu0
      %853 = vdwg.mxu0
      %v854 = vld [vmem:[%s6] sm:$0xff]
      %v855 = vld [vmem:[%s6 + $0x8] sm:$0xff]
      %v856 = vpack.c.bf16 %v851, %v848
      %v857 = vpack.c.bf16 %v855, %v854
      %s858 = scalar_lea.vmem %s3, 64
      %v859 = vld [vmem:[%s858] sm:$0xff]
      %v860 = vld [vmem:[%s858 + $0x8] sm:$0xff]
      %v861 = vld [vmem:[%s858 + $0x10] sm:$0xff]
      %v862 = vld [vmem:[%s858 + $0x18] sm:$0xff]
      %v863 = vld [vmem:[%s858 + $0x20] sm:$0xff]
      %v864 = vld [vmem:[%s858 + $0x28] sm:$0xff]
      %v865 = vld [vmem:[%s858 + $0x30] sm:$0xff]
      %v866 = vld [vmem:[%s858 + $0x38] sm:$0xff]
      %v867 = vpack.c.bf16 %v860, %v859
      %v868 = vpack.c.bf16 %v862, %v861
      %v869 = vpack.c.bf16 %v864, %v863
      %v870 = vpack.c.bf16 %v866, %v865
      %871 = vmatprep.subr.bf16.mxu0 0
      %872 = vmatpush1.bf16.msra.mxu0 %v867
      %873 = vmatprep.subr.bf16.mxu0 0
      %874 = vmatpush1.bf16.msra.mxu0 %v868
      %875 = vmatprep.subr.bf16.mxu0 0
      %876 = vmatpush1.bf16.msra.mxu0 %v869
      %877 = vmatprep.subr.bf16.mxu0 0
      %878 = vmatpush1.bf16.msra.mxu0 %v870
      %879 = vmatprep.subr.bf16.mxu0 0
      %880 = vmatpush1.bf16.msra.mxu0 0
      %881 = vmatprep.subr.bf16.mxu0 0
      %882 = vmatpush1.bf16.msra.mxu0 0
      %883 = vmatprep.subr.bf16.mxu0 0
      %884 = vmatpush1.bf16.msra.mxu0 0
      %885 = vmatprep.subr.bf16.mxu0 0
      %886 = vmatpush1.bf16.msra.mxu0 0
      %887 = vmatprep.subr.bf16.mxu0 0
      %888 = vmatpush1.bf16.msra.mxu0 0
      %889 = vmatprep.subr.bf16.mxu0 0
      %890 = vmatpush1.bf16.msra.mxu0 0
      %891 = vmatprep.subr.bf16.mxu0 0
      %892 = vmatpush1.bf16.msra.mxu0 0
      %893 = vmatprep.subr.bf16.mxu0 0
      %894 = vmatpush1.bf16.msra.mxu0 0
      %895 = vmatprep.subr.bf16.mxu0 0
      %896 = vmatpush1.bf16.msra.mxu0 0
      %897 = vmatprep.subr.bf16.mxu0 0
      %898 = vmatpush1.bf16.msra.mxu0 0
      %899 = vmatprep.subr.bf16.mxu0 0
      %900 = vmatpush1.bf16.msra.mxu0 0
      %901 = vmatprep.subr.bf16.mxu0 0
      %902 = vmatpush1.bf16.msra.mxu0 0
      %903 = vmatprep.mubr.bf16.mxu0 0
      %904 = vmatmul.mubr.bf16.gmra.mrb[0].mxu0 %v585
      %v905 = vpop.f32.mrb[0].mxu0
      %v906 = vadd.f32 0.0, %v905
      %v907 = vpop.f32.mrb[0].mxu0
      %v908 = vpop.f32.mrb[0].mxu0
      %v909 = vadd.f32 0.0, %v908
      %v910 = vpop.f32.mrb[0].mxu0
      %911 = vdwg.mxu0
      %s912 = scalar_lea.vmem %s4, 64
      %v913 = vld [vmem:[%s912] sm:$0xff]
      %v914 = vld [vmem:[%s912 + $0x8] sm:$0xff]
      %v915 = vld [vmem:[%s912 + $0x10] sm:$0xff]
      %v916 = vld [vmem:[%s912 + $0x18] sm:$0xff]
      %v917 = vld [vmem:[%s912 + $0x20] sm:$0xff]
      %v918 = vld [vmem:[%s912 + $0x28] sm:$0xff]
      %v919 = vld [vmem:[%s912 + $0x30] sm:$0xff]
      %v920 = vld [vmem:[%s912 + $0x38] sm:$0xff]
      %v921 = vpack.c.bf16 %v914, %v913
      %v922 = vpack.c.bf16 %v916, %v915
      %v923 = vpack.c.bf16 %v918, %v917
      %v924 = vpack.c.bf16 %v920, %v919
      %925 = vmatprep.subr.bf16.mxu0 0
      %926 = vmatpush1.bf16.msra.mxu0 %v921
      %927 = vmatprep.subr.bf16.mxu0 0
      %928 = vmatpush1.bf16.msra.mxu0 %v922
      %929 = vmatprep.subr.bf16.mxu0 0
      %930 = vmatpush1.bf16.msra.mxu0 %v923
      %931 = vmatprep.subr.bf16.mxu0 0
      %932 = vmatpush1.bf16.msra.mxu0 %v924
      %933 = vmatprep.subr.bf16.mxu0 0
      %934 = vmatpush1.bf16.msra.mxu0 0
      %935 = vmatprep.subr.bf16.mxu0 0
      %936 = vmatpush1.bf16.msra.mxu0 0
      %937 = vmatprep.subr.bf16.mxu0 0
      %938 = vmatpush1.bf16.msra.mxu0 0
      %939 = vmatprep.subr.bf16.mxu0 0
      %940 = vmatpush1.bf16.msra.mxu0 0
      %941 = vmatprep.subr.bf16.mxu0 0
      %942 = vmatpush1.bf16.msra.mxu0 0
      %943 = vmatprep.subr.bf16.mxu0 0
      %944 = vmatpush1.bf16.msra.mxu0 0
      %945 = vmatprep.subr.bf16.mxu0 0
      %946 = vmatpush1.bf16.msra.mxu0 0
      %947 = vmatprep.subr.bf16.mxu0 0
      %948 = vmatpush1.bf16.msra.mxu0 0
      %949 = vmatprep.subr.bf16.mxu0 0
      %950 = vmatpush1.bf16.msra.mxu0 0
      %951 = vmatprep.subr.bf16.mxu0 0
      %952 = vmatpush1.bf16.msra.mxu0 0
      %953 = vmatprep.subr.bf16.mxu0 0
      %954 = vmatpush1.bf16.msra.mxu0 0
      %955 = vmatprep.subr.bf16.mxu0 0
      %956 = vmatpush1.bf16.msra.mxu0 0
      %957 = vmatprep.mubr.bf16.mxu0 0
      %958 = vmatmul.mubr.bf16.gmra.mrb[0].mxu0 %v585
      %v959 = vpop.f32.mrb[0].mxu0
      %v960 = vadd.f32 0.0, %v959
      %v961 = vpop.f32.mrb[0].mxu0
      %v962 = vpop.f32.mrb[0].mxu0
      %v963 = vadd.f32 0.0, %v962
      %v964 = vpop.f32.mrb[0].mxu0
      %965 = vdwg.mxu0
      %s966 = scalar_lea.vmem %s5, 64
      %v967 = vld [vmem:[%s966] sm:$0xff]
      %v968 = vld [vmem:[%s966 + $0x8] sm:$0xff]
      %v969 = vld [vmem:[%s966 + $0x10] sm:$0xff]
      %v970 = vld [vmem:[%s966 + $0x18] sm:$0xff]
      %v971 = vld [vmem:[%s966 + $0x20] sm:$0xff]
      %v972 = vld [vmem:[%s966 + $0x28] sm:$0xff]
      %v973 = vld [vmem:[%s966 + $0x30] sm:$0xff]
      %v974 = vld [vmem:[%s966 + $0x38] sm:$0xff]
      %v975 = vpack.c.bf16 %v968, %v967
      %v976 = vpack.c.bf16 %v970, %v969
      %v977 = vpack.c.bf16 %v972, %v971
      %v978 = vpack.c.bf16 %v974, %v973
      %979 = vmatprep.subr.bf16.mxu0 0
      %980 = vmatpush1.bf16.msra.mxu0 %v975
      %981 = vmatprep.subr.bf16.mxu0 0
      %982 = vmatpush1.bf16.msra.mxu0 %v976
      %983 = vmatprep.subr.bf16.mxu0 0
      %984 = vmatpush1.bf16.msra.mxu0 %v977
      %985 = vmatprep.subr.bf16.mxu0 0
      %986 = vmatpush1.bf16.msra.mxu0 %v978
      %987 = vmatprep.subr.bf16.mxu0 0
      %988 = vmatpush1.bf16.msra.mxu0 0
      %989 = vmatprep.subr.bf16.mxu0 0
      %990 = vmatpush1.bf16.msra.mxu0 0
      %991 = vmatprep.subr.bf16.mxu0 0
      %992 = vmatpush1.bf16.msra.mxu0 0
      %993 = vmatprep.subr.bf16.mxu0 0
      %994 = vmatpush1.bf16.msra.mxu0 0
      %995 = vmatprep.subr.bf16.mxu0 0
      %996 = vmatpush1.bf16.msra.mxu0 0
      %997 = vmatprep.subr.bf16.mxu0 0
      %998 = vmatpush1.bf16.msra.mxu0 0
      %999 = vmatprep.subr.bf16.mxu0 0
      %1000 = vmatpush1.bf16.msra.mxu0 0
      %1001 = vmatprep.subr.bf16.mxu0 0
      %1002 = vmatpush1.bf16.msra.mxu0 0
      %1003 = vmatprep.subr.bf16.mxu0 0
      %1004 = vmatpush1.bf16.msra.mxu0 0
      %1005 = vmatprep.subr.bf16.mxu0 0
      %1006 = vmatpush1.bf16.msra.mxu0 0
      %1007 = vmatprep.subr.bf16.mxu0 0
      %1008 = vmatpush1.bf16.msra.mxu0 0
      %1009 = vmatprep.subr.bf16.mxu0 0
      %1010 = vmatpush1.bf16.msra.mxu0 0
      %1011 = vmatprep.mubr.bf16.mxu0 0
      %1012 = vmatmul.mubr.bf16.gmra.mrb[0].mxu0 %v585
      %v1013 = vpop.f32.mrb[0].mxu0
      %v1014 = vadd.f32 0.0, %v1013
      %v1015 = vpop.f32.mrb[0].mxu0
      %v1016 = vpop.f32.mrb[0].mxu0
      %v1017 = vadd.f32 0.0, %v1016
      %v1018 = vpop.f32.mrb[0].mxu0
      %1019 = vdwg.mxu0
      %v1020 = vpack.c.bf16 %v909, %v906
      %v1021 = vpack.c.bf16 %v963, %v960
      %v1023 = vsel %vm736, %v1020, 0
      %v1026 = vsel %vm736, %v1021, 0
      %1028 = vmatprep.subr.bf16.mxu0 0
      %1029 = vmatpush1.bf16.xpose.msra.mxu0 %v1026
      %1030 = vmatprep.subr.bf16.mxu0 0
      %1031 = vmatpush1.bf16.xpose.msra.mxu0 0
      %1032 = vmatprep.subr.bf16.mxu0 0
      %1033 = vmatpush1.bf16.xpose.msra.mxu0 0
      %1034 = vmatprep.subr.bf16.mxu0 0
      %1035 = vmatpush1.bf16.xpose.msra.mxu0 0
      %1036 = vmatprep.subr.bf16.mxu0 0
      %1037 = vmatpush1.bf16.xpose.msra.mxu0 0
      %1038 = vmatprep.subr.bf16.mxu0 0
      %1039 = vmatpush1.bf16.xpose.msra.mxu0 0
      %1040 = vmatprep.subr.bf16.mxu0 0
      %1041 = vmatpush1.bf16.xpose.msra.mxu0 0
      %1042 = vmatprep.subr.bf16.mxu0 0
      %1043 = vmatpush1.bf16.xpose.msra.mxu0 0
      %1044 = vmatprep.subr.bf16.mxu0 0
      %1045 = vmatpush1.bf16.xpose.msra.mxu0 0
      %1046 = vmatprep.subr.bf16.mxu0 0
      %1047 = vmatpush1.bf16.xpose.msra.mxu0 0
      %1048 = vmatprep.subr.bf16.mxu0 0
      %1049 = vmatpush1.bf16.xpose.msra.mxu0 0
      %1050 = vmatprep.subr.bf16.mxu0 0
      %1051 = vmatpush1.bf16.xpose.msra.mxu0 0
      %1052 = vmatprep.subr.bf16.mxu0 0
      %1053 = vmatpush1.bf16.xpose.msra.mxu0 0
      %1054 = vmatprep.subr.bf16.mxu0 0
      %1055 = vmatpush1.bf16.xpose.msra.mxu0 0
      %1056 = vmatprep.subr.bf16.mxu0 0
      %1057 = vmatpush1.bf16.xpose.msra.mxu0 0
      %1058 = vmatprep.subr.bf16.mxu0 0
      %1059 = vmatpush1.bf16.xpose.msra.mxu0 0
      %1060 = vmatprep.mubr.bf16.mxu0 0
      %1061 = vmatmul.mubr.bf16.gmra.mrb[0].mxu0 %v1023
      %v1062 = vpop.f32.mrb[0].mxu0
      %v1063 = vadd.f32 0.0, %v1062
      %v1064 = vpop.f32.mrb[0].mxu0
      %v1065 = vpop.f32.mrb[0].mxu0
      %v1066 = vadd.f32 0.0, %v1065
      %v1067 = vpop.f32.mrb[0].mxu0
      %1068 = vdwg.mxu0
      %v1069 = vmul.f32 %v1063, 0.25
      %v1070 = vmul.f32 %v1066, 0.25
      %v1071 = vsel %vm736, %v1069, -inf
      %1072 = vmax.xlane.f32.xlu0 %v1071
      %v1073 = vpop.xlane.xlu0 %1072
      %v1074 = vsel %vm736, %v1070, -inf
      %1075 = vmax.xlane.f32.xlu0 %v1074
      %v1076 = vpop.xlane.xlu0 %1075
      %v1077 = vsub.f32 %v1069, %v1073
      %v1078 = vsub.f32 %v1070, %v1076
      %v1079 = vmul.f32 %v1077, 1.442695
      %v1080 = vpow.pop %v1079
      %v1081 = vmul.f32 %v1078, 1.442695
      %v1082 = vpow.pop %v1081
      %v1083 = vsel %vm736, %v1080, 0.0
      %1084 = vadd.xlane.f32.xlu0 %v1083
      %v1085 = vpop.xlane.xlu0 %1084
      %v1086 = vsel %vm736, %v1082, 0.0
      %1087 = vadd.xlane.f32.xlu0 %v1086
      %v1088 = vpop.xlane.xlu0 %1087
      %v1089 = vrcp.pop %v1085
      %v1090 = vrcp.pop %v1088
      %v1091 = vmul.f32 %v1080, %v1089
      %v1092 = vmul.f32 %v1082, %v1090
      %v1093 = vpack.c.bf16 %v1092, %v1091
      %v1094 = vpack.c.bf16 %v1017, %v1014
      %v1096 = vsel %vm736, %v1093, 0
      %1098 = vmatprep.subr.bf16.mxu0 0
      %1099 = vmatpush1.bf16.msra.mxu0 %v1094
      %1100 = vmatprep.subr.bf16.mxu0 0
      %1101 = vmatpush1.bf16.msra.mxu0 0
      %1102 = vmatprep.subr.bf16.mxu0 0
      %1103 = vmatpush1.bf16.msra.mxu0 0
      %1104 = vmatprep.subr.bf16.mxu0 0
      %1105 = vmatpush1.bf16.msra.mxu0 0
      %1106 = vmatprep.subr.bf16.mxu0 0
      %1107 = vmatpush1.bf16.msra.mxu0 0
      %1108 = vmatprep.subr.bf16.mxu0 0
      %1109 = vmatpush1.bf16.msra.mxu0 0
      %1110 = vmatprep.subr.bf16.mxu0 0
      %1111 = vmatpush1.bf16.msra.mxu0 0
      %1112 = vmatprep.subr.bf16.mxu0 0
      %1113 = vmatpush1.bf16.msra.mxu0 0
      %1114 = vmatprep.subr.bf16.mxu0 0
      %1115 = vmatpush1.bf16.msra.mxu0 0
      %1116 = vmatprep.subr.bf16.mxu0 0
      %1117 = vmatpush1.bf16.msra.mxu0 0
      %1118 = vmatprep.subr.bf16.mxu0 0
      %1119 = vmatpush1.bf16.msra.mxu0 0
      %1120 = vmatprep.subr.bf16.mxu0 0
      %1121 = vmatpush1.bf16.msra.mxu0 0
      %1122 = vmatprep.subr.bf16.mxu0 0
      %1123 = vmatpush1.bf16.msra.mxu0 0
      %1124 = vmatprep.subr.bf16.mxu0 0
      %1125 = vmatpush1.bf16.msra.mxu0 0
      %1126 = vmatprep.subr.bf16.mxu0 0
      %1127 = vmatpush1.bf16.msra.mxu0 0
      %1128 = vmatprep.subr.bf16.mxu0 0
      %1129 = vmatpush1.bf16.msra.mxu0 0
      %1130 = vmatprep.mubr.bf16.mxu0 0
      %1131 = vmatmul.mubr.bf16.gmra.mrb[0].mxu0 %v1096
      %v1132 = vpop.f32.mrb[0].mxu0
      %v1133 = vadd.f32 0.0, %v1132
      %v1134 = vpop.f32.mrb[0].mxu0
      %v1135 = vpop.f32.mrb[0].mxu0
      %v1136 = vadd.f32 0.0, %v1135
      %v1137 = vpop.f32.mrb[0].mxu0
      %1138 = vdwg.mxu0
      %s1139 = scalar_lea.vmem %s6, 16
      %v1140 = vld [vmem:[%s1139] sm:$0xff]
      %v1141 = vld [vmem:[%s1139 + $0x8] sm:$0xff]
      %v1142 = vpack.c.bf16 %v1136, %v1133
      %v1143 = vpack.c.bf16 %v1141, %v1140
      %v1145 = vsel %vm736, %v1142, 0
      %1147 = vmatprep.subr.bf16.mxu0 0
      %1148 = vmatpush1.bf16.msra.mxu0 %v1143
      %1149 = vmatprep.subr.bf16.mxu0 0
      %1150 = vmatpush1.bf16.msra.mxu0 0
      %1151 = vmatprep.subr.bf16.mxu0 0
      %1152 = vmatpush1.bf16.msra.mxu0 0
      %1153 = vmatprep.subr.bf16.mxu0 0
      %1154 = vmatpush1.bf16.msra.mxu0 0
      %1155 = vmatprep.subr.bf16.mxu0 0
      %1156 = vmatpush1.bf16.msra.mxu0 0
      %1157 = vmatprep.subr.bf16.mxu0 0
      %1158 = vmatpush1.bf16.msra.mxu0 0
      %1159 = vmatprep.subr.bf16.mxu0 0
      %1160 = vmatpush1.bf16.msra.mxu0 0
      %1161 = vmatprep.subr.bf16.mxu0 0
      %1162 = vmatpush1.bf16.msra.mxu0 0
      %1163 = vmatprep.subr.bf16.mxu0 0
      %1164 = vmatpush1.bf16.msra.mxu0 0
      %1165 = vmatprep.subr.bf16.mxu0 0
      %1166 = vmatpush1.bf16.msra.mxu0 0
      %1167 = vmatprep.subr.bf16.mxu0 0
      %1168 = vmatpush1.bf16.msra.mxu0 0
      %1169 = vmatprep.subr.bf16.mxu0 0
      %1170 = vmatpush1.bf16.msra.mxu0 0
      %1171 = vmatprep.subr.bf16.mxu0 0
      %1172 = vmatpush1.bf16.msra.mxu0 0
      %1173 = vmatprep.subr.bf16.mxu0 0
      %1174 = vmatpush1.bf16.msra.mxu0 0
      %1175 = vmatprep.subr.bf16.mxu0 0
      %1176 = vmatpush1.bf16.msra.mxu0 0
      %1177 = vmatprep.subr.bf16.mxu0 0
      %1178 = vmatpush1.bf16.msra.mxu0 0
      %1179 = vmatprep.mubr.bf16.mxu0 0
      %1180 = vmatmul.mubr.bf16.gmra.mrb[0].mxu0 %v1145
      %v1181 = vpop.f32.mrb[0].mxu0
      %v1182 = vadd.f32 0.0, %v1181
      %v1183 = vpop.f32.mrb[0].mxu0
      %v1184 = vpop.f32.mrb[0].mxu0
      %v1185 = vadd.f32 0.0, %v1184
      %v1186 = vpop.f32.mrb[0].mxu0
      %1187 = vdwg.mxu0
      %v1189 = vsel %vm736, %v856, 0
      %1191 = vmatprep.subr.bf16.mxu0 0
      %1192 = vmatpush1.bf16.msra.mxu0 %v857
      %1193 = vmatprep.subr.bf16.mxu0 0
      %1194 = vmatpush1.bf16.msra.mxu0 0
      %1195 = vmatprep.subr.bf16.mxu0 0
      %1196 = vmatpush1.bf16.msra.mxu0 0
      %1197 = vmatprep.subr.bf16.mxu0 0
      %1198 = vmatpush1.bf16.msra.mxu0 0
      %1199 = vmatprep.subr.bf16.mxu0 0
      %1200 = vmatpush1.bf16.msra.mxu0 0
      %1201 = vmatprep.subr.bf16.mxu0 0
      %1202 = vmatpush1.bf16.msra.mxu0 0
      %1203 = vmatprep.subr.bf16.mxu0 0
      %1204 = vmatpush1.bf16.msra.mxu0 0
      %1205 = vmatprep.subr.bf16.mxu0 0
      %1206 = vmatpush1.bf16.msra.mxu0 0
      %1207 = vmatprep.subr.bf16.mxu0 0
      %1208 = vmatpush1.bf16.msra.mxu0 0
      %1209 = vmatprep.subr.bf16.mxu0 0
      %1210 = vmatpush1.bf16.msra.mxu0 0
      %1211 = vmatprep.subr.bf16.mxu0 0
      %1212 = vmatpush1.bf16.msra.mxu0 0
      %1213 = vmatprep.subr.bf16.mxu0 0
      %1214 = vmatpush1.bf16.msra.mxu0 0
      %1215 = vmatprep.subr.bf16.mxu0 0
      %1216 = vmatpush1.bf16.msra.mxu0 0
      %1217 = vmatprep.subr.bf16.mxu0 0
      %1218 = vmatpush1.bf16.msra.mxu0 0
      %1219 = vmatprep.subr.bf16.mxu0 0
      %1220 = vmatpush1.bf16.msra.mxu0 0
      %1221 = vmatprep.subr.bf16.mxu0 0
      %1222 = vmatpush1.bf16.msra.mxu0 0
      %1223 = vmatprep.mubr.bf16.mxu0 0
      %1224 = vmatmul.mubr.bf16.gmra.mrb[0].mxu0 %v1189
      %v1225 = vpop.f32.mrb[0].mxu0
      %v1226 = vadd.f32 %v1182, %v1225
      %v1227 = vpop.f32.mrb[0].mxu0
      %v1228 = vpop.f32.mrb[0].mxu0
      %v1229 = vadd.f32 %v1185, %v1228
      %v1230 = vpop.f32.mrb[0].mxu0
      %1231 = vdwg.mxu0
      %s1232 = scalar_lea.vmem %s3, 128
      %v1233 = vld [vmem:[%s1232] sm:$0xff]
      %v1234 = vld [vmem:[%s1232 + $0x8] sm:$0xff]
      %v1235 = vld [vmem:[%s1232 + $0x10] sm:$0xff]
      %v1236 = vld [vmem:[%s1232 + $0x18] sm:$0xff]
      %v1237 = vld [vmem:[%s1232 + $0x20] sm:$0xff]
      %v1238 = vld [vmem:[%s1232 + $0x28] sm:$0xff]
      %v1239 = vld [vmem:[%s1232 + $0x30] sm:$0xff]
      %v1240 = vld [vmem:[%s1232 + $0x38] sm:$0xff]
      %v1241 = vpack.c.bf16 %v1234, %v1233
      %v1242 = vpack.c.bf16 %v1236, %v1235
      %v1243 = vpack.c.bf16 %v1238, %v1237
      %v1244 = vpack.c.bf16 %v1240, %v1239
      %1245 = vmatprep.subr.bf16.mxu0 0
      %1246 = vmatpush1.bf16.msra.mxu0 %v1241
      %1247 = vmatprep.subr.bf16.mxu0 0
      %1248 = vmatpush1.bf16.msra.mxu0 %v1242
      %1249 = vmatprep.subr.bf16.mxu0 0
      %1250 = vmatpush1.bf16.msra.mxu0 %v1243
      %1251 = vmatprep.subr.bf16.mxu0 0
      %1252 = vmatpush1.bf16.msra.mxu0 %v1244
      %1253 = vmatprep.subr.bf16.mxu0 0
      %1254 = vmatpush1.bf16.msra.mxu0 0
      %1255 = vmatprep.subr.bf16.mxu0 0
      %1256 = vmatpush1.bf16.msra.mxu0 0
      %1257 = vmatprep.subr.bf16.mxu0 0
      %1258 = vmatpush1.bf16.msra.mxu0 0
      %1259 = vmatprep.subr.bf16.mxu0 0
      %1260 = vmatpush1.bf16.msra.mxu0 0
      %1261 = vmatprep.subr.bf16.mxu0 0
      %1262 = vmatpush1.bf16.msra.mxu0 0
      %1263 = vmatprep.subr.bf16.mxu0 0
      %1264 = vmatpush1.bf16.msra.mxu0 0
      %1265 = vmatprep.subr.bf16.mxu0 0
      %1266 = vmatpush1.bf16.msra.mxu0 0
      %1267 = vmatprep.subr.bf16.mxu0 0
      %1268 = vmatpush1.bf16.msra.mxu0 0
      %1269 = vmatprep.subr.bf16.mxu0 0
      %1270 = vmatpush1.bf16.msra.mxu0 0
      %1271 = vmatprep.subr.bf16.mxu0 0
      %1272 = vmatpush1.bf16.msra.mxu0 0
      %1273 = vmatprep.subr.bf16.mxu0 0
      %1274 = vmatpush1.bf16.msra.mxu0 0
      %1275 = vmatprep.subr.bf16.mxu0 0
      %1276 = vmatpush1.bf16.msra.mxu0 0
      %1277 = vmatprep.mubr.bf16.mxu0 0
      %1278 = vmatmul.mubr.bf16.gmra.mrb[0].mxu0 %v585
      %v1279 = vpop.f32.mrb[0].mxu0
      %v1280 = vadd.f32 0.0, %v1279
      %v1281 = vpop.f32.mrb[0].mxu0
      %v1282 = vpop.f32.mrb[0].mxu0
      %v1283 = vadd.f32 0.0, %v1282
      %v1284 = vpop.f32.mrb[0].mxu0
      %1285 = vdwg.mxu0
      %s1286 = scalar_lea.vmem %s4, 128
      %v1287 = vld [vmem:[%s1286] sm:$0xff]
      %v1288 = vld [vmem:[%s1286 + $0x8] sm:$0xff]
      %v1289 = vld [vmem:[%s1286 + $0x10] sm:$0xff]
      %v1290 = vld [vmem:[%s1286 + $0x18] sm:$0xff]
      %v1291 = vld [vmem:[%s1286 + $0x20] sm:$0xff]
      %v1292 = vld [vmem:[%s1286 + $0x28] sm:$0xff]
      %v1293 = vld [vmem:[%s1286 + $0x30] sm:$0xff]
      %v1294 = vld [vmem:[%s1286 + $0x38] sm:$0xff]
      %v1295 = vpack.c.bf16 %v1288, %v1287
      %v1296 = vpack.c.bf16 %v1290, %v1289
      %v1297 = vpack.c.bf16 %v1292, %v1291
      %v1298 = vpack.c.bf16 %v1294, %v1293
      %1299 = vmatprep.subr.bf16.mxu0 0
      %1300 = vmatpush1.bf16.msra.mxu0 %v1295
      %1301 = vmatprep.subr.bf16.mxu0 0
      %1302 = vmatpush1.bf16.msra.mxu0 %v1296
      %1303 = vmatprep.subr.bf16.mxu0 0
      %1304 = vmatpush1.bf16.msra.mxu0 %v1297
      %1305 = vmatprep.subr.bf16.mxu0 0
      %1306 = vmatpush1.bf16.msra.mxu0 %v1298
      %1307 = vmatprep.subr.bf16.mxu0 0
      %1308 = vmatpush1.bf16.msra.mxu0 0
      %1309 = vmatprep.subr.bf16.mxu0 0
      %1310 = vmatpush1.bf16.msra.mxu0 0
      %1311 = vmatprep.subr.bf16.mxu0 0
      %1312 = vmatpush1.bf16.msra.mxu0 0
      %1313 = vmatprep.subr.bf16.mxu0 0
      %1314 = vmatpush1.bf16.msra.mxu0 0
      %1315 = vmatprep.subr.bf16.mxu0 0
      %1316 = vmatpush1.bf16.msra.mxu0 0
      %1317 = vmatprep.subr.bf16.mxu0 0
      %1318 = vmatpush1.bf16.msra.mxu0 0
      %1319 = vmatprep.subr.bf16.mxu0 0
      %1320 = vmatpush1.bf16.msra.mxu0 0
      %1321 = vmatprep.subr.bf16.mxu0 0
      %1322 = vmatpush1.bf16.msra.mxu0 0
      %1323 = vmatprep.subr.bf16.mxu0 0
      %1324 = vmatpush1.bf16.msra.mxu0 0
      %1325 = vmatprep.subr.bf16.mxu0 0
      %1326 = vmatpush1.bf16.msra.mxu0 0
      %1327 = vmatprep.subr.bf16.mxu0 0
      %1328 = vmatpush1.bf16.msra.mxu0 0
      %1329 = vmatprep.subr.bf16.mxu0 0
      %1330 = vmatpush1.bf16.msra.mxu0 0
      %1331 = vmatprep.mubr.bf16.mxu0 0
      %1332 = vmatmul.mubr.bf16.gmra.mrb[0].mxu0 %v585
      %v1333 = vpop.f32.mrb[0].mxu0
      %v1334 = vadd.f32 0.0, %v1333
      %v1335 = vpop.f32.mrb[0].mxu0
      %v1336 = vpop.f32.mrb[0].mxu0
      %v1337 = vadd.f32 0.0, %v1336
      %v1338 = vpop.f32.mrb[0].mxu0
      %1339 = vdwg.mxu0
      %s1340 = scalar_lea.vmem %s5, 128
      %v1341 = vld [vmem:[%s1340] sm:$0xff]
      %v1342 = vld [vmem:[%s1340 + $0x8] sm:$0xff]
      %v1343 = vld [vmem:[%s1340 + $0x10] sm:$0xff]
      %v1344 = vld [vmem:[%s1340 + $0x18] sm:$0xff]
      %v1345 = vld [vmem:[%s1340 + $0x20] sm:$0xff]
      %v1346 = vld [vmem:[%s1340 + $0x28] sm:$0xff]
      %v1347 = vld [vmem:[%s1340 + $0x30] sm:$0xff]
      %v1348 = vld [vmem:[%s1340 + $0x38] sm:$0xff]
      %v1349 = vpack.c.bf16 %v1342, %v1341
      %v1350 = vpack.c.bf16 %v1344, %v1343
      %v1351 = vpack.c.bf16 %v1346, %v1345
      %v1352 = vpack.c.bf16 %v1348, %v1347
      %1353 = vmatprep.subr.bf16.mxu0 0
      %1354 = vmatpush1.bf16.msra.mxu0 %v1349
      %1355 = vmatprep.subr.bf16.mxu0 0
      %1356 = vmatpush1.bf16.msra.mxu0 %v1350
      %1357 = vmatprep.subr.bf16.mxu0 0
      %1358 = vmatpush1.bf16.msra.mxu0 %v1351
      %1359 = vmatprep.subr.bf16.mxu0 0
      %1360 = vmatpush1.bf16.msra.mxu0 %v1352
      %1361 = vmatprep.subr.bf16.mxu0 0
      %1362 = vmatpush1.bf16.msra.mxu0 0
      %1363 = vmatprep.subr.bf16.mxu0 0
      %1364 = vmatpush1.bf16.msra.mxu0 0
      %1365 = vmatprep.subr.bf16.mxu0 0
      %1366 = vmatpush1.bf16.msra.mxu0 0
      %1367 = vmatprep.subr.bf16.mxu0 0
      %1368 = vmatpush1.bf16.msra.mxu0 0
      %1369 = vmatprep.subr.bf16.mxu0 0
      %1370 = vmatpush1.bf16.msra.mxu0 0
      %1371 = vmatprep.subr.bf16.mxu0 0
      %1372 = vmatpush1.bf16.msra.mxu0 0
      %1373 = vmatprep.subr.bf16.mxu0 0
      %1374 = vmatpush1.bf16.msra.mxu0 0
      %1375 = vmatprep.subr.bf16.mxu0 0
      %1376 = vmatpush1.bf16.msra.mxu0 0
      %1377 = vmatprep.subr.bf16.mxu0 0
      %1378 = vmatpush1.bf16.msra.mxu0 0
      %1379 = vmatprep.subr.bf16.mxu0 0
      %1380 = vmatpush1.bf16.msra.mxu0 0
      %1381 = vmatprep.subr.bf16.mxu0 0
      %1382 = vmatpush1.bf16.msra.mxu0 0
      %1383 = vmatprep.subr.bf16.mxu0 0
      %1384 = vmatpush1.bf16.msra.mxu0 0
      %1385 = vmatprep.mubr.bf16.mxu0 0
      %1386 = vmatmul.mubr.bf16.gmra.mrb[0].mxu0 %v585
      %v1387 = vpop.f32.mrb[0].mxu0
      %v1388 = vadd.f32 0.0, %v1387
      %v1389 = vpop.f32.mrb[0].mxu0
      %v1390 = vpop.f32.mrb[0].mxu0
      %v1391 = vadd.f32 0.0, %v1390
      %v1392 = vpop.f32.mrb[0].mxu0
      %1393 = vdwg.mxu0
      %v1394 = vpack.c.bf16 %v1283, %v1280
      %v1395 = vpack.c.bf16 %v1337, %v1334
      %v1397 = vsel %vm736, %v1394, 0
      %v1400 = vsel %vm736, %v1395, 0
      %1402 = vmatprep.subr.bf16.mxu0 0
      %1403 = vmatpush1.bf16.xpose.msra.mxu0 %v1400
      %1404 = vmatprep.subr.bf16.mxu0 0
      %1405 = vmatpush1.bf16.xpose.msra.mxu0 0
      %1406 = vmatprep.subr.bf16.mxu0 0
      %1407 = vmatpush1.bf16.xpose.msra.mxu0 0
      %1408 = vmatprep.subr.bf16.mxu0 0
      %1409 = vmatpush1.bf16.xpose.msra.mxu0 0
      %1410 = vmatprep.subr.bf16.mxu0 0
      %1411 = vmatpush1.bf16.xpose.msra.mxu0 0
      %1412 = vmatprep.subr.bf16.mxu0 0
      %1413 = vmatpush1.bf16.xpose.msra.mxu0 0
      %1414 = vmatprep.subr.bf16.mxu0 0
      %1415 = vmatpush1.bf16.xpose.msra.mxu0 0
      %1416 = vmatprep.subr.bf16.mxu0 0
      %1417 = vmatpush1.bf16.xpose.msra.mxu0 0
      %1418 = vmatprep.subr.bf16.mxu0 0
      %1419 = vmatpush1.bf16.xpose.msra.mxu0 0
      %1420 = vmatprep.subr.bf16.mxu0 0
      %1421 = vmatpush1.bf16.xpose.msra.mxu0 0
      %1422 = vmatprep.subr.bf16.mxu0 0
      %1423 = vmatpush1.bf16.xpose.msra.mxu0 0
      %1424 = vmatprep.subr.bf16.mxu0 0
      %1425 = vmatpush1.bf16.xpose.msra.mxu0 0
      %1426 = vmatprep.subr.bf16.mxu0 0
      %1427 = vmatpush1.bf16.xpose.msra.mxu0 0
      %1428 = vmatprep.subr.bf16.mxu0 0
      %1429 = vmatpush1.bf16.xpose.msra.mxu0 0
      %1430 = vmatprep.subr.bf16.mxu0 0
      %1431 = vmatpush1.bf16.xpose.msra.mxu0 0
      %1432 = vmatprep.subr.bf16.mxu0 0
      %1433 = vmatpush1.bf16.xpose.msra.mxu0 0
      %1434 = vmatprep.mubr.bf16.mxu0 0
      %1435 = vmatmul.mubr.bf16.gmra.mrb[0].mxu0 %v1397
      %v1436 = vpop.f32.mrb[0].mxu0
      %v1437 = vadd.f32 0.0, %v1436
      %v1438 = vpop.f32.mrb[0].mxu0
      %v1439 = vpop.f32.mrb[0].mxu0
      %v1440 = vadd.f32 0.0, %v1439
      %v1441 = vpop.f32.mrb[0].mxu0
      %1442 = vdwg.mxu0
      %v1443 = vmul.f32 %v1437, 0.25
      %v1444 = vmul.f32 %v1440, 0.25
      %v1445 = vsel %vm736, %v1443, -inf
      %1446 = vmax.xlane.f32.xlu0 %v1445
      %v1447 = vpop.xlane.xlu0 %1446
      %v1448 = vsel %vm736, %v1444, -inf
      %1449 = vmax.xlane.f32.xlu0 %v1448
      %v1450 = vpop.xlane.xlu0 %1449
      %v1451 = vsub.f32 %v1443, %v1447
      %v1452 = vsub.f32 %v1444, %v1450
      %v1453 = vmul.f32 %v1451, 1.442695
      %v1454 = vpow.pop %v1453
      %v1455 = vmul.f32 %v1452, 1.442695
      %v1456 = vpow.pop %v1455
      %v1457 = vsel %vm736, %v1454, 0.0
      %1458 = vadd.xlane.f32.xlu0 %v1457
      %v1459 = vpop.xlane.xlu0 %1458
      %v1460 = vsel %vm736, %v1456, 0.0
      %1461 = vadd.xlane.f32.xlu0 %v1460
      %v1462 = vpop.xlane.xlu0 %1461
      %v1463 = vrcp.pop %v1459
      %v1464 = vrcp.pop %v1462
      %v1465 = vmul.f32 %v1454, %v1463
      %v1466 = vmul.f32 %v1456, %v1464
      %v1467 = vpack.c.bf16 %v1466, %v1465
      %v1468 = vpack.c.bf16 %v1391, %v1388
      %v1470 = vsel %vm736, %v1467, 0
      %1472 = vmatprep.subr.bf16.mxu0 0
      %1473 = vmatpush1.bf16.msra.mxu0 %v1468
      %1474 = vmatprep.subr.bf16.mxu0 0
      %1475 = vmatpush1.bf16.msra.mxu0 0
      %1476 = vmatprep.subr.bf16.mxu0 0
      %1477 = vmatpush1.bf16.msra.mxu0 0
      %1478 = vmatprep.subr.bf16.mxu0 0
      %1479 = vmatpush1.bf16.msra.mxu0 0
      %1480 = vmatprep.subr.bf16.mxu0 0
      %1481 = vmatpush1.bf16.msra.mxu0 0
      %1482 = vmatprep.subr.bf16.mxu0 0
      %1483 = vmatpush1.bf16.msra.mxu0 0
      %1484 = vmatprep.subr.bf16.mxu0 0
      %1485 = vmatpush1.bf16.msra.mxu0 0
      %1486 = vmatprep.subr.bf16.mxu0 0
      %1487 = vmatpush1.bf16.msra.mxu0 0
      %1488 = vmatprep.subr.bf16.mxu0 0
      %1489 = vmatpush1.bf16.msra.mxu0 0
      %1490 = vmatprep.subr.bf16.mxu0 0
      %1491 = vmatpush1.bf16.msra.mxu0 0
      %1492 = vmatprep.subr.bf16.mxu0 0
      %1493 = vmatpush1.bf16.msra.mxu0 0
      %1494 = vmatprep.subr.bf16.mxu0 0
      %1495 = vmatpush1.bf16.msra.mxu0 0
      %1496 = vmatprep.subr.bf16.mxu0 0
      %1497 = vmatpush1.bf16.msra.mxu0 0
      %1498 = vmatprep.subr.bf16.mxu0 0
      %1499 = vmatpush1.bf16.msra.mxu0 0
      %1500 = vmatprep.subr.bf16.mxu0 0
      %1501 = vmatpush1.bf16.msra.mxu0 0
      %1502 = vmatprep.subr.bf16.mxu0 0
      %1503 = vmatpush1.bf16.msra.mxu0 0
      %1504 = vmatprep.mubr.bf16.mxu0 0
      %1505 = vmatmul.mubr.bf16.gmra.mrb[0].mxu0 %v1470
      %v1506 = vpop.f32.mrb[0].mxu0
      %v1507 = vadd.f32 0.0, %v1506
      %v1508 = vpop.f32.mrb[0].mxu0
      %v1509 = vpop.f32.mrb[0].mxu0
      %v1510 = vadd.f32 0.0, %v1509
      %v1511 = vpop.f32.mrb[0].mxu0
      %1512 = vdwg.mxu0
      %s1513 = scalar_lea.vmem %s6, 32
      %v1514 = vld [vmem:[%s1513] sm:$0xff]
      %v1515 = vld [vmem:[%s1513 + $0x8] sm:$0xff]
      %v1516 = vpack.c.bf16 %v1510, %v1507
      %v1517 = vpack.c.bf16 %v1515, %v1514
      %v1519 = vsel %vm736, %v1516, 0
      %1521 = vmatprep.subr.bf16.mxu0 0
      %1522 = vmatpush1.bf16.msra.mxu0 %v1517
      %1523 = vmatprep.subr.bf16.mxu0 0
      %1524 = vmatpush1.bf16.msra.mxu0 0
      %1525 = vmatprep.subr.bf16.mxu0 0
      %1526 = vmatpush1.bf16.msra.mxu0 0
      %1527 = vmatprep.subr.bf16.mxu0 0
      %1528 = vmatpush1.bf16.msra.mxu0 0
      %1529 = vmatprep.subr.bf16.mxu0 0
      %1530 = vmatpush1.bf16.msra.mxu0 0
      %1531 = vmatprep.subr.bf16.mxu0 0
      %1532 = vmatpush1.bf16.msra.mxu0 0
      %1533 = vmatprep.subr.bf16.mxu0 0
      %1534 = vmatpush1.bf16.msra.mxu0 0
      %1535 = vmatprep.subr.bf16.mxu0 0
      %1536 = vmatpush1.bf16.msra.mxu0 0
      %1537 = vmatprep.subr.bf16.mxu0 0
      %1538 = vmatpush1.bf16.msra.mxu0 0
      %1539 = vmatprep.subr.bf16.mxu0 0
      %1540 = vmatpush1.bf16.msra.mxu0 0
      %1541 = vmatprep.subr.bf16.mxu0 0
      %1542 = vmatpush1.bf16.msra.mxu0 0
      %1543 = vmatprep.subr.bf16.mxu0 0
      %1544 = vmatpush1.bf16.msra.mxu0 0
      %1545 = vmatprep.subr.bf16.mxu0 0
      %1546 = vmatpush1.bf16.msra.mxu0 0
      %1547 = vmatprep.subr.bf16.mxu0 0
      %1548 = vmatpush1.bf16.msra.mxu0 0
      %1549 = vmatprep.subr.bf16.mxu0 0
      %1550 = vmatpush1.bf16.msra.mxu0 0
      %1551 = vmatprep.subr.bf16.mxu0 0
      %1552 = vmatpush1.bf16.msra.mxu0 0
      %1553 = vmatprep.mubr.bf16.mxu0 0
      %1554 = vmatmul.mubr.bf16.gmra.mrb[0].mxu0 %v1519
      %v1555 = vpop.f32.mrb[0].mxu0
      %v1556 = vadd.f32 0.0, %v1555
      %v1557 = vpop.f32.mrb[0].mxu0
      %v1558 = vpop.f32.mrb[0].mxu0
      %v1559 = vadd.f32 0.0, %v1558
      %v1560 = vpop.f32.mrb[0].mxu0
      %1561 = vdwg.mxu0
      %v1562 = vadd.f32 %v1226, %v1556
      %v1563 = vadd.f32 %v1229, %v1559
      %s1564 = scalar_lea.vmem %s3, 192
      %v1565 = vld [vmem:[%s1564] sm:$0xff]
      %v1566 = vld [vmem:[%s1564 + $0x8] sm:$0xff]
      %v1567 = vld [vmem:[%s1564 + $0x10] sm:$0xff]
      %v1568 = vld [vmem:[%s1564 + $0x18] sm:$0xff]
      %v1569 = vld [vmem:[%s1564 + $0x20] sm:$0xff]
      %v1570 = vld [vmem:[%s1564 + $0x28] sm:$0xff]
      %v1571 = vld [vmem:[%s1564 + $0x30] sm:$0xff]
      %v1572 = vld [vmem:[%s1564 + $0x38] sm:$0xff]
      %v1573 = vpack.c.bf16 %v1566, %v1565
      %v1574 = vpack.c.bf16 %v1568, %v1567
      %v1575 = vpack.c.bf16 %v1570, %v1569
      %v1576 = vpack.c.bf16 %v1572, %v1571
      %1577 = vmatprep.subr.bf16.mxu0 0
      %1578 = vmatpush1.bf16.msra.mxu0 %v1573
      %1579 = vmatprep.subr.bf16.mxu0 0
      %1580 = vmatpush1.bf16.msra.mxu0 %v1574
      %1581 = vmatprep.subr.bf16.mxu0 0
      %1582 = vmatpush1.bf16.msra.mxu0 %v1575
      %1583 = vmatprep.subr.bf16.mxu0 0
      %1584 = vmatpush1.bf16.msra.mxu0 %v1576
      %1585 = vmatprep.subr.bf16.mxu0 0
      %1586 = vmatpush1.bf16.msra.mxu0 0
      %1587 = vmatprep.subr.bf16.mxu0 0
      %1588 = vmatpush1.bf16.msra.mxu0 0
      %1589 = vmatprep.subr.bf16.mxu0 0
      %1590 = vmatpush1.bf16.msra.mxu0 0
      %1591 = vmatprep.subr.bf16.mxu0 0
      %1592 = vmatpush1.bf16.msra.mxu0 0
      %1593 = vmatprep.subr.bf16.mxu0 0
      %1594 = vmatpush1.bf16.msra.mxu0 0
      %1595 = vmatprep.subr.bf16.mxu0 0
      %1596 = vmatpush1.bf16.msra.mxu0 0
      %1597 = vmatprep.subr.bf16.mxu0 0
      %1598 = vmatpush1.bf16.msra.mxu0 0
      %1599 = vmatprep.subr.bf16.mxu0 0
      %1600 = vmatpush1.bf16.msra.mxu0 0
      %1601 = vmatprep.subr.bf16.mxu0 0
      %1602 = vmatpush1.bf16.msra.mxu0 0
      %1603 = vmatprep.subr.bf16.mxu0 0
      %1604 = vmatpush1.bf16.msra.mxu0 0
      %1605 = vmatprep.subr.bf16.mxu0 0
      %1606 = vmatpush1.bf16.msra.mxu0 0
      %1607 = vmatprep.subr.bf16.mxu0 0
      %1608 = vmatpush1.bf16.msra.mxu0 0
      %1609 = vmatprep.mubr.bf16.mxu0 0
      %1610 = vmatmul.mubr.bf16.gmra.mrb[0].mxu0 %v585
      %v1611 = vpop.f32.mrb[0].mxu0
      %v1612 = vadd.f32 0.0, %v1611
      %v1613 = vpop.f32.mrb[0].mxu0
      %v1614 = vpop.f32.mrb[0].mxu0
      %v1615 = vadd.f32 0.0, %v1614
      %v1616 = vpop.f32.mrb[0].mxu0
      %1617 = vdwg.mxu0
      %s1618 = scalar_lea.vmem %s4, 192
      %v1619 = vld [vmem:[%s1618] sm:$0xff]
      %v1620 = vld [vmem:[%s1618 + $0x8] sm:$0xff]
      %v1621 = vld [vmem:[%s1618 + $0x10] sm:$0xff]
      %v1622 = vld [vmem:[%s1618 + $0x18] sm:$0xff]
      %v1623 = vld [vmem:[%s1618 + $0x20] sm:$0xff]
      %v1624 = vld [vmem:[%s1618 + $0x28] sm:$0xff]
      %v1625 = vld [vmem:[%s1618 + $0x30] sm:$0xff]
      %v1626 = vld [vmem:[%s1618 + $0x38] sm:$0xff]
      %v1627 = vpack.c.bf16 %v1620, %v1619
      %v1628 = vpack.c.bf16 %v1622, %v1621
      %v1629 = vpack.c.bf16 %v1624, %v1623
      %v1630 = vpack.c.bf16 %v1626, %v1625
      %1631 = vmatprep.subr.bf16.mxu0 0
      %1632 = vmatpush1.bf16.msra.mxu0 %v1627
      %1633 = vmatprep.subr.bf16.mxu0 0
      %1634 = vmatpush1.bf16.msra.mxu0 %v1628
      %1635 = vmatprep.subr.bf16.mxu0 0
      %1636 = vmatpush1.bf16.msra.mxu0 %v1629
      %1637 = vmatprep.subr.bf16.mxu0 0
      %1638 = vmatpush1.bf16.msra.mxu0 %v1630
      %1639 = vmatprep.subr.bf16.mxu0 0
      %1640 = vmatpush1.bf16.msra.mxu0 0
      %1641 = vmatprep.subr.bf16.mxu0 0
      %1642 = vmatpush1.bf16.msra.mxu0 0
      %1643 = vmatprep.subr.bf16.mxu0 0
      %1644 = vmatpush1.bf16.msra.mxu0 0
      %1645 = vmatprep.subr.bf16.mxu0 0
      %1646 = vmatpush1.bf16.msra.mxu0 0
      %1647 = vmatprep.subr.bf16.mxu0 0
      %1648 = vmatpush1.bf16.msra.mxu0 0
      %1649 = vmatprep.subr.bf16.mxu0 0
      %1650 = vmatpush1.bf16.msra.mxu0 0
      %1651 = vmatprep.subr.bf16.mxu0 0
      %1652 = vmatpush1.bf16.msra.mxu0 0
      %1653 = vmatprep.subr.bf16.mxu0 0
      %1654 = vmatpush1.bf16.msra.mxu0 0
      %1655 = vmatprep.subr.bf16.mxu0 0
      %1656 = vmatpush1.bf16.msra.mxu0 0
      %1657 = vmatprep.subr.bf16.mxu0 0
      %1658 = vmatpush1.bf16.msra.mxu0 0
      %1659 = vmatprep.subr.bf16.mxu0 0
      %1660 = vmatpush1.bf16.msra.mxu0 0
      %1661 = vmatprep.subr.bf16.mxu0 0
      %1662 = vmatpush1.bf16.msra.mxu0 0
      %1663 = vmatprep.mubr.bf16.mxu0 0
      %1664 = vmatmul.mubr.bf16.gmra.mrb[0].mxu0 %v585
      %v1665 = vpop.f32.mrb[0].mxu0
      %v1666 = vadd.f32 0.0, %v1665
      %v1667 = vpop.f32.mrb[0].mxu0
      %v1668 = vpop.f32.mrb[0].mxu0
      %v1669 = vadd.f32 0.0, %v1668
      %v1670 = vpop.f32.mrb[0].mxu0
      %1671 = vdwg.mxu0
      %s1672 = scalar_lea.vmem %s5, 192
      %v1673 = vld [vmem:[%s1672] sm:$0xff]
      %v1674 = vld [vmem:[%s1672 + $0x8] sm:$0xff]
      %v1675 = vld [vmem:[%s1672 + $0x10] sm:$0xff]
      %v1676 = vld [vmem:[%s1672 + $0x18] sm:$0xff]
      %v1677 = vld [vmem:[%s1672 + $0x20] sm:$0xff]
      %v1678 = vld [vmem:[%s1672 + $0x28] sm:$0xff]
      %v1679 = vld [vmem:[%s1672 + $0x30] sm:$0xff]
      %v1680 = vld [vmem:[%s1672 + $0x38] sm:$0xff]
      %v1681 = vpack.c.bf16 %v1674, %v1673
      %v1682 = vpack.c.bf16 %v1676, %v1675
      %v1683 = vpack.c.bf16 %v1678, %v1677
      %v1684 = vpack.c.bf16 %v1680, %v1679
      %1685 = vmatprep.subr.bf16.mxu0 0
      %1686 = vmatpush1.bf16.msra.mxu0 %v1681
      %1687 = vmatprep.subr.bf16.mxu0 0
      %1688 = vmatpush1.bf16.msra.mxu0 %v1682
      %1689 = vmatprep.subr.bf16.mxu0 0
      %1690 = vmatpush1.bf16.msra.mxu0 %v1683
      %1691 = vmatprep.subr.bf16.mxu0 0
      %1692 = vmatpush1.bf16.msra.mxu0 %v1684
      %1693 = vmatprep.subr.bf16.mxu0 0
      %1694 = vmatpush1.bf16.msra.mxu0 0
      %1695 = vmatprep.subr.bf16.mxu0 0
      %1696 = vmatpush1.bf16.msra.mxu0 0
      %1697 = vmatprep.subr.bf16.mxu0 0
      %1698 = vmatpush1.bf16.msra.mxu0 0
      %1699 = vmatprep.subr.bf16.mxu0 0
      %1700 = vmatpush1.bf16.msra.mxu0 0
      %1701 = vmatprep.subr.bf16.mxu0 0
      %1702 = vmatpush1.bf16.msra.mxu0 0
      %1703 = vmatprep.subr.bf16.mxu0 0
      %1704 = vmatpush1.bf16.msra.mxu0 0
      %1705 = vmatprep.subr.bf16.mxu0 0
      %1706 = vmatpush1.bf16.msra.mxu0 0
      %1707 = vmatprep.subr.bf16.mxu0 0
      %1708 = vmatpush1.bf16.msra.mxu0 0
      %1709 = vmatprep.subr.bf16.mxu0 0
      %1710 = vmatpush1.bf16.msra.mxu0 0
      %1711 = vmatprep.subr.bf16.mxu0 0
      %1712 = vmatpush1.bf16.msra.mxu0 0
      %1713 = vmatprep.subr.bf16.mxu0 0
      %1714 = vmatpush1.bf16.msra.mxu0 0
      %1715 = vmatprep.subr.bf16.mxu0 0
      %1716 = vmatpush1.bf16.msra.mxu0 0
      %1717 = vmatprep.mubr.bf16.mxu0 0
      %1718 = vmatmul.mubr.bf16.gmra.mrb[0].mxu0 %v585
      %v1719 = vpop.f32.mrb[0].mxu0
      %v1720 = vadd.f32 0.0, %v1719
      %v1721 = vpop.f32.mrb[0].mxu0
      %v1722 = vpop.f32.mrb[0].mxu0
      %v1723 = vadd.f32 0.0, %v1722
      %v1724 = vpop.f32.mrb[0].mxu0
      %1725 = vdwg.mxu0
      %v1726 = vpack.c.bf16 %v1615, %v1612
      %v1727 = vpack.c.bf16 %v1669, %v1666
      %v1729 = vsel %vm736, %v1726, 0
      %v1732 = vsel %vm736, %v1727, 0
      %1734 = vmatprep.subr.bf16.mxu0 0
      %1735 = vmatpush1.bf16.xpose.msra.mxu0 %v1732
      %1736 = vmatprep.subr.bf16.mxu0 0
      %1737 = vmatpush1.bf16.xpose.msra.mxu0 0
      %1738 = vmatprep.subr.bf16.mxu0 0
      %1739 = vmatpush1.bf16.xpose.msra.mxu0 0
      %1740 = vmatprep.subr.bf16.mxu0 0
      %1741 = vmatpush1.bf16.xpose.msra.mxu0 0
      %1742 = vmatprep.subr.bf16.mxu0 0
      %1743 = vmatpush1.bf16.xpose.msra.mxu0 0
      %1744 = vmatprep.subr.bf16.mxu0 0
      %1745 = vmatpush1.bf16.xpose.msra.mxu0 0
      %1746 = vmatprep.subr.bf16.mxu0 0
      %1747 = vmatpush1.bf16.xpose.msra.mxu0 0
      %1748 = vmatprep.subr.bf16.mxu0 0
      %1749 = vmatpush1.bf16.xpose.msra.mxu0 0
      %1750 = vmatprep.subr.bf16.mxu0 0
      %1751 = vmatpush1.bf16.xpose.msra.mxu0 0
      %1752 = vmatprep.subr.bf16.mxu0 0
      %1753 = vmatpush1.bf16.xpose.msra.mxu0 0
      %1754 = vmatprep.subr.bf16.mxu0 0
      %1755 = vmatpush1.bf16.xpose.msra.mxu0 0
      %1756 = vmatprep.subr.bf16.mxu0 0
      %1757 = vmatpush1.bf16.xpose.msra.mxu0 0
      %1758 = vmatprep.subr.bf16.mxu0 0
      %1759 = vmatpush1.bf16.xpose.msra.mxu0 0
      %1760 = vmatprep.subr.bf16.mxu0 0
      %1761 = vmatpush1.bf16.xpose.msra.mxu0 0
      %1762 = vmatprep.subr.bf16.mxu0 0
      %1763 = vmatpush1.bf16.xpose.msra.mxu0 0
      %1764 = vmatprep.subr.bf16.mxu0 0
      %1765 = vmatpush1.bf16.xpose.msra.mxu0 0
      %1766 = vmatprep.mubr.bf16.mxu0 0
      %1767 = vmatmul.mubr.bf16.gmra.mrb[0].mxu0 %v1729
      %v1768 = vpop.f32.mrb[0].mxu0
      %v1769 = vadd.f32 0.0, %v1768
      %v1770 = vpop.f32.mrb[0].mxu0
      %v1771 = vpop.f32.mrb[0].mxu0
      %v1772 = vadd.f32 0.0, %v1771
      %v1773 = vpop.f32.mrb[0].mxu0
      %1774 = vdwg.mxu0
      %v1775 = vmul.f32 %v1769, 0.25
      %v1776 = vmul.f32 %v1772, 0.25
      %v1777 = vsel %vm736, %v1775, -inf
      %1778 = vmax.xlane.f32.xlu0 %v1777
      %v1779 = vpop.xlane.xlu0 %1778
      %v1780 = vsel %vm736, %v1776, -inf
      %1781 = vmax.xlane.f32.xlu0 %v1780
      %v1782 = vpop.xlane.xlu0 %1781
      %v1783 = vsub.f32 %v1775, %v1779
      %v1784 = vsub.f32 %v1776, %v1782
      %v1785 = vmul.f32 %v1783, 1.442695
      %v1786 = vpow.pop %v1785
      %v1787 = vmul.f32 %v1784, 1.442695
      %v1788 = vpow.pop %v1787
      %v1789 = vsel %vm736, %v1786, 0.0
      %1790 = vadd.xlane.f32.xlu0 %v1789
      %v1791 = vpop.xlane.xlu0 %1790
      %v1792 = vsel %vm736, %v1788, 0.0
      %1793 = vadd.xlane.f32.xlu0 %v1792
      %v1794 = vpop.xlane.xlu0 %1793
      %v1795 = vrcp.pop %v1791
      %v1796 = vrcp.pop %v1794
      %v1797 = vmul.f32 %v1786, %v1795
      %v1798 = vmul.f32 %v1788, %v1796
      %v1799 = vpack.c.bf16 %v1798, %v1797
      %v1800 = vpack.c.bf16 %v1723, %v1720
      %v1802 = vsel %vm736, %v1799, 0
      %1804 = vmatprep.subr.bf16.mxu0 0
      %1805 = vmatpush1.bf16.msra.mxu0 %v1800
      %1806 = vmatprep.subr.bf16.mxu0 0
      %1807 = vmatpush1.bf16.msra.mxu0 0
      %1808 = vmatprep.subr.bf16.mxu0 0
      %1809 = vmatpush1.bf16.msra.mxu0 0
      %1810 = vmatprep.subr.bf16.mxu0 0
      %1811 = vmatpush1.bf16.msra.mxu0 0
      %1812 = vmatprep.subr.bf16.mxu0 0
      %1813 = vmatpush1.bf16.msra.mxu0 0
      %1814 = vmatprep.subr.bf16.mxu0 0
      %1815 = vmatpush1.bf16.msra.mxu0 0
      %1816 = vmatprep.subr.bf16.mxu0 0
      %1817 = vmatpush1.bf16.msra.mxu0 0
      %1818 = vmatprep.subr.bf16.mxu0 0
      %1819 = vmatpush1.bf16.msra.mxu0 0
      %1820 = vmatprep.subr.bf16.mxu0 0
      %1821 = vmatpush1.bf16.msra.mxu0 0
      %1822 = vmatprep.subr.bf16.mxu0 0
      %1823 = vmatpush1.bf16.msra.mxu0 0
      %1824 = vmatprep.subr.bf16.mxu0 0
      %1825 = vmatpush1.bf16.msra.mxu0 0
      %1826 = vmatprep.subr.bf16.mxu0 0
      %1827 = vmatpush1.bf16.msra.mxu0 0
      %1828 = vmatprep.subr.bf16.mxu0 0
      %1829 = vmatpush1.bf16.msra.mxu0 0
      %1830 = vmatprep.subr.bf16.mxu0 0
      %1831 = vmatpush1.bf16.msra.mxu0 0
      %1832 = vmatprep.subr.bf16.mxu0 0
      %1833 = vmatpush1.bf16.msra.mxu0 0
      %1834 = vmatprep.subr.bf16.mxu0 0
      %1835 = vmatpush1.bf16.msra.mxu0 0
      %1836 = vmatprep.mubr.bf16.mxu0 0
      %1837 = vmatmul.mubr.bf16.gmra.mrb[0].mxu0 %v1802
      %v1838 = vpop.f32.mrb[0].mxu0
      %v1839 = vadd.f32 0.0, %v1838
      %v1840 = vpop.f32.mrb[0].mxu0
      %v1841 = vpop.f32.mrb[0].mxu0
      %v1842 = vadd.f32 0.0, %v1841
      %v1843 = vpop.f32.mrb[0].mxu0
      %1844 = vdwg.mxu0
      %s1845 = scalar_lea.vmem %s6, 48
      %v1846 = vld [vmem:[%s1845] sm:$0xff]
      %v1847 = vld [vmem:[%s1845 + $0x8] sm:$0xff]
      %v1848 = vpack.c.bf16 %v1842, %v1839
      %v1849 = vpack.c.bf16 %v1847, %v1846
      %v1851 = vsel %vm736, %v1848, 0
      %1853 = vmatprep.subr.bf16.mxu0 0
      %1854 = vmatpush1.bf16.msra.mxu0 %v1849
      %1855 = vmatprep.subr.bf16.mxu0 0
      %1856 = vmatpush1.bf16.msra.mxu0 0
      %1857 = vmatprep.subr.bf16.mxu0 0
      %1858 = vmatpush1.bf16.msra.mxu0 0
      %1859 = vmatprep.subr.bf16.mxu0 0
      %1860 = vmatpush1.bf16.msra.mxu0 0
      %1861 = vmatprep.subr.bf16.mxu0 0
      %1862 = vmatpush1.bf16.msra.mxu0 0
      %1863 = vmatprep.subr.bf16.mxu0 0
      %1864 = vmatpush1.bf16.msra.mxu0 0
      %1865 = vmatprep.subr.bf16.mxu0 0
      %1866 = vmatpush1.bf16.msra.mxu0 0
      %1867 = vmatprep.subr.bf16.mxu0 0
      %1868 = vmatpush1.bf16.msra.mxu0 0
      %1869 = vmatprep.subr.bf16.mxu0 0
      %1870 = vmatpush1.bf16.msra.mxu0 0
      %1871 = vmatprep.subr.bf16.mxu0 0
      %1872 = vmatpush1.bf16.msra.mxu0 0
      %1873 = vmatprep.subr.bf16.mxu0 0
      %1874 = vmatpush1.bf16.msra.mxu0 0
      %1875 = vmatprep.subr.bf16.mxu0 0
      %1876 = vmatpush1.bf16.msra.mxu0 0
      %1877 = vmatprep.subr.bf16.mxu0 0
      %1878 = vmatpush1.bf16.msra.mxu0 0
      %1879 = vmatprep.subr.bf16.mxu0 0
      %1880 = vmatpush1.bf16.msra.mxu0 0
      %1881 = vmatprep.subr.bf16.mxu0 0
      %1882 = vmatpush1.bf16.msra.mxu0 0
      %1883 = vmatprep.subr.bf16.mxu0 0
      %1884 = vmatpush1.bf16.msra.mxu0 0
      %1885 = vmatprep.mubr.bf16.mxu0 0
      %1886 = vmatmul.mubr.bf16.gmra.mrb[0].mxu0 %v1851
      %v1887 = vpop.f32.mrb[0].mxu0
      %v1888 = vadd.f32 0.0, %v1887
      %v1889 = vpop.f32.mrb[0].mxu0
      %v1890 = vpop.f32.mrb[0].mxu0
      %v1891 = vadd.f32 0.0, %v1890
      %v1892 = vpop.f32.mrb[0].mxu0
      %1893 = vdwg.mxu0
      %v1894 = vadd.f32 %v1562, %v1888
      %v1895 = vadd.f32 %v1563, %v1891
      %v1896 = vld [vmem:[%s7] sm:$0x1]
      %v1898 = vlaneseq
      %v1899 = vshrl.u32 %v1898, 7
      %v1900 = vsub.s32 0, %v1899
      %v1901 = vrot.slane %v1896, %v1900
      %v1903 = vadd.f32 %v1894, %v1901
      %v1904 = vadd.f32 %v1895, %v1901
      %v1905 = vadd.f32 %v1903, %v523
      %v1906 = vadd.f32 %v1904, %v524
      %v1907 = vld [vmem:[%s8] sm:$0x1]
      %v1908 = vld [vmem:[%s9] sm:$0x1]
      %v1909 = vsel %vm527, %v1905, 0.0
      %1910 = vadd.xlane.f32.xlu0 %v1909
      %v1911 = vpop.xlane.xlu0 %1910
      %v1912 = vsel %vm527, %v1906, 0.0
      %1913 = vadd.xlane.f32.xlu0 %v1912
      %v1914 = vpop.xlane.xlu0 %1913
      %v1915 = vmul.f32 %v1911, %v534
      %v1916 = vmul.f32 %v1914, %v534
      %v1917 = vsub.f32 %v1905, %v1915
      %v1918 = vsub.f32 %v1906, %v1916
      %v1919 = vmul.f32 %v1917, %v1917
      %v1920 = vmul.f32 %v1918, %v1918
      %v1921 = vsel %vm527, %v1919, 0.0
      %1922 = vadd.xlane.f32.xlu0 %v1921
      %v1923 = vpop.xlane.xlu0 %1922
      %v1924 = vsel %vm527, %v1920, 0.0
      %1925 = vadd.xlane.f32.xlu0 %v1924
      %v1926 = vpop.xlane.xlu0 %1925
      %v1927 = vmul.f32 %v1923, %v534
      %v1928 = vmul.f32 %v1926, %v534
      %v1929 = vadd.f32 %v1927, 1e-05
      %v1930 = vadd.f32 %v1928, 1e-05
      %v1931 = vrsqrt.pop %v1929
      %v1932 = vrsqrt.pop %v1930
      %v1933 = vmul.f32 %v1917, %v1931
      %v1934 = vmul.f32 %v1918, %v1932
      %v1936 = vlaneseq
      %v1937 = vshrl.u32 %v1936, 7
      %v1938 = vsub.s32 0, %v1937
      %v1939 = vrot.slane %v1907, %v1938
      %v1941 = vmul.f32 %v1933, %v1939
      %v1942 = vmul.f32 %v1934, %v1939
      %v1944 = vlaneseq
      %v1945 = vshrl.u32 %v1944, 7
      %v1946 = vsub.s32 0, %v1945
      %v1947 = vrot.slane %v1908, %v1946
      %v1949 = vadd.f32 %v1941, %v1947
      %v1950 = vadd.f32 %v1942, %v1947
      %v1951 = vld [vmem:[%s10] sm:$0xff]
      %v1952 = vld [vmem:[%s10 + $0x8] sm:$0xff]
      %v1953 = vld [vmem:[%s10 + $0x10] sm:$0xff]
      %v1954 = vld [vmem:[%s10 + $0x18] sm:$0xff]
      %v1955 = vld [vmem:[%s10 + $0x20] sm:$0xff]
      %v1956 = vld [vmem:[%s10 + $0x28] sm:$0xff]
      %v1957 = vld [vmem:[%s10 + $0x30] sm:$0xff]
      %v1958 = vld [vmem:[%s10 + $0x38] sm:$0xff]
      %v1959 = vld [vmem:[%s10 + $0x40] sm:$0xff]
      %v1960 = vld [vmem:[%s10 + $0x48] sm:$0xff]
      %v1961 = vld [vmem:[%s10 + $0x50] sm:$0xff]
      %v1962 = vld [vmem:[%s10 + $0x58] sm:$0xff]
      %v1963 = vld [vmem:[%s10 + $0x60] sm:$0xff]
      %v1964 = vld [vmem:[%s10 + $0x68] sm:$0xff]
      %v1965 = vld [vmem:[%s10 + $0x70] sm:$0xff]
      %v1966 = vld [vmem:[%s10 + $0x78] sm:$0xff]
      %v1967 = vld [vmem:[%s11] sm:$0x3]
      %v1968 = vld [vmem:[%s12] sm:$0xff]
      %v1969 = vld [vmem:[%s12 + $0x8] sm:$0xff]
      %v1970 = vld [vmem:[%s12 + $0x10] sm:$0xff]
      %v1971 = vld [vmem:[%s12 + $0x18] sm:$0xff]
      %v1972 = vld [vmem:[%s12 + $0x20] sm:$0xff]
      %v1973 = vld [vmem:[%s12 + $0x28] sm:$0xff]
      %v1974 = vld [vmem:[%s12 + $0x30] sm:$0xff]
      %v1975 = vld [vmem:[%s12 + $0x38] sm:$0xff]
      %v1976 = vld [vmem:[%s12 + $0x40] sm:$0xff]
      %v1977 = vld [vmem:[%s12 + $0x48] sm:$0xff]
      %v1978 = vld [vmem:[%s12 + $0x50] sm:$0xff]
      %v1979 = vld [vmem:[%s12 + $0x58] sm:$0xff]
      %v1980 = vld [vmem:[%s12 + $0x60] sm:$0xff]
      %v1981 = vld [vmem:[%s12 + $0x68] sm:$0xff]
      %v1982 = vld [vmem:[%s12 + $0x70] sm:$0xff]
      %v1983 = vld [vmem:[%s12 + $0x78] sm:$0xff]
      %v1984 = vld [vmem:[%s13] sm:$0x3]
      %v1985 = vld [vmem:[%s14] sm:$0xff]
      %v1986 = vld [vmem:[%s14 + $0x8] sm:$0xff]
      %v1987 = vld [vmem:[%s14 + $0x10] sm:$0xff]
      %v1988 = vld [vmem:[%s14 + $0x18] sm:$0xff]
      %v1989 = vld [vmem:[%s14 + $0x20] sm:$0xff]
      %v1990 = vld [vmem:[%s14 + $0x28] sm:$0xff]
      %v1991 = vld [vmem:[%s14 + $0x30] sm:$0xff]
      %v1992 = vld [vmem:[%s14 + $0x38] sm:$0xff]
      %v1993 = vld [vmem:[%s14 + $0x40] sm:$0xff]
      %v1994 = vld [vmem:[%s14 + $0x48] sm:$0xff]
      %v1995 = vld [vmem:[%s14 + $0x50] sm:$0xff]
      %v1996 = vld [vmem:[%s14 + $0x58] sm:$0xff]
      %v1997 = vld [vmem:[%s14 + $0x60] sm:$0xff]
      %v1998 = vld [vmem:[%s14 + $0x68] sm:$0xff]
      %v1999 = vld [vmem:[%s14 + $0x70] sm:$0xff]
      %v2000 = vld [vmem:[%s14 + $0x78] sm:$0xff]
      %v2001 = vld [vmem:[%s14 + $0x80] sm:$0xff]
      %v2002 = vld [vmem:[%s14 + $0x88] sm:$0xff]
      %v2003 = vld [vmem:[%s14 + $0x90] sm:$0xff]
      %v2004 = vld [vmem:[%s14 + $0x98] sm:$0xff]
      %v2005 = vld [vmem:[%s14 + $0xa0] sm:$0xff]
      %v2006 = vld [vmem:[%s14 + $0xa8] sm:$0xff]
      %v2007 = vld [vmem:[%s14 + $0xb0] sm:$0xff]
      %v2008 = vld [vmem:[%s14 + $0xb8] sm:$0xff]
      %v2009 = vld [vmem:[%s14 + $0xc0] sm:$0xff]
      %v2010 = vld [vmem:[%s14 + $0xc8] sm:$0xff]
      %v2011 = vld [vmem:[%s14 + $0xd0] sm:$0xff]
      %v2012 = vld [vmem:[%s14 + $0xd8] sm:$0xff]
      %v2013 = vld [vmem:[%s14 + $0xe0] sm:$0xff]
      %v2014 = vld [vmem:[%s14 + $0xe8] sm:$0xff]
      %v2015 = vld [vmem:[%s14 + $0xf0] sm:$0xff]
      %v2016 = vld [vmem:[%s14 + $0xf8] sm:$0xff]
      %v2017 = vld [vmem:[%s15] sm:$0x1]
      %v2018 = vpack.c.bf16 %v1950, %v1949
      %v2019 = vpack.c.bf16 %v1953, %v1951
      %v2020 = vpack.c.bf16 %v1954, %v1952
      %v2021 = vpack.c.bf16 %v1957, %v1955
      %v2022 = vpack.c.bf16 %v1958, %v1956
      %v2023 = vpack.c.bf16 %v1961, %v1959
      %v2024 = vpack.c.bf16 %v1962, %v1960
      %v2025 = vpack.c.bf16 %v1965, %v1963
      %v2026 = vpack.c.bf16 %v1966, %v1964
      %v2028 = vlaneseq
      %v2029 = vshrl.u32 %v2028, 7
      %v2030 = vsub.s32 0, %v2029
      %v2031 = vrot.slane %v1967, %v2030
      %v2032 = vlaneseq
      %v2033 = vshrl.u32 %v2032, 7
      %v2034 = vsub.s32 1, %v2033
      %v2035 = vrot.slane %v1967, %v2034
      %v2039 = vsel %vm527, %v2018, 0
      %2041 = vmatprep.subr.bf16.mxu0 %v2020
      %2042 = vmatpush1.bf16.msra.mxu0 %v2019
      %2043 = vmatprep.subr.bf16.mxu0 %v2022
      %2044 = vmatpush1.bf16.msra.mxu0 %v2021
      %2045 = vmatprep.subr.bf16.mxu0 %v2024
      %2046 = vmatpush1.bf16.msra.mxu0 %v2023
      %2047 = vmatprep.subr.bf16.mxu0 %v2026
      %2048 = vmatpush1.bf16.msra.mxu0 %v2025
      %2049 = vmatprep.subr.bf16.mxu0 0
      %2050 = vmatpush1.bf16.msra.mxu0 0
      %2051 = vmatprep.subr.bf16.mxu0 0
      %2052 = vmatpush1.bf16.msra.mxu0 0
      %2053 = vmatprep.subr.bf16.mxu0 0
      %2054 = vmatpush1.bf16.msra.mxu0 0
      %2055 = vmatprep.subr.bf16.mxu0 0
      %2056 = vmatpush1.bf16.msra.mxu0 0
      %2057 = vmatprep.subr.bf16.mxu0 0
      %2058 = vmatpush1.bf16.msra.mxu0 0
      %2059 = vmatprep.subr.bf16.mxu0 0
      %2060 = vmatpush1.bf16.msra.mxu0 0
      %2061 = vmatprep.subr.bf16.mxu0 0
      %2062 = vmatpush1.bf16.msra.mxu0 0
      %2063 = vmatprep.subr.bf16.mxu0 0
      %2064 = vmatpush1.bf16.msra.mxu0 0
      %2065 = vmatprep.subr.bf16.mxu0 0
      %2066 = vmatpush1.bf16.msra.mxu0 0
      %2067 = vmatprep.subr.bf16.mxu0 0
      %2068 = vmatpush1.bf16.msra.mxu0 0
      %2069 = vmatprep.subr.bf16.mxu0 0
      %2070 = vmatpush1.bf16.msra.mxu0 0
      %2071 = vmatprep.subr.bf16.mxu0 0
      %2072 = vmatpush1.bf16.msra.mxu0 0
      %2073 = vmatprep.mubr.bf16.mxu0 0
      %2074 = vmatmul.mubr.bf16.gmra.mrb[0].mxu0 %v2039
      %v2075 = vpop.f32.mrb[0].mxu0
      %v2076 = vadd.f32 %v2031, %v2075
      %v2077 = vpop.f32.mrb[0].mxu0
      %v2078 = vadd.f32 %v2035, %v2077
      %v2079 = vpop.f32.mrb[0].mxu0
      %v2080 = vadd.f32 %v2031, %v2079
      %v2081 = vpop.f32.mrb[0].mxu0
      %v2082 = vadd.f32 %v2035, %v2081
      %2083 = vdwg.mxu0
      %v2084 = vpack.c.bf16 %v1970, %v1968
      %v2085 = vpack.c.bf16 %v1971, %v1969
      %v2086 = vpack.c.bf16 %v1974, %v1972
      %v2087 = vpack.c.bf16 %v1975, %v1973
      %v2088 = vpack.c.bf16 %v1978, %v1976
      %v2089 = vpack.c.bf16 %v1979, %v1977
      %v2090 = vpack.c.bf16 %v1982, %v1980
      %v2091 = vpack.c.bf16 %v1983, %v1981
      %v2093 = vlaneseq
      %v2094 = vshrl.u32 %v2093, 7
      %v2095 = vsub.s32 0, %v2094
      %v2096 = vrot.slane %v1984, %v2095
      %v2097 = vlaneseq
      %v2098 = vshrl.u32 %v2097, 7
      %v2099 = vsub.s32 1, %v2098
      %v2100 = vrot.slane %v1984, %v2099
      %2103 = vmatprep.subr.bf16.mxu0 %v2085
      %2104 = vmatpush1.bf16.msra.mxu0 %v2084
      %2105 = vmatprep.subr.bf16.mxu0 %v2087
      %2106 = vmatpush1.bf16.msra.mxu0 %v2086
      %2107 = vmatprep.subr.bf16.mxu0 %v2089
      %2108 = vmatpush1.bf16.msra.mxu0 %v2088
      %2109 = vmatprep.subr.bf16.mxu0 %v2091
      %2110 = vmatpush1.bf16.msra.mxu0 %v2090
      %2111 = vmatprep.subr.bf16.mxu0 0
      %2112 = vmatpush1.bf16.msra.mxu0 0
      %2113 = vmatprep.subr.bf16.mxu0 0
      %2114 = vmatpush1.bf16.msra.mxu0 0
      %2115 = vmatprep.subr.bf16.mxu0 0
      %2116 = vmatpush1.bf16.msra.mxu0 0
      %2117 = vmatprep.subr.bf16.mxu0 0
      %2118 = vmatpush1.bf16.msra.mxu0 0
      %2119 = vmatprep.subr.bf16.mxu0 0
      %2120 = vmatpush1.bf16.msra.mxu0 0
      %2121 = vmatprep.subr.bf16.mxu0 0
      %2122 = vmatpush1.bf16.msra.mxu0 0
      %2123 = vmatprep.subr.bf16.mxu0 0
      %2124 = vmatpush1.bf16.msra.mxu0 0
      %2125 = vmatprep.subr.bf16.mxu0 0
      %2126 = vmatpush1.bf16.msra.mxu0 0
      %2127 = vmatprep.subr.bf16.mxu0 0
      %2128 = vmatpush1.bf16.msra.mxu0 0
      %2129 = vmatprep.subr.bf16.mxu0 0
      %2130 = vmatpush1.bf16.msra.mxu0 0
      %2131 = vmatprep.subr.bf16.mxu0 0
      %2132 = vmatpush1.bf16.msra.mxu0 0
      %2133 = vmatprep.subr.bf16.mxu0 0
      %2134 = vmatpush1.bf16.msra.mxu0 0
      %2135 = vmatprep.mubr.bf16.mxu0 0
      %2136 = vmatmul.mubr.bf16.gmra.mrb[0].mxu0 %v2039
      %v2137 = vpop.f32.mrb[0].mxu0
      %v2138 = vadd.f32 %v2096, %v2137
      %v2139 = vpop.f32.mrb[0].mxu0
      %v2140 = vadd.f32 %v2100, %v2139
      %v2141 = vpop.f32.mrb[0].mxu0
      %v2142 = vadd.f32 %v2096, %v2141
      %v2143 = vpop.f32.mrb[0].mxu0
      %v2144 = vadd.f32 %v2100, %v2143
      %2145 = vdwg.mxu0
      %v2146 = vmul.f32 %v2138, 0.5
      %v2147 = vmul.f32 %v2140, 0.5
      %v2148 = vmul.f32 %v2142, 0.5
      %v2149 = vmul.f32 %v2144, 0.5
      %v2150 = vmul.f32 %v2138, 0.044715
      %v2151 = vmul.f32 %v2140, 0.044715
      %v2152 = vmul.f32 %v2142, 0.044715
      %v2153 = vmul.f32 %v2144, 0.044715
      %v2154 = vmul.f32 %v2150, %v2138
      %v2155 = vmul.f32 %v2151, %v2140
      %v2156 = vmul.f32 %v2152, %v2142
      %v2157 = vmul.f32 %v2153, %v2144
      %v2158 = vmul.f32 %v2154, %v2138
      %v2159 = vmul.f32 %v2155, %v2140
      %v2160 = vmul.f32 %v2156, %v2142
      %v2161 = vmul.f32 %v2157, %v2144
      %v2162 = vadd.f32 %v2138, %v2158
      %v2163 = vadd.f32 %v2140, %v2159
      %v2164 = vadd.f32 %v2142, %v2160
      %v2165 = vadd.f32 %v2144, %v2161
      %v2166 = vmul.f32 %v2162, 0.7978846
      %v2167 = vmul.f32 %v2163, 0.7978846
      %v2168 = vmul.f32 %v2164, 0.7978846
      %v2169 = vmul.f32 %v2165, 0.7978846
      %v2170 = vtanh.pop %v2166
      %v2171 = vtanh.pop %v2167
      %v2172 = vtanh.pop %v2168
      %v2173 = vtanh.pop %v2169
      %v2174 = vadd.f32 %v2170, 1.0
      %v2175 = vadd.f32 %v2171, 1.0
      %v2176 = vadd.f32 %v2172, 1.0
      %v2177 = vadd.f32 %v2173, 1.0
      %v2178 = vmul.f32 %v2146, %v2174
      %v2179 = vmul.f32 %v2147, %v2175
      %v2180 = vmul.f32 %v2148, %v2176
      %v2181 = vmul.f32 %v2149, %v2177
      %v2182 = vmul.f32 %v2076, %v2178
      %v2183 = vmul.f32 %v2078, %v2179
      %v2184 = vmul.f32 %v2080, %v2180
      %v2185 = vmul.f32 %v2082, %v2181
      %v2186 = vpack.c.bf16 %v2184, %v2182
      %v2187 = vpack.c.bf16 %v2185, %v2183
      %v2188 = vpack.c.bf16 %v1986, %v1985
      %v2189 = vpack.c.bf16 %v1988, %v1987
      %v2190 = vpack.c.bf16 %v1990, %v1989
      %v2191 = vpack.c.bf16 %v1992, %v1991
      %v2192 = vpack.c.bf16 %v1994, %v1993
      %v2193 = vpack.c.bf16 %v1996, %v1995
      %v2194 = vpack.c.bf16 %v1998, %v1997
      %v2195 = vpack.c.bf16 %v2000, %v1999
      %v2196 = vpack.c.bf16 %v2002, %v2001
      %v2197 = vpack.c.bf16 %v2004, %v2003
      %v2198 = vpack.c.bf16 %v2006, %v2005
      %v2199 = vpack.c.bf16 %v2008, %v2007
      %v2200 = vpack.c.bf16 %v2010, %v2009
      %v2201 = vpack.c.bf16 %v2012, %v2011
      %v2202 = vpack.c.bf16 %v2014, %v2013
      %v2203 = vpack.c.bf16 %v2016, %v2015
      %v2205 = vlaneseq
      %v2206 = vshrl.u32 %v2205, 7
      %v2207 = vsub.s32 0, %v2206
      %v2208 = vrot.slane %v2017, %v2207
      %2210 = vmatprep.subr.bf16.mxu0 0
      %2211 = vmatpush1.bf16.msra.mxu0 %v2188
      %2212 = vmatprep.subr.bf16.mxu0 0
      %2213 = vmatpush1.bf16.msra.mxu0 %v2189
      %2214 = vmatprep.subr.bf16.mxu0 0
      %2215 = vmatpush1.bf16.msra.mxu0 %v2190
      %2216 = vmatprep.subr.bf16.mxu0 0
      %2217 = vmatpush1.bf16.msra.mxu0 %v2191
      %2218 = vmatprep.subr.bf16.mxu0 0
      %2219 = vmatpush1.bf16.msra.mxu0 %v2192
      %2220 = vmatprep.subr.bf16.mxu0 0
      %2221 = vmatpush1.bf16.msra.mxu0 %v2193
      %2222 = vmatprep.subr.bf16.mxu0 0
      %2223 = vmatpush1.bf16.msra.mxu0 %v2194
      %2224 = vmatprep.subr.bf16.mxu0 0
      %2225 = vmatpush1.bf16.msra.mxu0 %v2195
      %2226 = vmatprep.subr.bf16.mxu0 0
      %2227 = vmatpush1.bf16.msra.mxu0 %v2196
      %2228 = vmatprep.subr.bf16.mxu0 0
      %2229 = vmatpush1.bf16.msra.mxu0 %v2197
      %2230 = vmatprep.subr.bf16.mxu0 0
      %2231 = vmatpush1.bf16.msra.mxu0 %v2198
      %2232 = vmatprep.subr.bf16.mxu0 0
      %2233 = vmatpush1.bf16.msra.mxu0 %v2199
      %2234 = vmatprep.subr.bf16.mxu0 0
      %2235 = vmatpush1.bf16.msra.mxu0 %v2200
      %2236 = vmatprep.subr.bf16.mxu0 0
      %2237 = vmatpush1.bf16.msra.mxu0 %v2201
      %2238 = vmatprep.subr.bf16.mxu0 0
      %2239 = vmatpush1.bf16.msra.mxu0 %v2202
      %2240 = vmatprep.subr.bf16.mxu0 0
      %2241 = vmatpush1.bf16.msra.mxu0 %v2203
      %2242 = vmatprep.mubr.bf16.mxu0 %v2187
      %2243 = vmatmul.mubr.bf16.gmra.mrb[0].mxu0 %v2186
      %v2244 = vpop.f32.mrb[0].mxu0
      %v2245 = vadd.f32 %v2208, %v2244
      %v2246 = vpop.f32.mrb[0].mxu0
      %v2247 = vpop.f32.mrb[0].mxu0
      %v2248 = vadd.f32 %v2208, %v2247
      %v2249 = vpop.f32.mrb[0].mxu0
      %2250 = vdwg.mxu0
      %v2251 = vadd.f32 %v2245, %v1905
      %v2252 = vadd.f32 %v2248, %v1906
      %2253 = vst.msk [vmem:[%s521] sm:$0xff] %vm527, %v2251
      %2254 = vst.msk [vmem:[%s521 + $0x8] sm:$0xff] %vm527, %v2252
      %p2255 = scmp.lt.s32.totalorder %s27, 1
      %s2256 = scalar_select %p2255, %s27, 1
      %s2257 = smul.addr %s2256, 2
      %s2258 = smul.addr %s2257, 8
      %s2259 = scalar_lea.vmem %s16, %s2258
      // Predicated region
      $region85: #{forward.7} parent=83 // pred_check
        %p2260 = pneg %p386
      $region86: #{forward.7} parent=83 // pred_check_branch
        %2262 = sbr.rel (%p2260) target = $region88
      $region87: #{forward.7} parent=83 // pred_region
        _
      $region88: #{forward.7} parent=83 // pred_fallthru
        _
    $region84: #{forward.7} parent=5 // pred_fallthru
      _
    %p2263 = scmp.le.s32.totalorder 2, %s22
    // Predicated region
    $region89: #{forward.7} parent=5 // pred_check
      %p2264 = pneg %p2263
    $region90: #{forward.7} parent=5 // pred_check_branch
      %2266 = sbr.rel (%p2264) target = $region92
    $region91: #{forward.7} parent=5 // pred_region
      %s2267 = ssub.s32 %s22, 2
      // Predicated region
      $region93: #{forward.7} parent=91 // pred_check
        %p2268 = pneg %p392
      $region94: #{forward.7} parent=91 // pred_check_branch
        %2270 = sbr.rel (%p2268) target = $region96
      $region95: #{forward.7} parent=91 // pred_region
        %p2271 = scmp.lt.s32.totalorder %s28, 1
        %s2272 = scalar_select %p2271, %s28, 1
        %s2273 = smul.addr %s2272, 2
        %s2274 = smul.addr %s2273, 8
        %s2275 = scalar_lea.vmem %s16, %s2274
      $region96: #{forward.7} parent=91 // pred_fallthru
        _
    $region92: #{forward.7} parent=5 // pred_fallthru
      _
  $region6: #{forward.7} parent=0 // loop_footer
    %s26 = sadd.s32 1, %s22
  $region7: #{forward.7} parent=0 // loop_footer_branch
    %21 = sbr.rel target = $region3
  $region8: #{forward.7} parent=0 // loop_exit
    _

</llo_original>
